<compile_context>
chip_gen: v5e
topology: v5e:2x2
jax: 0.10.0
libtpu: 0.0.40
codegen_flags: <defaults>
</compile_context>

<pallas_src>
import jax
import jax.numpy as jnp
from jax import lax
from jax.experimental import pallas as pl
from jax.experimental.pallas import tpu as pltpu

LRELU_SLOPE = 0.2
BN_EPS = 1e-5
TM_MAX = 512          # target M-tile (rows of the im2col patch matrix)
LANE = 128


# ------------------------------ small helpers ------------------------------ #

def _round_up(x, m):
    return ((x + m - 1) // m) * m


def _vmem_limit_bytes():
    # Generation-aware scoped-VMEM budget (v5e/v6e ~96 MiB, v7x ~48 MiB).
    try:
        cap = pltpu.get_tpu_info().vmem_capacity_bytes
        return int(min(cap * 3 // 4, 100 * 1024 * 1024))
    except Exception:
        return 48 * 1024 * 1024


def _compiler_params(semantics):
    return pltpu.CompilerParams(
        dimension_semantics=semantics,
        vmem_limit_bytes=_vmem_limit_bytes(),
    )


# ------------------------------ Pallas kernels ------------------------------ #

def _mm_lrelu_kernel(p_ref, w_ref, o_ref):
    """patches[TM,Kp](bf16) @ w[Kp,Cp](bf16) -> f32 -> LeakyReLU -> o[TM,Cp]."""
    y = jnp.dot(p_ref[...], w_ref[...], preferred_element_type=jnp.float32)
    o_ref[...] = jnp.maximum(y, LRELU_SLOPE * y).astype(o_ref.dtype)


def _mm_stats_kernel(p_ref, w_ref, y_ref, sum_ref, sq_ref):
    """Matmul tile; also accumulate per-channel sum / sum-of-squares across the
    M grid axis into resident (1, Cp) accumulators (global BN stats, tile-safe)."""
    @pl.when(pl.program_id(0) == 0)
    def _():
        sum_ref[...] = jnp.zeros_like(sum_ref)
        sq_ref[...] = jnp.zeros_like(sq_ref)

    y = jnp.dot(p_ref[...], w_ref[...], preferred_element_type=jnp.float32)
    y_ref[...] = y
    sum_ref[...] += jnp.sum(y, axis=0, keepdims=True)
    sq_ref[...] += jnp.sum(y * y, axis=0, keepdims=True)


def _bn_lrelu_kernel(y_ref, scale_ref, shift_ref, o_ref):
    """y*scale + shift (BatchNorm, batch stats, gamma=1, beta=0) -> LeakyReLU."""
    z = y_ref[...] * scale_ref[...] + shift_ref[...]
    o_ref[...] = jnp.maximum(z, LRELU_SLOPE * z).astype(o_ref.dtype)


# ------------------------------ pallas_call wrappers ------------------------ #

def _mm_lrelu(patches, w_mm, tm, out_dtype):
    mp, kp = patches.shape
    cp = w_mm.shape[1]
    return pl.pallas_call(
        _mm_lrelu_kernel,
        out_shape=jax.ShapeDtypeStruct((mp, cp), out_dtype),
        grid=(mp // tm,),
        in_specs=[pl.BlockSpec((tm, kp), lambda i: (i, 0)),
                  pl.BlockSpec((kp, cp), lambda i: (0, 0))],
        out_specs=pl.BlockSpec((tm, cp), lambda i: (i, 0)),
        compiler_params=_compiler_params(("parallel",)),
    )(patches, w_mm)


def _mm_stats(patches, w_mm, tm):
    mp, kp = patches.shape
    cp = w_mm.shape[1]
    return pl.pallas_call(
        _mm_stats_kernel,
        out_shape=(jax.ShapeDtypeStruct((mp, cp), jnp.float32),
                   jax.ShapeDtypeStruct((1, cp), jnp.float32),
                   jax.ShapeDtypeStruct((1, cp), jnp.float32)),
        grid=(mp // tm,),
        in_specs=[pl.BlockSpec((tm, kp), lambda i: (i, 0)),
                  pl.BlockSpec((kp, cp), lambda i: (0, 0))],
        out_specs=(pl.BlockSpec((tm, cp), lambda i: (i, 0)),
                   pl.BlockSpec((1, cp), lambda i: (0, 0)),
                   pl.BlockSpec((1, cp), lambda i: (0, 0))),
        # stat accumulators are resident across the M axis -> must be "arbitrary"
        compiler_params=_compiler_params(("arbitrary",)),
    )(patches, w_mm)


def _bn_lrelu(y, scale, shift, tm, out_dtype):
    mp, cp = y.shape
    return pl.pallas_call(
        _bn_lrelu_kernel,
        out_shape=jax.ShapeDtypeStruct((mp, cp), out_dtype),
        grid=(mp // tm,),
        in_specs=[pl.BlockSpec((tm, cp), lambda i: (i, 0)),
                  pl.BlockSpec((1, cp), lambda i: (0, 0)),
                  pl.BlockSpec((1, cp), lambda i: (0, 0))],
        out_specs=pl.BlockSpec((tm, cp), lambda i: (i, 0)),
        compiler_params=_compiler_params(("parallel",)),
    )(y, scale, shift)


# ------------------------------ JAX glue ------------------------------------ #

def _im2col(x_nhwc, k=4, stride=2, pad=1):
    """x: [N,H,W,C] (bf16) -> patches [N*OH*OW, k*k*C] (bf16), plus (OH, OW)."""
    # TODO(synk): fuse this patch extraction into the matmul kernel via a windowed
    # BlockSpec so the expanded patch matrix never round-trips through HBM.
    n, h, w, c = x_nhwc.shape
    xp = jnp.pad(x_nhwc, ((0, 0), (pad, pad), (pad, pad), (0, 0)))
    oh = (h + 2 * pad - k) // stride + 1
    ow = (w + 2 * pad - k) // stride + 1
    cols = []
    for i in range(k):
        for j in range(k):
            cols.append(xp[:, i:i + stride * oh:stride, j:j + stride * ow:stride, :])
    patches = jnp.stack(cols, axis=3)              # [N, OH, OW, k*k, C]
    return patches.reshape(n * oh * ow, k * k * c), oh, ow


def _choose_tiles(m):
    tm = min(TM_MAX, _round_up(m, 32))
    mp = _round_up(m, tm)
    return tm, mp


def _prep_patches(x_nhwc):
    p, oh, ow = _im2col(x_nhwc)
    m, k = p.shape
    kp = _round_up(k, LANE)
    tm, mp = _choose_tiles(m)
    p = jnp.pad(p, ((0, mp - m), (0, kp - k)))      # zero rows/cols: BN-safe
    return p, m, oh, ow, tm, kp


def _prep_weight(w_torch, kp):
    """torch [Cout,Cin,kh,kw] -> [kh*kw*Cin, Cout], zero-padded lane-dense bf16."""
    cout = w_torch.shape[0]
    w_mm = jnp.transpose(w_torch, (2, 3, 1, 0)).reshape(-1, cout)
    k = w_mm.shape[0]
    cp = _round_up(cout, LANE)
    w_mm = jnp.pad(w_mm, ((0, kp - k), (0, cp - cout)))
    return w_mm.astype(jnp.bfloat16), cout


def _conv_block(x_nhwc, w_torch, *, use_bn, out_dtype):
    p, m, oh, ow, tm, kp = _prep_patches(x_nhwc)
    w_mm, cout = _prep_weight(w_torch, kp)
    if not use_bn:
        y = _mm_lrelu(p, w_mm, tm, out_dtype)
    else:
        y_mm, csum, csq = _mm_stats(p, w_mm, tm)
        inv_m = 1.0 / float(m)                      # true row count (padded rows are 0)
        mean = csum * inv_m
        var = jnp.maximum(csq * inv_m - mean * mean, 0.0)   # biased var (torch train mode)
        scale = lax.rsqrt(var + BN_EPS)             # gamma = 1
        shift = -mean * scale                       # beta  = 0
        y = _bn_lrelu(y_mm, scale, shift, tm, out_dtype)
    return y, m, oh, ow, cout


def spectral_normalize(w, key, n_iter=1, eps=1e-12):
    """w: torch layout [Cout,Cin,kh,kw]. One power iteration (torch default)."""
    cout = w.shape[0]
    w_mat = w.reshape(cout, -1)
    u = jax.random.normal(key, (cout,), dtype=jnp.float32)
    u = u / (jnp.linalg.norm(u) + eps)
    v = None
    for _ in range(n_iter):
        v = w_mat.T @ u
        v = v / (jnp.linalg.norm(v) + eps)
        u = w_mat @ v
        u = u / (jnp.linalg.norm(u) + eps)
    sigma = u @ (w_mat @ v)
    return w / sigma


def discriminator_forward(x_nchw, weights):
    """x: [N,1,H,W] f32.  weights: 4 spectral-normalized torch-layout conv weights."""
    n = x_nchw.shape[0]
    x = jnp.transpose(x_nchw, (0, 2, 3, 1)).astype(jnp.bfloat16)   # NCHW -> NHWC

    # Layer 1: conv + LeakyReLU (no BN)
    y, m, oh, ow, cout = _conv_block(x, weights[0], use_bn=False, out_dtype=jnp.bfloat16)
    x = y[:m, :cout].reshape(n, oh, ow, cout)

    # Layers 2, 3: conv + BN + LeakyReLU
    for li in (1, 2):
        y, m, oh, ow, cout = _conv_block(x, weights[li], use_bn=True, out_dtype=jnp.bfloat16)
        x = y[:m, :cout].reshape(n, oh, ow, cout)

    # Layer 4: conv + BN + LeakyReLU, then sum over H,W  -> [N, ndf*8]
    y, m, oh, ow, cout = _conv_block(x, weights[3], use_bn=True, out_dtype=jnp.float32)
    return y[:m, :cout].reshape(n, oh * ow, cout).sum(axis=1)


def reference_forward(x_nchw, weights):
    """Pure-JAX/XLA reference mirroring the kernel's numeric pipeline
    (bf16 conv operands, f32 accumulation / BN / LeakyReLU)."""
    x = jnp.transpose(x_nchw, (0, 2, 3, 1)).astype(jnp.bfloat16)
    n_layers = len(weights)
    for li, w in enumerate(weights):
        w_hwio = jnp.transpose(w, (2, 3, 1, 0)).astype(jnp.bfloat16)
        y = lax.conv_general_dilated(
            x, w_hwio, window_strides=(2, 2), padding=((1, 1), (1, 1)),
            dimension_numbers=("NHWC", "HWIO", "NHWC"),
            preferred_element_type=jnp.float32)
        if li > 0:
            mean = jnp.mean(y, axis=(0, 1, 2), keepdims=True)
            var = jnp.mean(jnp.square(y - mean), axis=(0, 1, 2), keepdims=True)
            y = (y - mean) * lax.rsqrt(var + BN_EPS)
        y = jnp.maximum(y, LRELU_SLOPE * y)
        x = y.astype(jnp.bfloat16) if li < n_layers - 1 else y
    return jnp.sum(x, axis=(1, 2))


# ------------------------------- main ---------------------------------------- #

if __name__ == "__main__":
    key = jax.random.PRNGKey(0)
    ndf = 8                       # params.filterD (small synthetic value)
    N, H, W = 4, 64, 64           # small; exercises multi-tile grids incl. tiled BN

    keys = jax.random.split(key, 9)
    x = jax.random.normal(keys[0], (N, 1, H, W), dtype=jnp.float32)

    # Deterministic conv weight init (torch layout [Cout, Cin, kh, kw]).
    raw_weights = [
        0.05 * jax.random.normal(keys[1], (ndf,     1,       4, 4), dtype=jnp.float32),
        0.05 * jax.random.normal(keys[2], (ndf * 2, ndf,     4, 4), dtype=jnp.float32),
        0.05 * jax.random.normal(keys[3], (ndf * 4, ndf * 2, 4, 4), dtype=jnp.float32),
        0.05 * jax.random.normal(keys[4], (ndf * 8, ndf * 4, 4, 4), dtype=jnp.float32),
    ]
    weights = [spectral_normalize(w, k) for w, k in zip(raw_weights, keys[5:9])]

    fwd = jax.jit(discriminator_forward)
    out = fwd(x, weights)
    jax.block_until_ready(out)

    assert out.shape == (N, ndf * 8), out.shape
    assert bool(jnp.all(jnp.isfinite(out)))

    # Tolerance check against a pure-JAX reference using the same bf16 rounding.
    ref = reference_forward(x, weights)
    err = float(jnp.max(jnp.abs(out - ref)) / (jnp.max(jnp.abs(ref)) + 1e-6))
    assert err < 5e-2, f"max relative error vs reference: {err}"

    print("KERNEL_OK")
</pallas_src>

<mosaic_0001>
module attributes {stable_mosaic.version = 11 : i64} {
  func.func @_mm_lrelu_kernel(%arg0: i32, %arg1: memref<512x128xbf16, #tpu.memory_space<vmem>>, %arg2: memref<128x128xbf16, #tpu.memory_space<vmem>>, %arg3: memref<512x128xbf16, #tpu.memory_space<vmem>>) attributes {dimension_semantics = [#tpu.dimension_semantics<parallel>], iteration_bounds = array<i64: 8>, scalar_prefetch = 0 : i64, scratch_operands = 0 : i64, tpu.core_type = #tpu.core_type<tc>, window_params = [{transform_indices = @transform_0, window_bounds = array<i64: 512, 128>}, {pipeline_mode = #tpu.pipeline_mode<synchronous>, transform_indices = @transform_1, window_bounds = array<i64: 128, 128>}, {transform_indices = @transform_2, window_bounds = array<i64: 512, 128>}]} {
    %c0 = arith.constant 0 : index
    %c0_0 = arith.constant 0 : index
    %0 = vector.load %arg1[%c0, %c0_0] : memref<512x128xbf16, #tpu.memory_space<vmem>>, vector<512x128xbf16>
    %c0_1 = arith.constant 0 : index
    %c0_2 = arith.constant 0 : index
    %1 = vector.load %arg2[%c0_1, %c0_2] : memref<128x128xbf16, #tpu.memory_space<vmem>>, vector<128x128xbf16>
    %cst = arith.constant dense<0.000000e+00> : vector<512x128xf32>
    %2 = tpu.matmul %0, %1, %cst {dimension_numbers = #tpu.dot_dimension_numbers<[1], [0], [0], [1], [0, 0, 1, 1], [], []>} : vector<512x128xbf16>, vector<128x128xbf16>, vector<512x128xf32> -> vector<512x128xf32>
    %cst_3 = arith.constant 2.000000e-01 : f32
    %3 = vector.broadcast %cst_3 : f32 to vector<512x128xf32>
    %4 = arith.mulf %3, %2 : vector<512x128xf32>
    %5 = arith.maximumf %2, %4 : vector<512x128xf32>
    %6 = arith.truncf %5 : vector<512x128xf32> to vector<512x128xbf16>
    %c0_4 = arith.constant 0 : index
    %c0_5 = arith.constant 0 : index
    %7 = vector.load %arg3[%c0_4, %c0_5] : memref<512x128xbf16, #tpu.memory_space<vmem>>, vector<512x128xbf16>
    tpu.vector_store %arg3[%c0_4, %c0_5], %6 {strides = array<i32>} : memref<512x128xbf16, #tpu.memory_space<vmem>>, vector<512x128xbf16>,
    return
  }
  func.func @transform_0(%arg0: i32) -> (i32, i32) {
    %c0_i32 = arith.constant 0 : i32
    %c0_i32_0 = arith.constant 0 : i32
    return %arg0, %c0_i32 : i32, i32
  }
  func.func @transform_1(%arg0: i32) -> (i32, i32) {
    %c0_i32 = arith.constant 0 : i32
    %c0_i32_0 = arith.constant 0 : i32
    %c0_i32_1 = arith.constant 0 : i32
    return %c0_i32, %c0_i32_0 : i32, i32
  }
  func.func @transform_2(%arg0: i32) -> (i32, i32) {
    %c0_i32 = arith.constant 0 : i32
    %c0_i32_0 = arith.constant 0 : i32
    return %arg0, %c0_i32 : i32, i32
  }
}

module attributes {stable_mosaic.version = 11 : i64} {
  func.func @_mm_stats_kernel(%arg0: i32, %arg1: memref<512x128xbf16, #tpu.memory_space<vmem>>, %arg2: memref<128x128xbf16, #tpu.memory_space<vmem>>, %arg3: memref<512x128xf32, #tpu.memory_space<vmem>>, %arg4: memref<1x128xf32, #tpu.memory_space<vmem>>, %arg5: memref<1x128xf32, #tpu.memory_space<vmem>>) attributes {dimension_semantics = [#tpu.dimension_semantics<arbitrary>], iteration_bounds = array<i64: 2>, scalar_prefetch = 0 : i64, scratch_operands = 0 : i64, tpu.core_type = #tpu.core_type<tc>, window_params = [{transform_indices = @transform_0, window_bounds = array<i64: 512, 128>}, {pipeline_mode = #tpu.pipeline_mode<synchronous>, transform_indices = @transform_1, window_bounds = array<i64: 128, 128>}, {transform_indices = @transform_2, window_bounds = array<i64: 512, 128>}, {pipeline_mode = #tpu.pipeline_mode<synchronous>, transform_indices = @transform_3, window_bounds = array<i64: 1, 128>}, {pipeline_mode = #tpu.pipeline_mode<synchronous>, transform_indices = @transform_4, window_bounds = array<i64: 1, 128>}]} {
    %c0_i32 = arith.constant 0 : i32
    %0 = arith.cmpi eq, %arg0, %c0_i32 : i32
    %1 = arith.extui %0 : i1 to i32
    %c0_i32_0 = arith.constant 0 : i32
    %2 = arith.cmpi ne, %1, %c0_i32_0 : i32
    scf.if %2 {
      %cst_16 = arith.constant 0.000000e+00 : f32
      %18 = vector.broadcast %cst_16 : f32 to vector<1x128xf32>
      %c0_17 = arith.constant 0 : index
      %c0_18 = arith.constant 0 : index
      %19 = vector.load %arg4[%c0_17, %c0_18] : memref<1x128xf32, #tpu.memory_space<vmem>>, vector<1x128xf32>
      tpu.vector_store %arg4[%c0_17, %c0_18], %18 {strides = array<i32>} : memref<1x128xf32, #tpu.memory_space<vmem>>, vector<1x128xf32>,
      %cst_19 = arith.constant 0.000000e+00 : f32
      %20 = vector.broadcast %cst_19 : f32 to vector<1x128xf32>
      %c0_20 = arith.constant 0 : index
      %c0_21 = arith.constant 0 : index
      %21 = vector.load %arg5[%c0_20, %c0_21] : memref<1x128xf32, #tpu.memory_space<vmem>>, vector<1x128xf32>
      tpu.vector_store %arg5[%c0_20, %c0_21], %20 {strides = array<i32>} : memref<1x128xf32, #tpu.memory_space<vmem>>, vector<1x128xf32>,
    } else {
    }
    %c0 = arith.constant 0 : index
    %c0_1 = arith.constant 0 : index
    %3 = vector.load %arg1[%c0, %c0_1] : memref<512x128xbf16, #tpu.memory_space<vmem>>, vector<512x128xbf16>
    %c0_2 = arith.constant 0 : index
    %c0_3 = arith.constant 0 : index
    %4 = vector.load %arg2[%c0_2, %c0_3] : memref<128x128xbf16, #tpu.memory_space<vmem>>, vector<128x128xbf16>
    %cst = arith.constant dense<0.000000e+00> : vector<512x128xf32>
    %5 = tpu.matmul %3, %4, %cst {dimension_numbers = #tpu.dot_dimension_numbers<[1], [0], [0], [1], [0, 0, 1, 1], [], []>} : vector<512x128xbf16>, vector<128x128xbf16>, vector<512x128xf32> -> vector<512x128xf32>
    %c0_4 = arith.constant 0 : index
    %c0_5 = arith.constant 0 : index
    %6 = vector.load %arg3[%c0_4, %c0_5] : memref<512x128xf32, #tpu.memory_space<vmem>>, vector<512x128xf32>
    tpu.vector_store %arg3[%c0_4, %c0_5], %5 {strides = array<i32>} : memref<512x128xf32, #tpu.memory_space<vmem>>, vector<512x128xf32>,
    %c0_6 = arith.constant 0 : index
    %c0_7 = arith.constant 0 : index
    %7 = vector.load %arg4[%c0_6, %c0_7] : memref<1x128xf32, #tpu.memory_space<vmem>>, vector<1x128xf32>
    %cst_8 = arith.constant dense<0.000000e+00> : vector<128xf32>
    %8 = vector.multi_reduction <add>, %5, %cst_8 [0] : vector<512x128xf32> to vector<128xf32>
    %9 = vector.shape_cast %8 : vector<128xf32> to vector<1x128xf32>
    %10 = arith.addf %7, %9 : vector<1x128xf32>
    %c0_9 = arith.constant 0 : index
    %c0_10 = arith.constant 0 : index
    %11 = vector.load %arg4[%c0_9, %c0_10] : memref<1x128xf32, #tpu.memory_space<vmem>>, vector<1x128xf32>
    tpu.vector_store %arg4[%c0_9, %c0_10], %10 {strides = array<i32>} : memref<1x128xf32, #tpu.memory_space<vmem>>, vector<1x128xf32>,
    %c0_11 = arith.constant 0 : index
    %c0_12 = arith.constant 0 : index
    %12 = vector.load %arg5[%c0_11, %c0_12] : memref<1x128xf32, #tpu.memory_space<vmem>>, vector<1x128xf32>
    %13 = arith.mulf %5, %5 : vector<512x128xf32>
    %cst_13 = arith.constant dense<0.000000e+00> : vector<128xf32>
    %14 = vector.multi_reduction <add>, %13, %cst_13 [0] : vector<512x128xf32> to vector<128xf32>
    %15 = vector.shape_cast %14 : vector<128xf32> to vector<1x128xf32>
    %16 = arith.addf %12, %15 : vector<1x128xf32>
    %c0_14 = arith.constant 0 : index
    %c0_15 = arith.constant 0 : index
    %17 = vector.load %arg5[%c0_14, %c0_15] : memref<1x128xf32, #tpu.memory_space<vmem>>, vector<1x128xf32>
    tpu.vector_store %arg5[%c0_14, %c0_15], %16 {strides = array<i32>} : memref<1x128xf32, #tpu.memory_space<vmem>>, vector<1x128xf32>,
    return
  }
  func.func @transform_0(%arg0: i32) -> (i32, i32) {
    %c0_i32 = arith.constant 0 : i32
    %c0_i32_0 = arith.constant 0 : i32
    return %arg0, %c0_i32 : i32, i32
  }
  func.func @transform_1(%arg0: i32) -> (i32, i32) {
    %c0_i32 = arith.constant 0 : i32
    %c0_i32_0 = arith.constant 0 : i32
    %c0_i32_1 = arith.constant 0 : i32
    return %c0_i32, %c0_i32_0 : i32, i32
  }
  func.func @transform_2(%arg0: i32) -> (i32, i32) {
    %c0_i32 = arith.constant 0 : i32
    %c0_i32_0 = arith.constant 0 : i32
    return %arg0, %c0_i32 : i32, i32
  }
  func.func @transform_3(%arg0: i32) -> (i32, i32) {
    %c0_i32 = arith.constant 0 : i32
    %c0_i32_0 = arith.constant 0 : i32
    %c0_i32_1 = arith.constant 0 : i32
    return %c0_i32, %c0_i32_0 : i32, i32
  }
  func.func @transform_4(%arg0: i32) -> (i32, i32) {
    %c0_i32 = arith.constant 0 : i32
    %c0_i32_0 = arith.constant 0 : i32
    %c0_i32_1 = arith.constant 0 : i32
    return %c0_i32, %c0_i32_0 : i32, i32
  }
}

module attributes {stable_mosaic.version = 11 : i64} {
  func.func @_bn_lrelu_kernel(%arg0: i32, %arg1: memref<512x128xf32, #tpu.memory_space<vmem>>, %arg2: memref<1x128xf32, #tpu.memory_space<vmem>>, %arg3: memref<1x128xf32, #tpu.memory_space<vmem>>, %arg4: memref<512x128xbf16, #tpu.memory_space<vmem>>) attributes {dimension_semantics = [#tpu.dimension_semantics<parallel>], iteration_bounds = array<i64: 2>, scalar_prefetch = 0 : i64, scratch_operands = 0 : i64, tpu.core_type = #tpu.core_type<tc>, window_params = [{transform_indices = @transform_0, window_bounds = array<i64: 512, 128>}, {pipeline_mode = #tpu.pipeline_mode<synchronous>, transform_indices = @transform_1, window_bounds = array<i64: 1, 128>}, {pipeline_mode = #tpu.pipeline_mode<synchronous>, transform_indices = @transform_2, window_bounds = array<i64: 1, 128>}, {transform_indices = @transform_3, window_bounds = array<i64: 512, 128>}]} {
    %c0 = arith.constant 0 : index
    %c0_0 = arith.constant 0 : index
    %0 = vector.load %arg1[%c0, %c0_0] : memref<512x128xf32, #tpu.memory_space<vmem>>, vector<512x128xf32>
    %c0_1 = arith.constant 0 : index
    %c0_2 = arith.constant 0 : index
    %1 = vector.load %arg2[%c0_1, %c0_2] : memref<1x128xf32, #tpu.memory_space<vmem>>, vector<1x128xf32>
    %2 = vector.broadcast %1 : vector<1x128xf32> to vector<512x128xf32>
    %3 = arith.mulf %0, %2 : vector<512x128xf32>
    %c0_3 = arith.constant 0 : index
    %c0_4 = arith.constant 0 : index
    %4 = vector.load %arg3[%c0_3, %c0_4] : memref<1x128xf32, #tpu.memory_space<vmem>>, vector<1x128xf32>
    %5 = vector.broadcast %4 : vector<1x128xf32> to vector<512x128xf32>
    %6 = arith.addf %3, %5 : vector<512x128xf32>
    %cst = arith.constant 2.000000e-01 : f32
    %7 = vector.broadcast %cst : f32 to vector<512x128xf32>
    %8 = arith.mulf %7, %6 : vector<512x128xf32>
    %9 = arith.maximumf %6, %8 : vector<512x128xf32>
    %10 = arith.truncf %9 : vector<512x128xf32> to vector<512x128xbf16>
    %c0_5 = arith.constant 0 : index
    %c0_6 = arith.constant 0 : index
    %11 = vector.load %arg4[%c0_5, %c0_6] : memref<512x128xbf16, #tpu.memory_space<vmem>>, vector<512x128xbf16>
    tpu.vector_store %arg4[%c0_5, %c0_6], %10 {strides = array<i32>} : memref<512x128xbf16, #tpu.memory_space<vmem>>, vector<512x128xbf16>,
    return
  }
  func.func @transform_0(%arg0: i32) -> (i32, i32) {
    %c0_i32 = arith.constant 0 : i32
    %c0_i32_0 = arith.constant 0 : i32
    return %arg0, %c0_i32 : i32, i32
  }
  func.func @transform_1(%arg0: i32) -> (i32, i32) {
    %c0_i32 = arith.constant 0 : i32
    %c0_i32_0 = arith.constant 0 : i32
    %c0_i32_1 = arith.constant 0 : i32
    return %c0_i32, %c0_i32_0 : i32, i32
  }
  func.func @transform_2(%arg0: i32) -> (i32, i32) {
    %c0_i32 = arith.constant 0 : i32
    %c0_i32_0 = arith.constant 0 : i32
    %c0_i32_1 = arith.constant 0 : i32
    return %c0_i32, %c0_i32_0 : i32, i32
  }
  func.func @transform_3(%arg0: i32) -> (i32, i32) {
    %c0_i32 = arith.constant 0 : i32
    %c0_i32_0 = arith.constant 0 : i32
    return %arg0, %c0_i32 : i32, i32
  }
}

module attributes {stable_mosaic.version = 11 : i64} {
  func.func @_mm_stats_kernel(%arg0: i32, %arg1: memref<256x256xbf16, #tpu.memory_space<vmem>>, %arg2: memref<256x128xbf16, #tpu.memory_space<vmem>>, %arg3: memref<256x128xf32, #tpu.memory_space<vmem>>, %arg4: memref<1x128xf32, #tpu.memory_space<vmem>>, %arg5: memref<1x128xf32, #tpu.memory_space<vmem>>) attributes {dimension_semantics = [#tpu.dimension_semantics<arbitrary>], iteration_bounds = array<i64: 1>, scalar_prefetch = 0 : i64, scratch_operands = 0 : i64, tpu.core_type = #tpu.core_type<tc>, window_params = [{transform_indices = @transform_0, window_bounds = array<i64: 256, 256>}, {pipeline_mode = #tpu.pipeline_mode<synchronous>, transform_indices = @transform_1, window_bounds = array<i64: 256, 128>}, {transform_indices = @transform_2, window_bounds = array<i64: 256, 128>}, {pipeline_mode = #tpu.pipeline_mode<synchronous>, transform_indices = @transform_3, window_bounds = array<i64: 1, 128>}, {pipeline_mode = #tpu.pipeline_mode<synchronous>, transform_indices = @transform_4, window_bounds = array<i64: 1, 128>}]} {
    %c0_i32 = arith.constant 0 : i32
    %0 = arith.cmpi eq, %arg0, %c0_i32 : i32
    %1 = arith.extui %0 : i1 to i32
    %c0_i32_0 = arith.constant 0 : i32
    %2 = arith.cmpi ne, %1, %c0_i32_0 : i32
    scf.if %2 {
      %cst_16 = arith.constant 0.000000e+00 : f32
      %18 = vector.broadcast %cst_16 : f32 to vector<1x128xf32>
      %c0_17 = arith.constant 0 : index
      %c0_18 = arith.constant 0 : index
      %19 = vector.load %arg4[%c0_17, %c0_18] : memref<1x128xf32, #tpu.memory_space<vmem>>, vector<1x128xf32>
      tpu.vector_store %arg4[%c0_17, %c0_18], %18 {strides = array<i32>} : memref<1x128xf32, #tpu.memory_space<vmem>>, vector<1x128xf32>,
      %cst_19 = arith.constant 0.000000e+00 : f32
      %20 = vector.broadcast %cst_19 : f32 to vector<1x128xf32>
      %c0_20 = arith.constant 0 : index
      %c0_21 = arith.constant 0 : index
      %21 = vector.load %arg5[%c0_20, %c0_21] : memref<1x128xf32, #tpu.memory_space<vmem>>, vector<1x128xf32>
      tpu.vector_store %arg5[%c0_20, %c0_21], %20 {strides = array<i32>} : memref<1x128xf32, #tpu.memory_space<vmem>>, vector<1x128xf32>,
    } else {
    }
    %c0 = arith.constant 0 : index
    %c0_1 = arith.constant 0 : index
    %3 = vector.load %arg1[%c0, %c0_1] : memref<256x256xbf16, #tpu.memory_space<vmem>>, vector<256x256xbf16>
    %c0_2 = arith.constant 0 : index
    %c0_3 = arith.constant 0 : index
    %4 = vector.load %arg2[%c0_2, %c0_3] : memref<256x128xbf16, #tpu.memory_space<vmem>>, vector<256x128xbf16>
    %cst = arith.constant dense<0.000000e+00> : vector<256x128xf32>
    %5 = tpu.matmul %3, %4, %cst {dimension_numbers = #tpu.dot_dimension_numbers<[1], [0], [0], [1], [0, 0, 1, 1], [], []>} : vector<256x256xbf16>, vector<256x128xbf16>, vector<256x128xf32> -> vector<256x128xf32>
    %c0_4 = arith.constant 0 : index
    %c0_5 = arith.constant 0 : index
    %6 = vector.load %arg3[%c0_4, %c0_5] : memref<256x128xf32, #tpu.memory_space<vmem>>, vector<256x128xf32>
    tpu.vector_store %arg3[%c0_4, %c0_5], %5 {strides = array<i32>} : memref<256x128xf32, #tpu.memory_space<vmem>>, vector<256x128xf32>,
    %c0_6 = arith.constant 0 : index
    %c0_7 = arith.constant 0 : index
    %7 = vector.load %arg4[%c0_6, %c0_7] : memref<1x128xf32, #tpu.memory_space<vmem>>, vector<1x128xf32>
    %cst_8 = arith.constant dense<0.000000e+00> : vector<128xf32>
    %8 = vector.multi_reduction <add>, %5, %cst_8 [0] : vector<256x128xf32> to vector<128xf32>
    %9 = vector.shape_cast %8 : vector<128xf32> to vector<1x128xf32>
    %10 = arith.addf %7, %9 : vector<1x128xf32>
    %c0_9 = arith.constant 0 : index
    %c0_10 = arith.constant 0 : index
    %11 = vector.load %arg4[%c0_9, %c0_10] : memref<1x128xf32, #tpu.memory_space<vmem>>, vector<1x128xf32>
    tpu.vector_store %arg4[%c0_9, %c0_10], %10 {strides = array<i32>} : memref<1x128xf32, #tpu.memory_space<vmem>>, vector<1x128xf32>,
    %c0_11 = arith.constant 0 : index
    %c0_12 = arith.constant 0 : index
    %12 = vector.load %arg5[%c0_11, %c0_12] : memref<1x128xf32, #tpu.memory_space<vmem>>, vector<1x128xf32>
    %13 = arith.mulf %5, %5 : vector<256x128xf32>
    %cst_13 = arith.constant dense<0.000000e+00> : vector<128xf32>
    %14 = vector.multi_reduction <add>, %13, %cst_13 [0] : vector<256x128xf32> to vector<128xf32>
    %15 = vector.shape_cast %14 : vector<128xf32> to vector<1x128xf32>
    %16 = arith.addf %12, %15 : vector<1x128xf32>
    %c0_14 = arith.constant 0 : index
    %c0_15 = arith.constant 0 : index
    %17 = vector.load %arg5[%c0_14, %c0_15] : memref<1x128xf32, #tpu.memory_space<vmem>>, vector<1x128xf32>
    tpu.vector_store %arg5[%c0_14, %c0_15], %16 {strides = array<i32>} : memref<1x128xf32, #tpu.memory_space<vmem>>, vector<1x128xf32>,
    return
  }
  func.func @transform_0(%arg0: i32) -> (i32, i32) {
    %c0_i32 = arith.constant 0 : i32
    %c0_i32_0 = arith.constant 0 : i32
    return %arg0, %c0_i32 : i32, i32
  }
  func.func @transform_1(%arg0: i32) -> (i32, i32) {
    %c0_i32 = arith.constant 0 : i32
    %c0_i32_0 = arith.constant 0 : i32
    %c0_i32_1 = arith.constant 0 : i32
    return %c0_i32, %c0_i32_0 : i32, i32
  }
  func.func @transform_2(%arg0: i32) -> (i32, i32) {
    %c0_i32 = arith.constant 0 : i32
    %c0_i32_0 = arith.constant 0 : i32
    return %arg0, %c0_i32 : i32, i32
  }
  func.func @transform_3(%arg0: i32) -> (i32, i32) {
    %c0_i32 = arith.constant 0 : i32
    %c0_i32_0 = arith.constant 0 : i32
    %c0_i32_1 = arith.constant 0 : i32
    return %c0_i32, %c0_i32_0 : i32, i32
  }
  func.func @transform_4(%arg0: i32) -> (i32, i32) {
    %c0_i32 = arith.constant 0 : i32
    %c0_i32_0 = arith.constant 0 : i32
    %c0_i32_1 = arith.constant 0 : i32
    return %c0_i32, %c0_i32_0 : i32, i32
  }
}

module attributes {stable_mosaic.version = 11 : i64} {
  func.func @_bn_lrelu_kernel(%arg0: i32, %arg1: memref<256x128xf32, #tpu.memory_space<vmem>>, %arg2: memref<1x128xf32, #tpu.memory_space<vmem>>, %arg3: memref<1x128xf32, #tpu.memory_space<vmem>>, %arg4: memref<256x128xbf16, #tpu.memory_space<vmem>>) attributes {dimension_semantics = [#tpu.dimension_semantics<parallel>], iteration_bounds = array<i64: 1>, scalar_prefetch = 0 : i64, scratch_operands = 0 : i64, tpu.core_type = #tpu.core_type<tc>, window_params = [{transform_indices = @transform_0, window_bounds = array<i64: 256, 128>}, {pipeline_mode = #tpu.pipeline_mode<synchronous>, transform_indices = @transform_1, window_bounds = array<i64: 1, 128>}, {pipeline_mode = #tpu.pipeline_mode<synchronous>, transform_indices = @transform_2, window_bounds = array<i64: 1, 128>}, {transform_indices = @transform_3, window_bounds = array<i64: 256, 128>}]} {
    %c0 = arith.constant 0 : index
    %c0_0 = arith.constant 0 : index
    %0 = vector.load %arg1[%c0, %c0_0] : memref<256x128xf32, #tpu.memory_space<vmem>>, vector<256x128xf32>
    %c0_1 = arith.constant 0 : index
    %c0_2 = arith.constant 0 : index
    %1 = vector.load %arg2[%c0_1, %c0_2] : memref<1x128xf32, #tpu.memory_space<vmem>>, vector<1x128xf32>
    %2 = vector.broadcast %1 : vector<1x128xf32> to vector<256x128xf32>
    %3 = arith.mulf %0, %2 : vector<256x128xf32>
    %c0_3 = arith.constant 0 : index
    %c0_4 = arith.constant 0 : index
    %4 = vector.load %arg3[%c0_3, %c0_4] : memref<1x128xf32, #tpu.memory_space<vmem>>, vector<1x128xf32>
    %5 = vector.broadcast %4 : vector<1x128xf32> to vector<256x128xf32>
    %6 = arith.addf %3, %5 : vector<256x128xf32>
    %cst = arith.constant 2.000000e-01 : f32
    %7 = vector.broadcast %cst : f32 to vector<256x128xf32>
    %8 = arith.mulf %7, %6 : vector<256x128xf32>
    %9 = arith.maximumf %6, %8 : vector<256x128xf32>
    %10 = arith.truncf %9 : vector<256x128xf32> to vector<256x128xbf16>
    %c0_5 = arith.constant 0 : index
    %c0_6 = arith.constant 0 : index
    %11 = vector.load %arg4[%c0_5, %c0_6] : memref<256x128xbf16, #tpu.memory_space<vmem>>, vector<256x128xbf16>
    tpu.vector_store %arg4[%c0_5, %c0_6], %10 {strides = array<i32>} : memref<256x128xbf16, #tpu.memory_space<vmem>>, vector<256x128xbf16>,
    return
  }
  func.func @transform_0(%arg0: i32) -> (i32, i32) {
    %c0_i32 = arith.constant 0 : i32
    %c0_i32_0 = arith.constant 0 : i32
    return %arg0, %c0_i32 : i32, i32
  }
  func.func @transform_1(%arg0: i32) -> (i32, i32) {
    %c0_i32 = arith.constant 0 : i32
    %c0_i32_0 = arith.constant 0 : i32
    %c0_i32_1 = arith.constant 0 : i32
    return %c0_i32, %c0_i32_0 : i32, i32
  }
  func.func @transform_2(%arg0: i32) -> (i32, i32) {
    %c0_i32 = arith.constant 0 : i32
    %c0_i32_0 = arith.constant 0 : i32
    %c0_i32_1 = arith.constant 0 : i32
    return %c0_i32, %c0_i32_0 : i32, i32
  }
  func.func @transform_3(%arg0: i32) -> (i32, i32) {
    %c0_i32 = arith.constant 0 : i32
    %c0_i32_0 = arith.constant 0 : i32
    return %arg0, %c0_i32 : i32, i32
  }
}

module attributes {stable_mosaic.version = 11 : i64} {
  func.func @_bn_lrelu_kernel(%arg0: i32, %arg1: memref<64x128xf32, #tpu.memory_space<vmem>>, %arg2: memref<1x128xf32, #tpu.memory_space<vmem>>, %arg3: memref<1x128xf32, #tpu.memory_space<vmem>>, %arg4: memref<64x128xf32, #tpu.memory_space<vmem>>) attributes {dimension_semantics = [#tpu.dimension_semantics<parallel>], iteration_bounds = array<i64: 1>, scalar_prefetch = 0 : i64, scratch_operands = 0 : i64, tpu.core_type = #tpu.core_type<tc>, window_params = [{transform_indices = @transform_0, window_bounds = array<i64: 64, 128>}, {pipeline_mode = #tpu.pipeline_mode<synchronous>, transform_indices = @transform_1, window_bounds = array<i64: 1, 128>}, {pipeline_mode = #tpu.pipeline_mode<synchronous>, transform_indices = @transform_2, window_bounds = array<i64: 1, 128>}, {transform_indices = @transform_3, window_bounds = array<i64: 64, 128>}]} {
    %c0 = arith.constant 0 : index
    %c0_0 = arith.constant 0 : index
    %0 = vector.load %arg1[%c0, %c0_0] : memref<64x128xf32, #tpu.memory_space<vmem>>, vector<64x128xf32>
    %c0_1 = arith.constant 0 : index
    %c0_2 = arith.constant 0 : index
    %1 = vector.load %arg2[%c0_1, %c0_2] : memref<1x128xf32, #tpu.memory_space<vmem>>, vector<1x128xf32>
    %2 = vector.broadcast %1 : vector<1x128xf32> to vector<64x128xf32>
    %3 = arith.mulf %0, %2 : vector<64x128xf32>
    %c0_3 = arith.constant 0 : index
    %c0_4 = arith.constant 0 : index
    %4 = vector.load %arg3[%c0_3, %c0_4] : memref<1x128xf32, #tpu.memory_space<vmem>>, vector<1x128xf32>
    %5 = vector.broadcast %4 : vector<1x128xf32> to vector<64x128xf32>
    %6 = arith.addf %3, %5 : vector<64x128xf32>
    %cst = arith.constant 2.000000e-01 : f32
    %7 = vector.broadcast %cst : f32 to vector<64x128xf32>
    %8 = arith.mulf %7, %6 : vector<64x128xf32>
    %9 = arith.maximumf %6, %8 : vector<64x128xf32>
    %c0_5 = arith.constant 0 : index
    %c0_6 = arith.constant 0 : index
    %10 = vector.load %arg4[%c0_5, %c0_6] : memref<64x128xf32, #tpu.memory_space<vmem>>, vector<64x128xf32>
    tpu.vector_store %arg4[%c0_5, %c0_6], %9 {strides = array<i32>} : memref<64x128xf32, #tpu.memory_space<vmem>>, vector<64x128xf32>,
    return
  }
  func.func @transform_0(%arg0: i32) -> (i32, i32) {
    %c0_i32 = arith.constant 0 : i32
    %c0_i32_0 = arith.constant 0 : i32
    return %arg0, %c0_i32 : i32, i32
  }
  func.func @transform_1(%arg0: i32) -> (i32, i32) {
    %c0_i32 = arith.constant 0 : i32
    %c0_i32_0 = arith.constant 0 : i32
    %c0_i32_1 = arith.constant 0 : i32
    return %c0_i32, %c0_i32_0 : i32, i32
  }
  func.func @transform_2(%arg0: i32) -> (i32, i32) {
    %c0_i32 = arith.constant 0 : i32
    %c0_i32_0 = arith.constant 0 : i32
    %c0_i32_1 = arith.constant 0 : i32
    return %c0_i32, %c0_i32_0 : i32, i32
  }
  func.func @transform_3(%arg0: i32) -> (i32, i32) {
    %c0_i32 = arith.constant 0 : i32
    %c0_i32_0 = arith.constant 0 : i32
    return %arg0, %c0_i32 : i32, i32
  }
}

module attributes {stable_mosaic.version = 11 : i64} {
  func.func @_mm_stats_kernel(%arg0: i32, %arg1: memref<64x512xbf16, #tpu.memory_space<vmem>>, %arg2: memref<512x128xbf16, #tpu.memory_space<vmem>>, %arg3: memref<64x128xf32, #tpu.memory_space<vmem>>, %arg4: memref<1x128xf32, #tpu.memory_space<vmem>>, %arg5: memref<1x128xf32, #tpu.memory_space<vmem>>) attributes {dimension_semantics = [#tpu.dimension_semantics<arbitrary>], iteration_bounds = array<i64: 1>, scalar_prefetch = 0 : i64, scratch_operands = 0 : i64, tpu.core_type = #tpu.core_type<tc>, window_params = [{transform_indices = @transform_0, window_bounds = array<i64: 64, 512>}, {pipeline_mode = #tpu.pipeline_mode<synchronous>, transform_indices = @transform_1, window_bounds = array<i64: 512, 128>}, {transform_indices = @transform_2, window_bounds = array<i64: 64, 128>}, {pipeline_mode = #tpu.pipeline_mode<synchronous>, transform_indices = @transform_3, window_bounds = array<i64: 1, 128>}, {pipeline_mode = #tpu.pipeline_mode<synchronous>, transform_indices = @transform_4, window_bounds = array<i64: 1, 128>}]} {
    %c0_i32 = arith.constant 0 : i32
    %0 = arith.cmpi eq, %arg0, %c0_i32 : i32
    %1 = arith.extui %0 : i1 to i32
    %c0_i32_0 = arith.constant 0 : i32
    %2 = arith.cmpi ne, %1, %c0_i32_0 : i32
    scf.if %2 {
      %cst_16 = arith.constant 0.000000e+00 : f32
      %18 = vector.broadcast %cst_16 : f32 to vector<1x128xf32>
      %c0_17 = arith.constant 0 : index
      %c0_18 = arith.constant 0 : index
      %19 = vector.load %arg4[%c0_17, %c0_18] : memref<1x128xf32, #tpu.memory_space<vmem>>, vector<1x128xf32>
      tpu.vector_store %arg4[%c0_17, %c0_18], %18 {strides = array<i32>} : memref<1x128xf32, #tpu.memory_space<vmem>>, vector<1x128xf32>,
      %cst_19 = arith.constant 0.000000e+00 : f32
      %20 = vector.broadcast %cst_19 : f32 to vector<1x128xf32>
      %c0_20 = arith.constant 0 : index
      %c0_21 = arith.constant 0 : index
      %21 = vector.load %arg5[%c0_20, %c0_21] : memref<1x128xf32, #tpu.memory_space<vmem>>, vector<1x128xf32>
      tpu.vector_store %arg5[%c0_20, %c0_21], %20 {strides = array<i32>} : memref<1x128xf32, #tpu.memory_space<vmem>>, vector<1x128xf32>,
    } else {
    }
    %c0 = arith.constant 0 : index
    %c0_1 = arith.constant 0 : index
    %3 = vector.load %arg1[%c0, %c0_1] : memref<64x512xbf16, #tpu.memory_space<vmem>>, vector<64x512xbf16>
    %c0_2 = arith.constant 0 : index
    %c0_3 = arith.constant 0 : index
    %4 = vector.load %arg2[%c0_2, %c0_3] : memref<512x128xbf16, #tpu.memory_space<vmem>>, vector<512x128xbf16>
    %cst = arith.constant dense<0.000000e+00> : vector<64x128xf32>
    %5 = tpu.matmul %3, %4, %cst {dimension_numbers = #tpu.dot_dimension_numbers<[1], [0], [0], [1], [0, 0, 1, 1], [], []>} : vector<64x512xbf16>, vector<512x128xbf16>, vector<64x128xf32> -> vector<64x128xf32>
    %c0_4 = arith.constant 0 : index
    %c0_5 = arith.constant 0 : index
    %6 = vector.load %arg3[%c0_4, %c0_5] : memref<64x128xf32, #tpu.memory_space<vmem>>, vector<64x128xf32>
    tpu.vector_store %arg3[%c0_4, %c0_5], %5 {strides = array<i32>} : memref<64x128xf32, #tpu.memory_space<vmem>>, vector<64x128xf32>,
    %c0_6 = arith.constant 0 : index
    %c0_7 = arith.constant 0 : index
    %7 = vector.load %arg4[%c0_6, %c0_7] : memref<1x128xf32, #tpu.memory_space<vmem>>, vector<1x128xf32>
    %cst_8 = arith.constant dense<0.000000e+00> : vector<128xf32>
    %8 = vector.multi_reduction <add>, %5, %cst_8 [0] : vector<64x128xf32> to vector<128xf32>
    %9 = vector.shape_cast %8 : vector<128xf32> to vector<1x128xf32>
    %10 = arith.addf %7, %9 : vector<1x128xf32>
    %c0_9 = arith.constant 0 : index
    %c0_10 = arith.constant 0 : index
    %11 = vector.load %arg4[%c0_9, %c0_10] : memref<1x128xf32, #tpu.memory_space<vmem>>, vector<1x128xf32>
    tpu.vector_store %arg4[%c0_9, %c0_10], %10 {strides = array<i32>} : memref<1x128xf32, #tpu.memory_space<vmem>>, vector<1x128xf32>,
    %c0_11 = arith.constant 0 : index
    %c0_12 = arith.constant 0 : index
    %12 = vector.load %arg5[%c0_11, %c0_12] : memref<1x128xf32, #tpu.memory_space<vmem>>, vector<1x128xf32>
    %13 = arith.mulf %5, %5 : vector<64x128xf32>
    %cst_13 = arith.constant dense<0.000000e+00> : vector<128xf32>
    %14 = vector.multi_reduction <add>, %13, %cst_13 [0] : vector<64x128xf32> to vector<128xf32>
    %15 = vector.shape_cast %14 : vector<128xf32> to vector<1x128xf32>
    %16 = arith.addf %12, %15 : vector<1x128xf32>
    %c0_14 = arith.constant 0 : index
    %c0_15 = arith.constant 0 : index
    %17 = vector.load %arg5[%c0_14, %c0_15] : memref<1x128xf32, #tpu.memory_space<vmem>>, vector<1x128xf32>
    tpu.vector_store %arg5[%c0_14, %c0_15], %16 {strides = array<i32>} : memref<1x128xf32, #tpu.memory_space<vmem>>, vector<1x128xf32>,
    return
  }
  func.func @transform_0(%arg0: i32) -> (i32, i32) {
    %c0_i32 = arith.constant 0 : i32
    %c0_i32_0 = arith.constant 0 : i32
    return %arg0, %c0_i32 : i32, i32
  }
  func.func @transform_1(%arg0: i32) -> (i32, i32) {
    %c0_i32 = arith.constant 0 : i32
    %c0_i32_0 = arith.constant 0 : i32
    %c0_i32_1 = arith.constant 0 : i32
    return %c0_i32, %c0_i32_0 : i32, i32
  }
  func.func @transform_2(%arg0: i32) -> (i32, i32) {
    %c0_i32 = arith.constant 0 : i32
    %c0_i32_0 = arith.constant 0 : i32
    return %arg0, %c0_i32 : i32, i32
  }
  func.func @transform_3(%arg0: i32) -> (i32, i32) {
    %c0_i32 = arith.constant 0 : i32
    %c0_i32_0 = arith.constant 0 : i32
    %c0_i32_1 = arith.constant 0 : i32
    return %c0_i32, %c0_i32_0 : i32, i32
  }
  func.func @transform_4(%arg0: i32) -> (i32, i32) {
    %c0_i32 = arith.constant 0 : i32
    %c0_i32_0 = arith.constant 0 : i32
    %c0_i32_1 = arith.constant 0 : i32
    return %c0_i32, %c0_i32_0 : i32, i32
  }
}

</mosaic_0001>

<llo_original>
// kernel: discriminator_forward.7
$region0: #{discriminator_forward.7}
  #allocation0 [shape = 'u32[]', space=smem, size = 0x4, offset = 0x4, fixed_abs, tag = 'smem constant byte address 0x4 - core index']
  #allocation1 [shape = 'u32[72,128]{1,0:T(1,128)}', space=vmem, size = 0x9000, scoped, tag = 'internal scratch']
  %s0 = inlined_call_operand.vmem [shape: bf16[4096,128], index: 0, kind: input, shape index: {}]
  %s1 = inlined_call_operand.vmem [shape: bf16[128,128], index: 1, kind: input, shape index: {}]
  %s2 = inlined_call_operand.vmem [shape: bf16[4096,128], index: 2, kind: output, shape index: {}]
  %s3 = sld [smem:[#allocation0]]
  $region41: #{discriminator_forward.7} parent=0
    _
  %s5 = ssub.s32 1, %s3
  %s6 = scalar_select 0, %s5, %s3
  loop: start=0, step=1, limit=10
  $region2: #{discriminator_forward.7} parent=0 // loop_pre_header
    _
  $region3: #{discriminator_forward.7} parent=0 // loop_header
    %s8 = sphi 0, %s12
    %p9 = scmp.ge.s32.totalorder %s8, 10
    %s18 = sphi 0, %s20
    %s21 = sphi 0, %s18
    %s22 = sphi 0, %s21
    %s38 = sphi 0, %s22
    %s42 = sphi 0, %s42
    %s44 = sphi 0, %s42
    %s45 = sphi 0, %s44
    %s59 = sphi 0, %s45
    %s65 = sphi 0, %s67
    %s68 = sphi 0, %s65
    %s69 = sphi 0, %s68
    %s85 = sphi 0, %s69
  $region4: #{discriminator_forward.7} parent=0 // loop_header_branch
    %11 = sbr.rel (%p9) target = $region8
  $region5: #{discriminator_forward.7} parent=0 // loop_body
    %s13 = ssub.s32 %s8, 1
    %s14 = ssub.s32 %s8, 2
    %s15 = sadd.s32 %s8, 1
    %s16 = ssub.s32 %s8, %s15
    %p17 = scmp.eq.s32.totalorder %s16, 0
    %s19 = sadd.s32 %s18, 1
    %s20 = scalar_select %p17, %s18, %s19
    %p23 = pneg %p17
    %p24 = scmp.eq.s32.totalorder %s8, 7
    %p25 = por %p23, %p24
    %p26 = scmp.ne.s32.totalorder %s18, %s21
    %p27 = scmp.eq.s32.totalorder %s8, 0
    %p28 = por %p26, %p27
    %p29 = scmp.ne.s32.totalorder %s18, %s21
    %p30 = scmp.eq.s32.totalorder %s13, 7
    %p31 = por %p29, %p30
    %p32 = scmp.ne.s32.totalorder %s21, %s22
    %p33 = scmp.eq.s32.totalorder %s13, 0
    %p34 = por %p32, %p33
    %p35 = scmp.ne.s32.totalorder %s21, %s22
    %p36 = scmp.eq.s32.totalorder %s14, 7
    %p37 = por %p35, %p36
    %p39 = scmp.ne.s32.totalorder %s22, %s38
    %p40 = scmp.eq.s32.totalorder %s14, 0
    %p41 = por %p39, %p40
    %s43 = sadd.s32 %s42, 1
    %p46 = scmp.eq.s32.totalorder %s8, 7
    %p47 = scmp.ne.s32.totalorder %s42, %s44
    %p48 = scmp.eq.s32.totalorder %s8, 0
    %p49 = por %p47, %p48
    %p50 = scmp.ne.s32.totalorder %s42, %s44
    %p51 = scmp.eq.s32.totalorder %s13, 7
    %p52 = por %p50, %p51
    %p53 = scmp.ne.s32.totalorder %s44, %s45
    %p54 = scmp.eq.s32.totalorder %s13, 0
    %p55 = por %p53, %p54
    %p56 = scmp.ne.s32.totalorder %s44, %s45
    %p57 = scmp.eq.s32.totalorder %s14, 7
    %p58 = por %p56, %p57
    %p60 = scmp.ne.s32.totalorder %s45, %s59
    %p61 = scmp.eq.s32.totalorder %s14, 0
    %p62 = por %p60, %p61
    %s63 = ssub.s32 %s8, %s15
    %p64 = scmp.eq.s32.totalorder %s63, 0
    %s66 = sadd.s32 %s65, 1
    %s67 = scalar_select %p64, %s65, %s66
    %p70 = pneg %p64
    %p71 = scmp.eq.s32.totalorder %s8, 7
    %p72 = por %p70, %p71
    %p73 = scmp.ne.s32.totalorder %s65, %s68
    %p74 = scmp.eq.s32.totalorder %s8, 0
    %p75 = por %p73, %p74
    %p76 = scmp.ne.s32.totalorder %s65, %s68
    %p77 = scmp.eq.s32.totalorder %s13, 7
    %p78 = por %p76, %p77
    %p79 = scmp.ne.s32.totalorder %s68, %s69
    %p80 = scmp.eq.s32.totalorder %s13, 0
    %p81 = por %p79, %p80
    %p82 = scmp.ne.s32.totalorder %s68, %s69
    %p83 = scmp.eq.s32.totalorder %s14, 7
    %p84 = por %p82, %p83
    %p86 = scmp.ne.s32.totalorder %s69, %s85
    %p87 = scmp.eq.s32.totalorder %s14, 0
    %p88 = por %p86, %p87
    %p89 = scmp.le.s32.totalorder 1, %s8
    %p90 = scmp.lt.s32.totalorder %s8, 9
    %p91 = pnand %p89, %p90
    %p92 = pneg %p91
    // Predicated region
    $region9: #{discriminator_forward.7} parent=5 // pred_check
      _
    $region10: #{discriminator_forward.7} parent=5 // pred_check_branch
      %94 = sbr.rel (%p91) target = $region12
    $region11: #{discriminator_forward.7} parent=5 // pred_region
      %s95 = ssub.s32 %s8, 1
      // Predicated region
      $region13: #{discriminator_forward.7} parent=11 // pred_check
        %p96 = pneg %p55
      $region14: #{discriminator_forward.7} parent=11 // pred_check_branch
        %98 = sbr.rel (%p96) target = $region16
      $region15: #{discriminator_forward.7} parent=11 // pred_region
        _
      $region16: #{discriminator_forward.7} parent=11 // pred_fallthru
        _
    $region12: #{discriminator_forward.7} parent=5 // pred_fallthru
      _
    %p99 = scmp.lt.s32.totalorder %s8, 8
    // Predicated region
    $region17: #{discriminator_forward.7} parent=5 // pred_check
      %p100 = pneg %p99
    $region18: #{discriminator_forward.7} parent=5 // pred_check_branch
      %102 = sbr.rel (%p100) target = $region20
    $region19: #{discriminator_forward.7} parent=5 // pred_region
      // Predicated region
      $region21: #{discriminator_forward.7} parent=19 // pred_check
        %p103 = pneg %p28
      $region22: #{discriminator_forward.7} parent=19 // pred_check_branch
        %105 = sbr.rel (%p103) target = $region24
      $region23: #{discriminator_forward.7} parent=19 // pred_region
        %s106 = smul.u32 64, %s8
        %p107 = scmp.lt.s32.totalorder %s106, 511
        %s108 = scalar_select %p107, %s106, 511
        %s109 = smul.addr %s108, 4
        %s110 = scalar_lea.vmem %s0, %s109
        %s111 = smul.u32 64, %s8
      $region24: #{discriminator_forward.7} parent=19 // pred_fallthru
        _
    $region20: #{discriminator_forward.7} parent=5 // pred_fallthru
      _
    %p112 = scmp.le.s32.totalorder 1, %s8
    %p113 = scmp.lt.s32.totalorder %s8, 9
    %p114 = pnand %p112, %p113
    %p115 = pneg %p114
    // Predicated region
    $region25: #{discriminator_forward.7} parent=5 // pred_check
      _
    $region26: #{discriminator_forward.7} parent=5 // pred_check_branch
      %117 = sbr.rel (%p114) target = $region28
    $region27: #{discriminator_forward.7} parent=5 // pred_region
      %s118 = ssub.s32 %s8, 1
      %s119 = smul.u32 64, %s13
      %p120 = scmp.lt.s32.totalorder %s119, 511
      %s121 = scalar_select %p120, %s119, 511
      %s122 = smul.addr %s121, 4
      %s123 = scalar_lea.vmem %s0, %s122
      %p124 = pneg %p34
      %p125 = pneg %p31
      %p126 = pneg %p55
      %p127 = pneg %p52
      %p128 = pneg %p81
      %p129 = pneg %p78
      %s130 = smul.u32 64, %s13
      %p131 = scmp.lt.s32.totalorder %s130, 511
      %s132 = scalar_select %p131, %s130, 511
      %s133 = smul.addr %s132, 4
      %s134 = scalar_lea.vmem %s2, %s133
      %s135 = smul.u32 64, %s13
      %p136 = scmp.lt.s32.totalorder %s135, 511
      %s137 = scalar_select %p136, %s135, 511
      %s138 = smul.addr %s137, 4
      %s139 = scalar_lea.vmem %s0, %s138
      %s140 = smul.u32 64, %s13
      %s141 = smul.u32 64, %s13
      %p142 = scmp.lt.s32.totalorder %s141, 511
      %s143 = scalar_select %p142, %s141, 511
      %s144 = smul.addr %s143, 4
      %s145 = scalar_lea.vmem %s2, %s144
      %s146 = smul.u32 64, %s13
      %v147 = vld [vmem:[%s139] sm:$0xf]
      %v148 = vld [vmem:[%s139 + $0x4] sm:$0xf]
      %v149 = vld [vmem:[%s139 + $0x8] sm:$0xf]
      %v150 = vld [vmem:[%s139 + $0xc] sm:$0xf]
      %v151 = vld [vmem:[%s139 + $0x10] sm:$0xf]
      %v152 = vld [vmem:[%s139 + $0x14] sm:$0xf]
      %v153 = vld [vmem:[%s139 + $0x18] sm:$0xf]
      %v154 = vld [vmem:[%s139 + $0x1c] sm:$0xf]
      %v155 = vld [vmem:[%s139 + $0x20] sm:$0xf]
      %v156 = vld [vmem:[%s139 + $0x24] sm:$0xf]
      %v157 = vld [vmem:[%s139 + $0x28] sm:$0xf]
      %v158 = vld [vmem:[%s139 + $0x2c] sm:$0xf]
      %v159 = vld [vmem:[%s139 + $0x30] sm:$0xf]
      %v160 = vld [vmem:[%s139 + $0x34] sm:$0xf]
      %v161 = vld [vmem:[%s139 + $0x38] sm:$0xf]
      %v162 = vld [vmem:[%s139 + $0x3c] sm:$0xf]
      %v163 = vld [vmem:[%s139 + $0x40] sm:$0xf]
      %v164 = vld [vmem:[%s139 + $0x44] sm:$0xf]
      %v165 = vld [vmem:[%s139 + $0x48] sm:$0xf]
      %v166 = vld [vmem:[%s139 + $0x4c] sm:$0xf]
      %v167 = vld [vmem:[%s139 + $0x50] sm:$0xf]
      %v168 = vld [vmem:[%s139 + $0x54] sm:$0xf]
      %v169 = vld [vmem:[%s139 + $0x58] sm:$0xf]
      %v170 = vld [vmem:[%s139 + $0x5c] sm:$0xf]
      %v171 = vld [vmem:[%s139 + $0x60] sm:$0xf]
      %v172 = vld [vmem:[%s139 + $0x64] sm:$0xf]
      %v173 = vld [vmem:[%s139 + $0x68] sm:$0xf]
      %v174 = vld [vmem:[%s139 + $0x6c] sm:$0xf]
      %v175 = vld [vmem:[%s139 + $0x70] sm:$0xf]
      %v176 = vld [vmem:[%s139 + $0x74] sm:$0xf]
      %v177 = vld [vmem:[%s139 + $0x78] sm:$0xf]
      %v178 = vld [vmem:[%s139 + $0x7c] sm:$0xf]
      %v179 = vld [vmem:[%s139 + $0x80] sm:$0xf]
      %v180 = vld [vmem:[%s139 + $0x84] sm:$0xf]
      %v181 = vld [vmem:[%s139 + $0x88] sm:$0xf]
      %v182 = vld [vmem:[%s139 + $0x8c] sm:$0xf]
      %v183 = vld [vmem:[%s139 + $0x90] sm:$0xf]
      %v184 = vld [vmem:[%s139 + $0x94] sm:$0xf]
      %v185 = vld [vmem:[%s139 + $0x98] sm:$0xf]
      %v186 = vld [vmem:[%s139 + $0x9c] sm:$0xf]
      %v187 = vld [vmem:[%s139 + $0xa0] sm:$0xf]
      %v188 = vld [vmem:[%s139 + $0xa4] sm:$0xf]
      %v189 = vld [vmem:[%s139 + $0xa8] sm:$0xf]
      %v190 = vld [vmem:[%s139 + $0xac] sm:$0xf]
      %v191 = vld [vmem:[%s139 + $0xb0] sm:$0xf]
      %v192 = vld [vmem:[%s139 + $0xb4] sm:$0xf]
      %v193 = vld [vmem:[%s139 + $0xb8] sm:$0xf]
      %v194 = vld [vmem:[%s139 + $0xbc] sm:$0xf]
      %v195 = vld [vmem:[%s139 + $0xc0] sm:$0xf]
      %v196 = vld [vmem:[%s139 + $0xc4] sm:$0xf]
      %v197 = vld [vmem:[%s139 + $0xc8] sm:$0xf]
      %v198 = vld [vmem:[%s139 + $0xcc] sm:$0xf]
      %v199 = vld [vmem:[%s139 + $0xd0] sm:$0xf]
      %v200 = vld [vmem:[%s139 + $0xd4] sm:$0xf]
      %v201 = vld [vmem:[%s139 + $0xd8] sm:$0xf]
      %v202 = vld [vmem:[%s139 + $0xdc] sm:$0xf]
      %v203 = vld [vmem:[%s139 + $0xe0] sm:$0xf]
      %v204 = vld [vmem:[%s139 + $0xe4] sm:$0xf]
      %v205 = vld [vmem:[%s139 + $0xe8] sm:$0xf]
      %v206 = vld [vmem:[%s139 + $0xec] sm:$0xf]
      %v207 = vld [vmem:[%s139 + $0xf0] sm:$0xf]
      %v208 = vld [vmem:[%s139 + $0xf4] sm:$0xf]
      %v209 = vld [vmem:[%s139 + $0xf8] sm:$0xf]
      %v210 = vld [vmem:[%s139 + $0xfc] sm:$0xf]
      %v211 = vld [vmem:[%s1] sm:$0xf]
      %v212 = vld [vmem:[%s1 + $0x4] sm:$0xf]
      %v213 = vld [vmem:[%s1 + $0x8] sm:$0xf]
      %v214 = vld [vmem:[%s1 + $0xc] sm:$0xf]
      %v215 = vld [vmem:[%s1 + $0x10] sm:$0xf]
      %v216 = vld [vmem:[%s1 + $0x14] sm:$0xf]
      %v217 = vld [vmem:[%s1 + $0x18] sm:$0xf]
      %v218 = vld [vmem:[%s1 + $0x1c] sm:$0xf]
      %v219 = vld [vmem:[%s1 + $0x20] sm:$0xf]
      %v220 = vld [vmem:[%s1 + $0x24] sm:$0xf]
      %v221 = vld [vmem:[%s1 + $0x28] sm:$0xf]
      %v222 = vld [vmem:[%s1 + $0x2c] sm:$0xf]
      %v223 = vld [vmem:[%s1 + $0x30] sm:$0xf]
      %v224 = vld [vmem:[%s1 + $0x34] sm:$0xf]
      %v225 = vld [vmem:[%s1 + $0x38] sm:$0xf]
      %v226 = vld [vmem:[%s1 + $0x3c] sm:$0xf]
      %v291 = vunpack.c.l.b16 %v147
      %v292 = vunpack.c.l.b16 %v148
      %v293 = vunpack.c.l.b16 %v149
      %v294 = vunpack.c.l.b16 %v150
      %v295 = vunpack.c.l.b16 %v151
      %v296 = vunpack.c.l.b16 %v152
      %v297 = vunpack.c.l.b16 %v153
      %v298 = vunpack.c.l.b16 %v154
      %v299 = vunpack.c.l.b16 %v155
      %v300 = vunpack.c.l.b16 %v156
      %v301 = vunpack.c.l.b16 %v157
      %v302 = vunpack.c.l.b16 %v158
      %v303 = vunpack.c.l.b16 %v159
      %v304 = vunpack.c.l.b16 %v160
      %v305 = vunpack.c.l.b16 %v161
      %v306 = vunpack.c.l.b16 %v162
      %v307 = vunpack.c.l.b16 %v163
      %v308 = vunpack.c.l.b16 %v164
      %v309 = vunpack.c.l.b16 %v165
      %v310 = vunpack.c.l.b16 %v166
      %v311 = vunpack.c.l.b16 %v167
      %v312 = vunpack.c.l.b16 %v168
      %v313 = vunpack.c.l.b16 %v169
      %v314 = vunpack.c.l.b16 %v170
      %v315 = vunpack.c.l.b16 %v171
      %v316 = vunpack.c.l.b16 %v172
      %v317 = vunpack.c.l.b16 %v173
      %v318 = vunpack.c.l.b16 %v174
      %v319 = vunpack.c.l.b16 %v175
      %v320 = vunpack.c.l.b16 %v176
      %v321 = vunpack.c.l.b16 %v177
      %v322 = vunpack.c.l.b16 %v178
      %v323 = vunpack.c.l.b16 %v179
      %v324 = vunpack.c.l.b16 %v180
      %v325 = vunpack.c.l.b16 %v181
      %v326 = vunpack.c.l.b16 %v182
      %v327 = vunpack.c.l.b16 %v183
      %v328 = vunpack.c.l.b16 %v184
      %v329 = vunpack.c.l.b16 %v185
      %v330 = vunpack.c.l.b16 %v186
      %v331 = vunpack.c.l.b16 %v187
      %v332 = vunpack.c.l.b16 %v188
      %v333 = vunpack.c.l.b16 %v189
      %v334 = vunpack.c.l.b16 %v190
      %v335 = vunpack.c.l.b16 %v191
      %v336 = vunpack.c.l.b16 %v192
      %v337 = vunpack.c.l.b16 %v193
      %v338 = vunpack.c.l.b16 %v194
      %v339 = vunpack.c.l.b16 %v195
      %v340 = vunpack.c.l.b16 %v196
      %v341 = vunpack.c.l.b16 %v197
      %v342 = vunpack.c.l.b16 %v198
      %v343 = vunpack.c.l.b16 %v199
      %v344 = vunpack.c.l.b16 %v200
      %v345 = vunpack.c.l.b16 %v201
      %v346 = vunpack.c.l.b16 %v202
      %v347 = vunpack.c.l.b16 %v203
      %v348 = vunpack.c.l.b16 %v204
      %v349 = vunpack.c.l.b16 %v205
      %v350 = vunpack.c.l.b16 %v206
      %v351 = vunpack.c.l.b16 %v207
      %v352 = vunpack.c.l.b16 %v208
      %v353 = vunpack.c.l.b16 %v209
      %v354 = vunpack.c.l.b16 %v210
      %v355 = vpack.c.b16 %v292, %v291
      %v356 = vpack.c.b16 %v294, %v293
      %v357 = vpack.c.b16 %v296, %v295
      %v358 = vpack.c.b16 %v298, %v297
      %v359 = vpack.c.b16 %v300, %v299
      %v360 = vpack.c.b16 %v302, %v301
      %v361 = vpack.c.b16 %v304, %v303
      %v362 = vpack.c.b16 %v306, %v305
      %v363 = vpack.c.b16 %v308, %v307
      %v364 = vpack.c.b16 %v310, %v309
      %v365 = vpack.c.b16 %v312, %v311
      %v366 = vpack.c.b16 %v314, %v313
      %v367 = vpack.c.b16 %v316, %v315
      %v368 = vpack.c.b16 %v318, %v317
      %v369 = vpack.c.b16 %v320, %v319
      %v370 = vpack.c.b16 %v322, %v321
      %v371 = vpack.c.b16 %v324, %v323
      %v372 = vpack.c.b16 %v326, %v325
      %v373 = vpack.c.b16 %v328, %v327
      %v374 = vpack.c.b16 %v330, %v329
      %v375 = vpack.c.b16 %v332, %v331
      %v376 = vpack.c.b16 %v334, %v333
      %v377 = vpack.c.b16 %v336, %v335
      %v378 = vpack.c.b16 %v338, %v337
      %v379 = vpack.c.b16 %v340, %v339
      %v380 = vpack.c.b16 %v342, %v341
      %v381 = vpack.c.b16 %v344, %v343
      %v382 = vpack.c.b16 %v346, %v345
      %v383 = vpack.c.b16 %v348, %v347
      %v384 = vpack.c.b16 %v350, %v349
      %v385 = vpack.c.b16 %v352, %v351
      %v386 = vpack.c.b16 %v354, %v353
      %v435 = vunpack.c.l.b16 %v211
      %v436 = vunpack.c.l.b16 %v212
      %v437 = vunpack.c.l.b16 %v213
      %v438 = vunpack.c.l.b16 %v214
      %v439 = vunpack.c.l.b16 %v215
      %v440 = vunpack.c.l.b16 %v216
      %v441 = vunpack.c.l.b16 %v217
      %v442 = vunpack.c.l.b16 %v218
      %v443 = vunpack.c.l.b16 %v219
      %v444 = vunpack.c.l.b16 %v220
      %v445 = vunpack.c.l.b16 %v221
      %v446 = vunpack.c.l.b16 %v222
      %v447 = vunpack.c.l.b16 %v223
      %v448 = vunpack.c.l.b16 %v224
      %v449 = vunpack.c.l.b16 %v225
      %v450 = vunpack.c.l.b16 %v226
      %v451 = vpack.c.b16 %v436, %v435
      %v452 = vpack.c.b16 %v438, %v437
      %v453 = vpack.c.b16 %v440, %v439
      %v454 = vpack.c.b16 %v442, %v441
      %v455 = vpack.c.b16 %v444, %v443
      %v456 = vpack.c.b16 %v446, %v445
      %v457 = vpack.c.b16 %v448, %v447
      %v458 = vpack.c.b16 %v450, %v449
      %467 = vmatpush.bf16.msra.mxu0 %v458
      %468 = vmatpush.bf16.msra.mxu0 %v457
      %469 = vmatpush.bf16.msra.mxu0 %v456
      %470 = vmatpush.bf16.msra.mxu0 %v455
      %471 = vmatpush.bf16.msra.mxu0 %v454
      %472 = vmatpush.bf16.msra.mxu0 %v453
      %473 = vmatpush.bf16.msra.mxu0 %v452
      %474 = vmatpush.bf16.msra.mxu0 %v451
      %475 = vmatmul.bf16.gmra.mxu0 %v355
      %v476 = vpop.f32.mrf.mxu0
      %v477 = vadd.f32 0.0, %v476
      %v478 = vpop.f32.mrf.mxu0
      %v479 = vadd.f32 0.0, %v478
      %480 = vmatmul.bf16.gmra.mxu0 %v356
      %v481 = vpop.f32.mrf.mxu0
      %v482 = vadd.f32 0.0, %v481
      %v483 = vpop.f32.mrf.mxu0
      %v484 = vadd.f32 0.0, %v483
      %485 = vmatmul.bf16.gmra.mxu0 %v357
      %v486 = vpop.f32.mrf.mxu0
      %v487 = vadd.f32 0.0, %v486
      %v488 = vpop.f32.mrf.mxu0
      %v489 = vadd.f32 0.0, %v488
      %490 = vmatmul.bf16.gmra.mxu0 %v358
      %v491 = vpop.f32.mrf.mxu0
      %v492 = vadd.f32 0.0, %v491
      %v493 = vpop.f32.mrf.mxu0
      %v494 = vadd.f32 0.0, %v493
      %495 = vmatmul.bf16.gmra.mxu0 %v359
      %v496 = vpop.f32.mrf.mxu0
      %v497 = vadd.f32 0.0, %v496
      %v498 = vpop.f32.mrf.mxu0
      %v499 = vadd.f32 0.0, %v498
      %500 = vmatmul.bf16.gmra.mxu0 %v360
      %v501 = vpop.f32.mrf.mxu0
      %v502 = vadd.f32 0.0, %v501
      %v503 = vpop.f32.mrf.mxu0
      %v504 = vadd.f32 0.0, %v503
      %505 = vmatmul.bf16.gmra.mxu0 %v361
      %v506 = vpop.f32.mrf.mxu0
      %v507 = vadd.f32 0.0, %v506
      %v508 = vpop.f32.mrf.mxu0
      %v509 = vadd.f32 0.0, %v508
      %510 = vmatmul.bf16.gmra.mxu0 %v362
      %v511 = vpop.f32.mrf.mxu0
      %v512 = vadd.f32 0.0, %v511
      %v513 = vpop.f32.mrf.mxu0
      %v514 = vadd.f32 0.0, %v513
      %515 = vmatmul.bf16.gmra.mxu0 %v363
      %v516 = vpop.f32.mrf.mxu0
      %v517 = vadd.f32 0.0, %v516
      %v518 = vpop.f32.mrf.mxu0
      %v519 = vadd.f32 0.0, %v518
      %520 = vmatmul.bf16.gmra.mxu0 %v364
      %v521 = vpop.f32.mrf.mxu0
      %v522 = vadd.f32 0.0, %v521
      %v523 = vpop.f32.mrf.mxu0
      %v524 = vadd.f32 0.0, %v523
      %525 = vmatmul.bf16.gmra.mxu0 %v365
      %v526 = vpop.f32.mrf.mxu0
      %v527 = vadd.f32 0.0, %v526
      %v528 = vpop.f32.mrf.mxu0
      %v529 = vadd.f32 0.0, %v528
      %530 = vmatmul.bf16.gmra.mxu0 %v366
      %v531 = vpop.f32.mrf.mxu0
      %v532 = vadd.f32 0.0, %v531
      %v533 = vpop.f32.mrf.mxu0
      %v534 = vadd.f32 0.0, %v533
      %535 = vmatmul.bf16.gmra.mxu0 %v367
      %v536 = vpop.f32.mrf.mxu0
      %v537 = vadd.f32 0.0, %v536
      %v538 = vpop.f32.mrf.mxu0
      %v539 = vadd.f32 0.0, %v538
      %540 = vmatmul.bf16.gmra.mxu0 %v368
      %v541 = vpop.f32.mrf.mxu0
      %v542 = vadd.f32 0.0, %v541
      %v543 = vpop.f32.mrf.mxu0
      %v544 = vadd.f32 0.0, %v543
      %545 = vmatmul.bf16.gmra.mxu0 %v369
      %v546 = vpop.f32.mrf.mxu0
      %v547 = vadd.f32 0.0, %v546
      %v548 = vpop.f32.mrf.mxu0
      %v549 = vadd.f32 0.0, %v548
      %550 = vmatmul.bf16.gmra.mxu0 %v370
      %v551 = vpop.f32.mrf.mxu0
      %v552 = vadd.f32 0.0, %v551
      %v553 = vpop.f32.mrf.mxu0
      %v554 = vadd.f32 0.0, %v553
      %555 = vmatmul.bf16.gmra.mxu0 %v371
      %v556 = vpop.f32.mrf.mxu0
      %v557 = vadd.f32 0.0, %v556
      %v558 = vpop.f32.mrf.mxu0
      %v559 = vadd.f32 0.0, %v558
      %560 = vmatmul.bf16.gmra.mxu0 %v372
      %v561 = vpop.f32.mrf.mxu0
      %v562 = vadd.f32 0.0, %v561
      %v563 = vpop.f32.mrf.mxu0
      %v564 = vadd.f32 0.0, %v563
      %565 = vmatmul.bf16.gmra.mxu0 %v373
      %v566 = vpop.f32.mrf.mxu0
      %v567 = vadd.f32 0.0, %v566
      %v568 = vpop.f32.mrf.mxu0
      %v569 = vadd.f32 0.0, %v568
      %570 = vmatmul.bf16.gmra.mxu0 %v374
      %v571 = vpop.f32.mrf.mxu0
      %v572 = vadd.f32 0.0, %v571
      %v573 = vpop.f32.mrf.mxu0
      %v574 = vadd.f32 0.0, %v573
      %575 = vmatmul.bf16.gmra.mxu0 %v375
      %v576 = vpop.f32.mrf.mxu0
      %v577 = vadd.f32 0.0, %v576
      %v578 = vpop.f32.mrf.mxu0
      %v579 = vadd.f32 0.0, %v578
      %580 = vmatmul.bf16.gmra.mxu0 %v376
      %v581 = vpop.f32.mrf.mxu0
      %v582 = vadd.f32 0.0, %v581
      %v583 = vpop.f32.mrf.mxu0
      %v584 = vadd.f32 0.0, %v583
      %585 = vmatmul.bf16.gmra.mxu0 %v377
      %v586 = vpop.f32.mrf.mxu0
      %v587 = vadd.f32 0.0, %v586
      %v588 = vpop.f32.mrf.mxu0
      %v589 = vadd.f32 0.0, %v588
      %590 = vmatmul.bf16.gmra.mxu0 %v378
      %v591 = vpop.f32.mrf.mxu0
      %v592 = vadd.f32 0.0, %v591
      %v593 = vpop.f32.mrf.mxu0
      %v594 = vadd.f32 0.0, %v593
      %595 = vmatmul.bf16.gmra.mxu0 %v379
      %v596 = vpop.f32.mrf.mxu0
      %v597 = vadd.f32 0.0, %v596
      %v598 = vpop.f32.mrf.mxu0
      %v599 = vadd.f32 0.0, %v598
      %600 = vmatmul.bf16.gmra.mxu0 %v380
      %v601 = vpop.f32.mrf.mxu0
      %v602 = vadd.f32 0.0, %v601
      %v603 = vpop.f32.mrf.mxu0
      %v604 = vadd.f32 0.0, %v603
      %605 = vmatmul.bf16.gmra.mxu0 %v381
      %v606 = vpop.f32.mrf.mxu0
      %v607 = vadd.f32 0.0, %v606
      %v608 = vpop.f32.mrf.mxu0
      %v609 = vadd.f32 0.0, %v608
      %610 = vmatmul.bf16.gmra.mxu0 %v382
      %v611 = vpop.f32.mrf.mxu0
      %v612 = vadd.f32 0.0, %v611
      %v613 = vpop.f32.mrf.mxu0
      %v614 = vadd.f32 0.0, %v613
      %615 = vmatmul.bf16.gmra.mxu0 %v383
      %v616 = vpop.f32.mrf.mxu0
      %v617 = vadd.f32 0.0, %v616
      %v618 = vpop.f32.mrf.mxu0
      %v619 = vadd.f32 0.0, %v618
      %620 = vmatmul.bf16.gmra.mxu0 %v384
      %v621 = vpop.f32.mrf.mxu0
      %v622 = vadd.f32 0.0, %v621
      %v623 = vpop.f32.mrf.mxu0
      %v624 = vadd.f32 0.0, %v623
      %625 = vmatmul.bf16.gmra.mxu0 %v385
      %v626 = vpop.f32.mrf.mxu0
      %v627 = vadd.f32 0.0, %v626
      %v628 = vpop.f32.mrf.mxu0
      %v629 = vadd.f32 0.0, %v628
      %630 = vmatmul.bf16.gmra.mxu0 %v386
      %v631 = vpop.f32.mrf.mxu0
      %v632 = vadd.f32 0.0, %v631
      %v633 = vpop.f32.mrf.mxu0
      %v634 = vadd.f32 0.0, %v633
      %635 = vdwg.mxu0
      %v636 = vmul.f32 %v477, 0.2
      %v637 = vmul.f32 %v479, 0.2
      %v638 = vmul.f32 %v482, 0.2
      %v639 = vmul.f32 %v484, 0.2
      %v640 = vmul.f32 %v487, 0.2
      %v641 = vmul.f32 %v489, 0.2
      %v642 = vmul.f32 %v492, 0.2
      %v643 = vmul.f32 %v494, 0.2
      %v644 = vmul.f32 %v497, 0.2
      %v645 = vmul.f32 %v499, 0.2
      %v646 = vmul.f32 %v502, 0.2
      %v647 = vmul.f32 %v504, 0.2
      %v648 = vmul.f32 %v507, 0.2
      %v649 = vmul.f32 %v509, 0.2
      %v650 = vmul.f32 %v512, 0.2
      %v651 = vmul.f32 %v514, 0.2
      %v652 = vmul.f32 %v517, 0.2
      %v653 = vmul.f32 %v519, 0.2
      %v654 = vmul.f32 %v522, 0.2
      %v655 = vmul.f32 %v524, 0.2
      %v656 = vmul.f32 %v527, 0.2
      %v657 = vmul.f32 %v529, 0.2
      %v658 = vmul.f32 %v532, 0.2
      %v659 = vmul.f32 %v534, 0.2
      %v660 = vmul.f32 %v537, 0.2
      %v661 = vmul.f32 %v539, 0.2
      %v662 = vmul.f32 %v542, 0.2
      %v663 = vmul.f32 %v544, 0.2
      %v664 = vmul.f32 %v547, 0.2
      %v665 = vmul.f32 %v549, 0.2
      %v666 = vmul.f32 %v552, 0.2
      %v667 = vmul.f32 %v554, 0.2
      %v668 = vmul.f32 %v557, 0.2
      %v669 = vmul.f32 %v559, 0.2
      %v670 = vmul.f32 %v562, 0.2
      %v671 = vmul.f32 %v564, 0.2
      %v672 = vmul.f32 %v567, 0.2
      %v673 = vmul.f32 %v569, 0.2
      %v674 = vmul.f32 %v572, 0.2
      %v675 = vmul.f32 %v574, 0.2
      %v676 = vmul.f32 %v577, 0.2
      %v677 = vmul.f32 %v579, 0.2
      %v678 = vmul.f32 %v582, 0.2
      %v679 = vmul.f32 %v584, 0.2
      %v680 = vmul.f32 %v587, 0.2
      %v681 = vmul.f32 %v589, 0.2
      %v682 = vmul.f32 %v592, 0.2
      %v683 = vmul.f32 %v594, 0.2
      %v684 = vmul.f32 %v597, 0.2
      %v685 = vmul.f32 %v599, 0.2
      %v686 = vmul.f32 %v602, 0.2
      %v687 = vmul.f32 %v604, 0.2
      %v688 = vmul.f32 %v607, 0.2
      %v689 = vmul.f32 %v609, 0.2
      %v690 = vmul.f32 %v612, 0.2
      %v691 = vmul.f32 %v614, 0.2
      %v692 = vmul.f32 %v617, 0.2
      %v693 = vmul.f32 %v619, 0.2
      %v694 = vmul.f32 %v622, 0.2
      %v695 = vmul.f32 %v624, 0.2
      %v696 = vmul.f32 %v627, 0.2
      %v697 = vmul.f32 %v629, 0.2
      %v698 = vmul.f32 %v632, 0.2
      %v699 = vmul.f32 %v634, 0.2
      %v700 = vmax.f32 %v477, %v636
      %v701 = vmax.f32 %v479, %v637
      %v702 = vmax.f32 %v482, %v638
      %v703 = vmax.f32 %v484, %v639
      %v704 = vmax.f32 %v487, %v640
      %v705 = vmax.f32 %v489, %v641
      %v706 = vmax.f32 %v492, %v642
      %v707 = vmax.f32 %v494, %v643
      %v708 = vmax.f32 %v497, %v644
      %v709 = vmax.f32 %v499, %v645
      %v710 = vmax.f32 %v502, %v646
      %v711 = vmax.f32 %v504, %v647
      %v712 = vmax.f32 %v507, %v648
      %v713 = vmax.f32 %v509, %v649
      %v714 = vmax.f32 %v512, %v650
      %v715 = vmax.f32 %v514, %v651
      %v716 = vmax.f32 %v517, %v652
      %v717 = vmax.f32 %v519, %v653
      %v718 = vmax.f32 %v522, %v654
      %v719 = vmax.f32 %v524, %v655
      %v720 = vmax.f32 %v527, %v656
      %v721 = vmax.f32 %v529, %v657
      %v722 = vmax.f32 %v532, %v658
      %v723 = vmax.f32 %v534, %v659
      %v724 = vmax.f32 %v537, %v660
      %v725 = vmax.f32 %v539, %v661
      %v726 = vmax.f32 %v542, %v662
      %v727 = vmax.f32 %v544, %v663
      %v728 = vmax.f32 %v547, %v664
      %v729 = vmax.f32 %v549, %v665
      %v730 = vmax.f32 %v552, %v666
      %v731 = vmax.f32 %v554, %v667
      %v732 = vmax.f32 %v557, %v668
      %v733 = vmax.f32 %v559, %v669
      %v734 = vmax.f32 %v562, %v670
      %v735 = vmax.f32 %v564, %v671
      %v736 = vmax.f32 %v567, %v672
      %v737 = vmax.f32 %v569, %v673
      %v738 = vmax.f32 %v572, %v674
      %v739 = vmax.f32 %v574, %v675
      %v740 = vmax.f32 %v577, %v676
      %v741 = vmax.f32 %v579, %v677
      %v742 = vmax.f32 %v582, %v678
      %v743 = vmax.f32 %v584, %v679
      %v744 = vmax.f32 %v587, %v680
      %v745 = vmax.f32 %v589, %v681
      %v746 = vmax.f32 %v592, %v682
      %v747 = vmax.f32 %v594, %v683
      %v748 = vmax.f32 %v597, %v684
      %v749 = vmax.f32 %v599, %v685
      %v750 = vmax.f32 %v602, %v686
      %v751 = vmax.f32 %v604, %v687
      %v752 = vmax.f32 %v607, %v688
      %v753 = vmax.f32 %v609, %v689
      %v754 = vmax.f32 %v612, %v690
      %v755 = vmax.f32 %v614, %v691
      %v756 = vmax.f32 %v617, %v692
      %v757 = vmax.f32 %v619, %v693
      %v758 = vmax.f32 %v622, %v694
      %v759 = vmax.f32 %v624, %v695
      %v760 = vmax.f32 %v627, %v696
      %v761 = vmax.f32 %v629, %v697
      %v762 = vmax.f32 %v632, %v698
      %v763 = vmax.f32 %v634, %v699
      %v764 = vpack.c.bf16 %v700, %v700
      %v765 = vpack.c.bf16 %v701, %v701
      %v766 = vpack.c.bf16 %v702, %v702
      %v767 = vpack.c.bf16 %v703, %v703
      %v768 = vpack.c.bf16 %v704, %v704
      %v769 = vpack.c.bf16 %v705, %v705
      %v770 = vpack.c.bf16 %v706, %v706
      %v771 = vpack.c.bf16 %v707, %v707
      %v772 = vpack.c.bf16 %v708, %v708
      %v773 = vpack.c.bf16 %v709, %v709
      %v774 = vpack.c.bf16 %v710, %v710
      %v775 = vpack.c.bf16 %v711, %v711
      %v776 = vpack.c.bf16 %v712, %v712
      %v777 = vpack.c.bf16 %v713, %v713
      %v778 = vpack.c.bf16 %v714, %v714
      %v779 = vpack.c.bf16 %v715, %v715
      %v780 = vpack.c.bf16 %v716, %v716
      %v781 = vpack.c.bf16 %v717, %v717
      %v782 = vpack.c.bf16 %v718, %v718
      %v783 = vpack.c.bf16 %v719, %v719
      %v784 = vpack.c.bf16 %v720, %v720
      %v785 = vpack.c.bf16 %v721, %v721
      %v786 = vpack.c.bf16 %v722, %v722
      %v787 = vpack.c.bf16 %v723, %v723
      %v788 = vpack.c.bf16 %v724, %v724
      %v789 = vpack.c.bf16 %v725, %v725
      %v790 = vpack.c.bf16 %v726, %v726
      %v791 = vpack.c.bf16 %v727, %v727
      %v792 = vpack.c.bf16 %v728, %v728
      %v793 = vpack.c.bf16 %v729, %v729
      %v794 = vpack.c.bf16 %v730, %v730
      %v795 = vpack.c.bf16 %v731, %v731
      %v796 = vpack.c.bf16 %v732, %v732
      %v797 = vpack.c.bf16 %v733, %v733
      %v798 = vpack.c.bf16 %v734, %v734
      %v799 = vpack.c.bf16 %v735, %v735
      %v800 = vpack.c.bf16 %v736, %v736
      %v801 = vpack.c.bf16 %v737, %v737
      %v802 = vpack.c.bf16 %v738, %v738
      %v803 = vpack.c.bf16 %v739, %v739
      %v804 = vpack.c.bf16 %v740, %v740
      %v805 = vpack.c.bf16 %v741, %v741
      %v806 = vpack.c.bf16 %v742, %v742
      %v807 = vpack.c.bf16 %v743, %v743
      %v808 = vpack.c.bf16 %v744, %v744
      %v809 = vpack.c.bf16 %v745, %v745
      %v810 = vpack.c.bf16 %v746, %v746
      %v811 = vpack.c.bf16 %v747, %v747
      %v812 = vpack.c.bf16 %v748, %v748
      %v813 = vpack.c.bf16 %v749, %v749
      %v814 = vpack.c.bf16 %v750, %v750
      %v815 = vpack.c.bf16 %v751, %v751
      %v816 = vpack.c.bf16 %v752, %v752
      %v817 = vpack.c.bf16 %v753, %v753
      %v818 = vpack.c.bf16 %v754, %v754
      %v819 = vpack.c.bf16 %v755, %v755
      %v820 = vpack.c.bf16 %v756, %v756
      %v821 = vpack.c.bf16 %v757, %v757
      %v822 = vpack.c.bf16 %v758, %v758
      %v823 = vpack.c.bf16 %v759, %v759
      %v824 = vpack.c.bf16 %v760, %v760
      %v825 = vpack.c.bf16 %v761, %v761
      %v826 = vpack.c.bf16 %v762, %v762
      %v827 = vpack.c.bf16 %v763, %v763
      %828 = vst [vmem:[%s145] sm:$0xf] %v764
      %829 = vst [vmem:[%s145 + $0x4] sm:$0xf] %v765
      %830 = vst [vmem:[%s145 + $0x8] sm:$0xf] %v766
      %831 = vst [vmem:[%s145 + $0xc] sm:$0xf] %v767
      %832 = vst [vmem:[%s145 + $0x10] sm:$0xf] %v768
      %833 = vst [vmem:[%s145 + $0x14] sm:$0xf] %v769
      %834 = vst [vmem:[%s145 + $0x18] sm:$0xf] %v770
      %835 = vst [vmem:[%s145 + $0x1c] sm:$0xf] %v771
      %836 = vst [vmem:[%s145 + $0x20] sm:$0xf] %v772
      %837 = vst [vmem:[%s145 + $0x24] sm:$0xf] %v773
      %838 = vst [vmem:[%s145 + $0x28] sm:$0xf] %v774
      %839 = vst [vmem:[%s145 + $0x2c] sm:$0xf] %v775
      %840 = vst [vmem:[%s145 + $0x30] sm:$0xf] %v776
      %841 = vst [vmem:[%s145 + $0x34] sm:$0xf] %v777
      %842 = vst [vmem:[%s145 + $0x38] sm:$0xf] %v778
      %843 = vst [vmem:[%s145 + $0x3c] sm:$0xf] %v779
      %844 = vst [vmem:[%s145 + $0x40] sm:$0xf] %v780
      %845 = vst [vmem:[%s145 + $0x44] sm:$0xf] %v781
      %846 = vst [vmem:[%s145 + $0x48] sm:$0xf] %v782
      %847 = vst [vmem:[%s145 + $0x4c] sm:$0xf] %v783
      %848 = vst [vmem:[%s145 + $0x50] sm:$0xf] %v784
      %849 = vst [vmem:[%s145 + $0x54] sm:$0xf] %v785
      %850 = vst [vmem:[%s145 + $0x58] sm:$0xf] %v786
      %851 = vst [vmem:[%s145 + $0x5c] sm:$0xf] %v787
      %852 = vst [vmem:[%s145 + $0x60] sm:$0xf] %v788
      %853 = vst [vmem:[%s145 + $0x64] sm:$0xf] %v789
      %854 = vst [vmem:[%s145 + $0x68] sm:$0xf] %v790
      %855 = vst [vmem:[%s145 + $0x6c] sm:$0xf] %v791
      %856 = vst [vmem:[%s145 + $0x70] sm:$0xf] %v792
      %857 = vst [vmem:[%s145 + $0x74] sm:$0xf] %v793
      %858 = vst [vmem:[%s145 + $0x78] sm:$0xf] %v794
      %859 = vst [vmem:[%s145 + $0x7c] sm:$0xf] %v795
      %860 = vst [vmem:[%s145 + $0x80] sm:$0xf] %v796
      %861 = vst [vmem:[%s145 + $0x84] sm:$0xf] %v797
      %862 = vst [vmem:[%s145 + $0x88] sm:$0xf] %v798
      %863 = vst [vmem:[%s145 + $0x8c] sm:$0xf] %v799
      %864 = vst [vmem:[%s145 + $0x90] sm:$0xf] %v800
      %865 = vst [vmem:[%s145 + $0x94] sm:$0xf] %v801
      %866 = vst [vmem:[%s145 + $0x98] sm:$0xf] %v802
      %867 = vst [vmem:[%s145 + $0x9c] sm:$0xf] %v803
      %868 = vst [vmem:[%s145 + $0xa0] sm:$0xf] %v804
      %869 = vst [vmem:[%s145 + $0xa4] sm:$0xf] %v805
      %870 = vst [vmem:[%s145 + $0xa8] sm:$0xf] %v806
      %871 = vst [vmem:[%s145 + $0xac] sm:$0xf] %v807
      %872 = vst [vmem:[%s145 + $0xb0] sm:$0xf] %v808
      %873 = vst [vmem:[%s145 + $0xb4] sm:$0xf] %v809
      %874 = vst [vmem:[%s145 + $0xb8] sm:$0xf] %v810
      %875 = vst [vmem:[%s145 + $0xbc] sm:$0xf] %v811
      %876 = vst [vmem:[%s145 + $0xc0] sm:$0xf] %v812
      %877 = vst [vmem:[%s145 + $0xc4] sm:$0xf] %v813
      %878 = vst [vmem:[%s145 + $0xc8] sm:$0xf] %v814
      %879 = vst [vmem:[%s145 + $0xcc] sm:$0xf] %v815
      %880 = vst [vmem:[%s145 + $0xd0] sm:$0xf] %v816
      %881 = vst [vmem:[%s145 + $0xd4] sm:$0xf] %v817
      %882 = vst [vmem:[%s145 + $0xd8] sm:$0xf] %v818
      %883 = vst [vmem:[%s145 + $0xdc] sm:$0xf] %v819
      %884 = vst [vmem:[%s145 + $0xe0] sm:$0xf] %v820
      %885 = vst [vmem:[%s145 + $0xe4] sm:$0xf] %v821
      %886 = vst [vmem:[%s145 + $0xe8] sm:$0xf] %v822
      %887 = vst [vmem:[%s145 + $0xec] sm:$0xf] %v823
      %888 = vst [vmem:[%s145 + $0xf0] sm:$0xf] %v824
      %889 = vst [vmem:[%s145 + $0xf4] sm:$0xf] %v825
      %890 = vst [vmem:[%s145 + $0xf8] sm:$0xf] %v826
      %891 = vst [vmem:[%s145 + $0xfc] sm:$0xf] %v827
      %s892 = smul.u32 64, %s13
      %p893 = scmp.lt.s32.totalorder %s892, 511
      %s894 = scalar_select %p893, %s892, 511
      %s895 = smul.addr %s894, 4
      %s896 = scalar_lea.vmem %s2, %s895
      // Predicated region
      $region29: #{discriminator_forward.7} parent=27 // pred_check
        %p897 = pneg %p78
      $region30: #{discriminator_forward.7} parent=27 // pred_check_branch
        %899 = sbr.rel (%p897) target = $region32
      $region31: #{discriminator_forward.7} parent=27 // pred_region
        %s900 = smul.u32 64, %s13
      $region32: #{discriminator_forward.7} parent=27 // pred_fallthru
        _
    $region28: #{discriminator_forward.7} parent=5 // pred_fallthru
      _
    %p901 = scmp.le.s32.totalorder 2, %s8
    // Predicated region
    $region33: #{discriminator_forward.7} parent=5 // pred_check
      %p902 = pneg %p901
    $region34: #{discriminator_forward.7} parent=5 // pred_check_branch
      %904 = sbr.rel (%p902) target = $region36
    $region35: #{discriminator_forward.7} parent=5 // pred_region
      %s905 = ssub.s32 %s8, 2
      // Predicated region
      $region37: #{discriminator_forward.7} parent=35 // pred_check
        %p906 = pneg %p84
      $region38: #{discriminator_forward.7} parent=35 // pred_check_branch
        %908 = sbr.rel (%p906) target = $region40
      $region39: #{discriminator_forward.7} parent=35 // pred_region
        %s909 = smul.u32 64, %s14
        %p910 = scmp.lt.s32.totalorder %s909, 511
        %s911 = scalar_select %p910, %s909, 511
        %s912 = smul.addr %s911, 4
        %s913 = scalar_lea.vmem %s2, %s912
      $region40: #{discriminator_forward.7} parent=35 // pred_fallthru
        _
    $region36: #{discriminator_forward.7} parent=5 // pred_fallthru
      _
  $region6: #{discriminator_forward.7} parent=0 // loop_footer
    %s12 = sadd.s32 1, %s8
  $region7: #{discriminator_forward.7} parent=0 // loop_footer_branch
    %7 = sbr.rel target = $region3
  $region8: #{discriminator_forward.7} parent=0 // loop_exit
    _

// kernel: discriminator_forward.8
$region0: #{discriminator_forward.8}
  #allocation0 [shape = 'u32[]', space=smem, size = 0x4, offset = 0x4, fixed_abs, tag = 'smem constant byte address 0x4 - core index']
  #allocation1 [shape = 'u32[72,128]{1,0:T(1,128)}', space=vmem, size = 0x9000, scoped, tag = 'internal scratch']
  %s0 = inlined_call_operand.vmem [shape: bf16[1024,128], index: 0, kind: input, shape index: {}]
  %s1 = inlined_call_operand.vmem [shape: bf16[128,128], index: 1, kind: input, shape index: {}]
  %s2 = inlined_call_operand.vmem [shape: f32[1024,128], index: 2, kind: output, shape index: {0}]
  %s3 = inlined_call_operand.vmem [shape: f32[1,128], index: 3, kind: output, shape index: {1}]
  %s4 = inlined_call_operand.vmem [shape: f32[1,128], index: 4, kind: output, shape index: {2}]
  %5 = xla_tuple %s2, %s3, %s4
  %s6 = sld [smem:[#allocation0]]
  $region61: #{discriminator_forward.8} parent=0
    _
  %s8 = ssub.s32 1, %s6
  %s9 = scalar_select 0, %s8, %s6
  loop: start=0, step=1, limit=4
  $region2: #{discriminator_forward.8} parent=0 // loop_pre_header
    _
  $region3: #{discriminator_forward.8} parent=0 // loop_header
    %s11 = sphi 0, %s15
    %p12 = scmp.ge.s32.totalorder %s11, 4
    %s21 = sphi 0, %s23
    %s24 = sphi 0, %s21
    %s25 = sphi 0, %s24
    %s41 = sphi 0, %s25
    %s45 = sphi 0, %s45
    %s47 = sphi 0, %s45
    %s48 = sphi 0, %s47
    %s62 = sphi 0, %s48
    %s68 = sphi 0, %s70
    %s71 = sphi 0, %s68
    %s72 = sphi 0, %s71
    %s88 = sphi 0, %s72
    %s92 = sphi 0, %s92
    %s94 = sphi 0, %s92
    %s95 = sphi 0, %s94
    %s109 = sphi 0, %s95
    %s113 = sphi 0, %s113
    %s115 = sphi 0, %s113
    %s116 = sphi 0, %s115
    %s130 = sphi 0, %s116
  $region4: #{discriminator_forward.8} parent=0 // loop_header_branch
    %14 = sbr.rel (%p12) target = $region8
  $region5: #{discriminator_forward.8} parent=0 // loop_body
    %s16 = ssub.s32 %s11, 1
    %s17 = ssub.s32 %s11, 2
    %s18 = sadd.s32 %s11, 1
    %s19 = ssub.s32 %s11, %s18
    %p20 = scmp.eq.s32.totalorder %s19, 0
    %s22 = sadd.s32 %s21, 1
    %s23 = scalar_select %p20, %s21, %s22
    %p26 = pneg %p20
    %p27 = scmp.eq.s32.totalorder %s11, 1
    %p28 = por %p26, %p27
    %p29 = scmp.ne.s32.totalorder %s21, %s24
    %p30 = scmp.eq.s32.totalorder %s11, 0
    %p31 = por %p29, %p30
    %p32 = scmp.ne.s32.totalorder %s21, %s24
    %p33 = scmp.eq.s32.totalorder %s16, 1
    %p34 = por %p32, %p33
    %p35 = scmp.ne.s32.totalorder %s24, %s25
    %p36 = scmp.eq.s32.totalorder %s16, 0
    %p37 = por %p35, %p36
    %p38 = scmp.ne.s32.totalorder %s24, %s25
    %p39 = scmp.eq.s32.totalorder %s17, 1
    %p40 = por %p38, %p39
    %p42 = scmp.ne.s32.totalorder %s25, %s41
    %p43 = scmp.eq.s32.totalorder %s17, 0
    %p44 = por %p42, %p43
    %s46 = sadd.s32 %s45, 1
    %p49 = scmp.eq.s32.totalorder %s11, 1
    %p50 = scmp.ne.s32.totalorder %s45, %s47
    %p51 = scmp.eq.s32.totalorder %s11, 0
    %p52 = por %p50, %p51
    %p53 = scmp.ne.s32.totalorder %s45, %s47
    %p54 = scmp.eq.s32.totalorder %s16, 1
    %p55 = por %p53, %p54
    %p56 = scmp.ne.s32.totalorder %s47, %s48
    %p57 = scmp.eq.s32.totalorder %s16, 0
    %p58 = por %p56, %p57
    %p59 = scmp.ne.s32.totalorder %s47, %s48
    %p60 = scmp.eq.s32.totalorder %s17, 1
    %p61 = por %p59, %p60
    %p63 = scmp.ne.s32.totalorder %s48, %s62
    %p64 = scmp.eq.s32.totalorder %s17, 0
    %p65 = por %p63, %p64
    %s66 = ssub.s32 %s11, %s18
    %p67 = scmp.eq.s32.totalorder %s66, 0
    %s69 = sadd.s32 %s68, 1
    %s70 = scalar_select %p67, %s68, %s69
    %p73 = pneg %p67
    %p74 = scmp.eq.s32.totalorder %s11, 1
    %p75 = por %p73, %p74
    %p76 = scmp.ne.s32.totalorder %s68, %s71
    %p77 = scmp.eq.s32.totalorder %s11, 0
    %p78 = por %p76, %p77
    %p79 = scmp.ne.s32.totalorder %s68, %s71
    %p80 = scmp.eq.s32.totalorder %s16, 1
    %p81 = por %p79, %p80
    %p82 = scmp.ne.s32.totalorder %s71, %s72
    %p83 = scmp.eq.s32.totalorder %s16, 0
    %p84 = por %p82, %p83
    %p85 = scmp.ne.s32.totalorder %s71, %s72
    %p86 = scmp.eq.s32.totalorder %s17, 1
    %p87 = por %p85, %p86
    %p89 = scmp.ne.s32.totalorder %s72, %s88
    %p90 = scmp.eq.s32.totalorder %s17, 0
    %p91 = por %p89, %p90
    %s93 = sadd.s32 %s92, 1
    %p96 = scmp.eq.s32.totalorder %s11, 1
    %p97 = scmp.ne.s32.totalorder %s92, %s94
    %p98 = scmp.eq.s32.totalorder %s11, 0
    %p99 = por %p97, %p98
    %p100 = scmp.ne.s32.totalorder %s92, %s94
    %p101 = scmp.eq.s32.totalorder %s16, 1
    %p102 = por %p100, %p101
    %p103 = scmp.ne.s32.totalorder %s94, %s95
    %p104 = scmp.eq.s32.totalorder %s16, 0
    %p105 = por %p103, %p104
    %p106 = scmp.ne.s32.totalorder %s94, %s95
    %p107 = scmp.eq.s32.totalorder %s17, 1
    %p108 = por %p106, %p107
    %p110 = scmp.ne.s32.totalorder %s95, %s109
    %p111 = scmp.eq.s32.totalorder %s17, 0
    %p112 = por %p110, %p111
    %s114 = sadd.s32 %s113, 1
    %p117 = scmp.eq.s32.totalorder %s11, 1
    %p118 = scmp.ne.s32.totalorder %s113, %s115
    %p119 = scmp.eq.s32.totalorder %s11, 0
    %p120 = por %p118, %p119
    %p121 = scmp.ne.s32.totalorder %s113, %s115
    %p122 = scmp.eq.s32.totalorder %s16, 1
    %p123 = por %p121, %p122
    %p124 = scmp.ne.s32.totalorder %s115, %s116
    %p125 = scmp.eq.s32.totalorder %s16, 0
    %p126 = por %p124, %p125
    %p127 = scmp.ne.s32.totalorder %s115, %s116
    %p128 = scmp.eq.s32.totalorder %s17, 1
    %p129 = por %p127, %p128
    %p131 = scmp.ne.s32.totalorder %s116, %s130
    %p132 = scmp.eq.s32.totalorder %s17, 0
    %p133 = por %p131, %p132
    %p134 = scmp.le.s32.totalorder 1, %s11
    %p135 = scmp.lt.s32.totalorder %s11, 3
    %p136 = pnand %p134, %p135
    %p137 = pneg %p136
    // Predicated region
    $region9: #{discriminator_forward.8} parent=5 // pred_check
      _
    $region10: #{discriminator_forward.8} parent=5 // pred_check_branch
      %139 = sbr.rel (%p136) target = $region12
    $region11: #{discriminator_forward.8} parent=5 // pred_region
      %s140 = ssub.s32 %s11, 1
      // Predicated region
      $region13: #{discriminator_forward.8} parent=11 // pred_check
        %p141 = pneg %p58
      $region14: #{discriminator_forward.8} parent=11 // pred_check_branch
        %143 = sbr.rel (%p141) target = $region16
      $region15: #{discriminator_forward.8} parent=11 // pred_region
        _
      $region16: #{discriminator_forward.8} parent=11 // pred_fallthru
        _
    $region12: #{discriminator_forward.8} parent=5 // pred_fallthru
      _
    %p144 = scmp.lt.s32.totalorder %s11, 2
    // Predicated region
    $region17: #{discriminator_forward.8} parent=5 // pred_check
      %p145 = pneg %p144
    $region18: #{discriminator_forward.8} parent=5 // pred_check_branch
      %147 = sbr.rel (%p145) target = $region20
    $region19: #{discriminator_forward.8} parent=5 // pred_region
      // Predicated region
      $region21: #{discriminator_forward.8} parent=19 // pred_check
        %p148 = pneg %p31
      $region22: #{discriminator_forward.8} parent=19 // pred_check_branch
        %150 = sbr.rel (%p148) target = $region24
      $region23: #{discriminator_forward.8} parent=19 // pred_region
        %s151 = smul.u32 64, %s11
        %p152 = scmp.lt.s32.totalorder %s151, 127
        %s153 = scalar_select %p152, %s151, 127
        %s154 = smul.addr %s153, 4
        %s155 = scalar_lea.vmem %s0, %s154
        %s156 = smul.u32 64, %s11
      $region24: #{discriminator_forward.8} parent=19 // pred_fallthru
        _
    $region20: #{discriminator_forward.8} parent=5 // pred_fallthru
      _
    %p157 = scmp.le.s32.totalorder 1, %s11
    %p158 = scmp.lt.s32.totalorder %s11, 3
    %p159 = pnand %p157, %p158
    %p160 = pneg %p159
    // Predicated region
    $region25: #{discriminator_forward.8} parent=5 // pred_check
      _
    $region26: #{discriminator_forward.8} parent=5 // pred_check_branch
      %162 = sbr.rel (%p159) target = $region28
    $region27: #{discriminator_forward.8} parent=5 // pred_region
      %s163 = ssub.s32 %s11, 1
      %s164 = smul.u32 64, %s16
      %p165 = scmp.lt.s32.totalorder %s164, 127
      %s166 = scalar_select %p165, %s164, 127
      %s167 = smul.addr %s166, 4
      %s168 = scalar_lea.vmem %s0, %s167
      %p169 = pneg %p37
      %p170 = pneg %p34
      %p171 = pneg %p58
      %p172 = pneg %p55
      %p173 = pneg %p84
      %p174 = pneg %p81
      %s175 = smul.u32 64, %s16
      %p176 = scmp.lt.s32.totalorder %s175, 127
      %s177 = scalar_select %p176, %s175, 127
      %s178 = smul.addr %s177, 8
      %s179 = scalar_lea.vmem %s2, %s178
      %p180 = pneg %p105
      %p181 = pneg %p102
      %p182 = pneg %p126
      %p183 = pneg %p123
      %s184 = smul.u32 64, %s16
      %p185 = scmp.lt.s32.totalorder %s184, 127
      %s186 = scalar_select %p185, %s184, 127
      %s187 = smul.addr %s186, 4
      %s188 = scalar_lea.vmem %s0, %s187
      %s189 = smul.u32 64, %s16
      %s190 = smul.u32 64, %s16
      %p191 = scmp.lt.s32.totalorder %s190, 127
      %s192 = scalar_select %p191, %s190, 127
      %s193 = smul.addr %s192, 8
      %s194 = scalar_lea.vmem %s2, %s193
      %s195 = smul.u32 64, %s16
      %p196 = scmp.eq.s32.totalorder %s16, 0
      // Predicated region
      $region29: #{discriminator_forward.8} parent=27 // pred_check
        %p197 = pneg %p196
      $region30: #{discriminator_forward.8} parent=27 // pred_check_branch
        %199 = sbr.rel (%p197) target = $region32
      $region31: #{discriminator_forward.8} parent=27 // pred_region
        %200 = vst [vmem:[%s3] sm:$0x1] 0.0
        %201 = vst [vmem:[%s4] sm:$0x1] 0.0
      $region32: #{discriminator_forward.8} parent=27 // pred_fallthru
        _
      %v202 = vld [vmem:[%s188] sm:$0xf]
      %v203 = vld [vmem:[%s188 + $0x4] sm:$0xf]
      %v204 = vld [vmem:[%s188 + $0x8] sm:$0xf]
      %v205 = vld [vmem:[%s188 + $0xc] sm:$0xf]
      %v206 = vld [vmem:[%s188 + $0x10] sm:$0xf]
      %v207 = vld [vmem:[%s188 + $0x14] sm:$0xf]
      %v208 = vld [vmem:[%s188 + $0x18] sm:$0xf]
      %v209 = vld [vmem:[%s188 + $0x1c] sm:$0xf]
      %v210 = vld [vmem:[%s188 + $0x20] sm:$0xf]
      %v211 = vld [vmem:[%s188 + $0x24] sm:$0xf]
      %v212 = vld [vmem:[%s188 + $0x28] sm:$0xf]
      %v213 = vld [vmem:[%s188 + $0x2c] sm:$0xf]
      %v214 = vld [vmem:[%s188 + $0x30] sm:$0xf]
      %v215 = vld [vmem:[%s188 + $0x34] sm:$0xf]
      %v216 = vld [vmem:[%s188 + $0x38] sm:$0xf]
      %v217 = vld [vmem:[%s188 + $0x3c] sm:$0xf]
      %v218 = vld [vmem:[%s188 + $0x40] sm:$0xf]
      %v219 = vld [vmem:[%s188 + $0x44] sm:$0xf]
      %v220 = vld [vmem:[%s188 + $0x48] sm:$0xf]
      %v221 = vld [vmem:[%s188 + $0x4c] sm:$0xf]
      %v222 = vld [vmem:[%s188 + $0x50] sm:$0xf]
      %v223 = vld [vmem:[%s188 + $0x54] sm:$0xf]
      %v224 = vld [vmem:[%s188 + $0x58] sm:$0xf]
      %v225 = vld [vmem:[%s188 + $0x5c] sm:$0xf]
      %v226 = vld [vmem:[%s188 + $0x60] sm:$0xf]
      %v227 = vld [vmem:[%s188 + $0x64] sm:$0xf]
      %v228 = vld [vmem:[%s188 + $0x68] sm:$0xf]
      %v229 = vld [vmem:[%s188 + $0x6c] sm:$0xf]
      %v230 = vld [vmem:[%s188 + $0x70] sm:$0xf]
      %v231 = vld [vmem:[%s188 + $0x74] sm:$0xf]
      %v232 = vld [vmem:[%s188 + $0x78] sm:$0xf]
      %v233 = vld [vmem:[%s188 + $0x7c] sm:$0xf]
      %v234 = vld [vmem:[%s188 + $0x80] sm:$0xf]
      %v235 = vld [vmem:[%s188 + $0x84] sm:$0xf]
      %v236 = vld [vmem:[%s188 + $0x88] sm:$0xf]
      %v237 = vld [vmem:[%s188 + $0x8c] sm:$0xf]
      %v238 = vld [vmem:[%s188 + $0x90] sm:$0xf]
      %v239 = vld [vmem:[%s188 + $0x94] sm:$0xf]
      %v240 = vld [vmem:[%s188 + $0x98] sm:$0xf]
      %v241 = vld [vmem:[%s188 + $0x9c] sm:$0xf]
      %v242 = vld [vmem:[%s188 + $0xa0] sm:$0xf]
      %v243 = vld [vmem:[%s188 + $0xa4] sm:$0xf]
      %v244 = vld [vmem:[%s188 + $0xa8] sm:$0xf]
      %v245 = vld [vmem:[%s188 + $0xac] sm:$0xf]
      %v246 = vld [vmem:[%s188 + $0xb0] sm:$0xf]
      %v247 = vld [vmem:[%s188 + $0xb4] sm:$0xf]
      %v248 = vld [vmem:[%s188 + $0xb8] sm:$0xf]
      %v249 = vld [vmem:[%s188 + $0xbc] sm:$0xf]
      %v250 = vld [vmem:[%s188 + $0xc0] sm:$0xf]
      %v251 = vld [vmem:[%s188 + $0xc4] sm:$0xf]
      %v252 = vld [vmem:[%s188 + $0xc8] sm:$0xf]
      %v253 = vld [vmem:[%s188 + $0xcc] sm:$0xf]
      %v254 = vld [vmem:[%s188 + $0xd0] sm:$0xf]
      %v255 = vld [vmem:[%s188 + $0xd4] sm:$0xf]
      %v256 = vld [vmem:[%s188 + $0xd8] sm:$0xf]
      %v257 = vld [vmem:[%s188 + $0xdc] sm:$0xf]
      %v258 = vld [vmem:[%s188 + $0xe0] sm:$0xf]
      %v259 = vld [vmem:[%s188 + $0xe4] sm:$0xf]
      %v260 = vld [vmem:[%s188 + $0xe8] sm:$0xf]
      %v261 = vld [vmem:[%s188 + $0xec] sm:$0xf]
      %v262 = vld [vmem:[%s188 + $0xf0] sm:$0xf]
      %v263 = vld [vmem:[%s188 + $0xf4] sm:$0xf]
      %v264 = vld [vmem:[%s188 + $0xf8] sm:$0xf]
      %v265 = vld [vmem:[%s188 + $0xfc] sm:$0xf]
      %v266 = vld [vmem:[%s1] sm:$0xf]
      %v267 = vld [vmem:[%s1 + $0x4] sm:$0xf]
      %v268 = vld [vmem:[%s1 + $0x8] sm:$0xf]
      %v269 = vld [vmem:[%s1 + $0xc] sm:$0xf]
      %v270 = vld [vmem:[%s1 + $0x10] sm:$0xf]
      %v271 = vld [vmem:[%s1 + $0x14] sm:$0xf]
      %v272 = vld [vmem:[%s1 + $0x18] sm:$0xf]
      %v273 = vld [vmem:[%s1 + $0x1c] sm:$0xf]
      %v274 = vld [vmem:[%s1 + $0x20] sm:$0xf]
      %v275 = vld [vmem:[%s1 + $0x24] sm:$0xf]
      %v276 = vld [vmem:[%s1 + $0x28] sm:$0xf]
      %v277 = vld [vmem:[%s1 + $0x2c] sm:$0xf]
      %v278 = vld [vmem:[%s1 + $0x30] sm:$0xf]
      %v279 = vld [vmem:[%s1 + $0x34] sm:$0xf]
      %v280 = vld [vmem:[%s1 + $0x38] sm:$0xf]
      %v281 = vld [vmem:[%s1 + $0x3c] sm:$0xf]
      %v346 = vunpack.c.l.b16 %v202
      %v347 = vunpack.c.l.b16 %v203
      %v348 = vunpack.c.l.b16 %v204
      %v349 = vunpack.c.l.b16 %v205
      %v350 = vunpack.c.l.b16 %v206
      %v351 = vunpack.c.l.b16 %v207
      %v352 = vunpack.c.l.b16 %v208
      %v353 = vunpack.c.l.b16 %v209
      %v354 = vunpack.c.l.b16 %v210
      %v355 = vunpack.c.l.b16 %v211
      %v356 = vunpack.c.l.b16 %v212
      %v357 = vunpack.c.l.b16 %v213
      %v358 = vunpack.c.l.b16 %v214
      %v359 = vunpack.c.l.b16 %v215
      %v360 = vunpack.c.l.b16 %v216
      %v361 = vunpack.c.l.b16 %v217
      %v362 = vunpack.c.l.b16 %v218
      %v363 = vunpack.c.l.b16 %v219
      %v364 = vunpack.c.l.b16 %v220
      %v365 = vunpack.c.l.b16 %v221
      %v366 = vunpack.c.l.b16 %v222
      %v367 = vunpack.c.l.b16 %v223
      %v368 = vunpack.c.l.b16 %v224
      %v369 = vunpack.c.l.b16 %v225
      %v370 = vunpack.c.l.b16 %v226
      %v371 = vunpack.c.l.b16 %v227
      %v372 = vunpack.c.l.b16 %v228
      %v373 = vunpack.c.l.b16 %v229
      %v374 = vunpack.c.l.b16 %v230
      %v375 = vunpack.c.l.b16 %v231
      %v376 = vunpack.c.l.b16 %v232
      %v377 = vunpack.c.l.b16 %v233
      %v378 = vunpack.c.l.b16 %v234
      %v379 = vunpack.c.l.b16 %v235
      %v380 = vunpack.c.l.b16 %v236
      %v381 = vunpack.c.l.b16 %v237
      %v382 = vunpack.c.l.b16 %v238
      %v383 = vunpack.c.l.b16 %v239
      %v384 = vunpack.c.l.b16 %v240
      %v385 = vunpack.c.l.b16 %v241
      %v386 = vunpack.c.l.b16 %v242
      %v387 = vunpack.c.l.b16 %v243
      %v388 = vunpack.c.l.b16 %v244
      %v389 = vunpack.c.l.b16 %v245
      %v390 = vunpack.c.l.b16 %v246
      %v391 = vunpack.c.l.b16 %v247
      %v392 = vunpack.c.l.b16 %v248
      %v393 = vunpack.c.l.b16 %v249
      %v394 = vunpack.c.l.b16 %v250
      %v395 = vunpack.c.l.b16 %v251
      %v396 = vunpack.c.l.b16 %v252
      %v397 = vunpack.c.l.b16 %v253
      %v398 = vunpack.c.l.b16 %v254
      %v399 = vunpack.c.l.b16 %v255
      %v400 = vunpack.c.l.b16 %v256
      %v401 = vunpack.c.l.b16 %v257
      %v402 = vunpack.c.l.b16 %v258
      %v403 = vunpack.c.l.b16 %v259
      %v404 = vunpack.c.l.b16 %v260
      %v405 = vunpack.c.l.b16 %v261
      %v406 = vunpack.c.l.b16 %v262
      %v407 = vunpack.c.l.b16 %v263
      %v408 = vunpack.c.l.b16 %v264
      %v409 = vunpack.c.l.b16 %v265
      %v410 = vpack.c.b16 %v347, %v346
      %v411 = vpack.c.b16 %v349, %v348
      %v412 = vpack.c.b16 %v351, %v350
      %v413 = vpack.c.b16 %v353, %v352
      %v414 = vpack.c.b16 %v355, %v354
      %v415 = vpack.c.b16 %v357, %v356
      %v416 = vpack.c.b16 %v359, %v358
      %v417 = vpack.c.b16 %v361, %v360
      %v418 = vpack.c.b16 %v363, %v362
      %v419 = vpack.c.b16 %v365, %v364
      %v420 = vpack.c.b16 %v367, %v366
      %v421 = vpack.c.b16 %v369, %v368
      %v422 = vpack.c.b16 %v371, %v370
      %v423 = vpack.c.b16 %v373, %v372
      %v424 = vpack.c.b16 %v375, %v374
      %v425 = vpack.c.b16 %v377, %v376
      %v426 = vpack.c.b16 %v379, %v378
      %v427 = vpack.c.b16 %v381, %v380
      %v428 = vpack.c.b16 %v383, %v382
      %v429 = vpack.c.b16 %v385, %v384
      %v430 = vpack.c.b16 %v387, %v386
      %v431 = vpack.c.b16 %v389, %v388
      %v432 = vpack.c.b16 %v391, %v390
      %v433 = vpack.c.b16 %v393, %v392
      %v434 = vpack.c.b16 %v395, %v394
      %v435 = vpack.c.b16 %v397, %v396
      %v436 = vpack.c.b16 %v399, %v398
      %v437 = vpack.c.b16 %v401, %v400
      %v438 = vpack.c.b16 %v403, %v402
      %v439 = vpack.c.b16 %v405, %v404
      %v440 = vpack.c.b16 %v407, %v406
      %v441 = vpack.c.b16 %v409, %v408
      %v490 = vunpack.c.l.b16 %v266
      %v491 = vunpack.c.l.b16 %v267
      %v492 = vunpack.c.l.b16 %v268
      %v493 = vunpack.c.l.b16 %v269
      %v494 = vunpack.c.l.b16 %v270
      %v495 = vunpack.c.l.b16 %v271
      %v496 = vunpack.c.l.b16 %v272
      %v497 = vunpack.c.l.b16 %v273
      %v498 = vunpack.c.l.b16 %v274
      %v499 = vunpack.c.l.b16 %v275
      %v500 = vunpack.c.l.b16 %v276
      %v501 = vunpack.c.l.b16 %v277
      %v502 = vunpack.c.l.b16 %v278
      %v503 = vunpack.c.l.b16 %v279
      %v504 = vunpack.c.l.b16 %v280
      %v505 = vunpack.c.l.b16 %v281
      %v506 = vpack.c.b16 %v491, %v490
      %v507 = vpack.c.b16 %v493, %v492
      %v508 = vpack.c.b16 %v495, %v494
      %v509 = vpack.c.b16 %v497, %v496
      %v510 = vpack.c.b16 %v499, %v498
      %v511 = vpack.c.b16 %v501, %v500
      %v512 = vpack.c.b16 %v503, %v502
      %v513 = vpack.c.b16 %v505, %v504
      %522 = vmatpush.bf16.msra.mxu0 %v513
      %523 = vmatpush.bf16.msra.mxu0 %v512
      %524 = vmatpush.bf16.msra.mxu0 %v511
      %525 = vmatpush.bf16.msra.mxu0 %v510
      %526 = vmatpush.bf16.msra.mxu0 %v509
      %527 = vmatpush.bf16.msra.mxu0 %v508
      %528 = vmatpush.bf16.msra.mxu0 %v507
      %529 = vmatpush.bf16.msra.mxu0 %v506
      %530 = vmatmul.bf16.gmra.mxu0 %v410
      %v531 = vpop.f32.mrf.mxu0
      %v532 = vadd.f32 0.0, %v531
      %v533 = vpop.f32.mrf.mxu0
      %v534 = vadd.f32 0.0, %v533
      %535 = vmatmul.bf16.gmra.mxu0 %v411
      %v536 = vpop.f32.mrf.mxu0
      %v537 = vadd.f32 0.0, %v536
      %v538 = vpop.f32.mrf.mxu0
      %v539 = vadd.f32 0.0, %v538
      %540 = vmatmul.bf16.gmra.mxu0 %v412
      %v541 = vpop.f32.mrf.mxu0
      %v542 = vadd.f32 0.0, %v541
      %v543 = vpop.f32.mrf.mxu0
      %v544 = vadd.f32 0.0, %v543
      %545 = vmatmul.bf16.gmra.mxu0 %v413
      %v546 = vpop.f32.mrf.mxu0
      %v547 = vadd.f32 0.0, %v546
      %v548 = vpop.f32.mrf.mxu0
      %v549 = vadd.f32 0.0, %v548
      %550 = vmatmul.bf16.gmra.mxu0 %v414
      %v551 = vpop.f32.mrf.mxu0
      %v552 = vadd.f32 0.0, %v551
      %v553 = vpop.f32.mrf.mxu0
      %v554 = vadd.f32 0.0, %v553
      %555 = vmatmul.bf16.gmra.mxu0 %v415
      %v556 = vpop.f32.mrf.mxu0
      %v557 = vadd.f32 0.0, %v556
      %v558 = vpop.f32.mrf.mxu0
      %v559 = vadd.f32 0.0, %v558
      %560 = vmatmul.bf16.gmra.mxu0 %v416
      %v561 = vpop.f32.mrf.mxu0
      %v562 = vadd.f32 0.0, %v561
      %v563 = vpop.f32.mrf.mxu0
      %v564 = vadd.f32 0.0, %v563
      %565 = vmatmul.bf16.gmra.mxu0 %v417
      %v566 = vpop.f32.mrf.mxu0
      %v567 = vadd.f32 0.0, %v566
      %v568 = vpop.f32.mrf.mxu0
      %v569 = vadd.f32 0.0, %v568
      %570 = vmatmul.bf16.gmra.mxu0 %v418
      %v571 = vpop.f32.mrf.mxu0
      %v572 = vadd.f32 0.0, %v571
      %v573 = vpop.f32.mrf.mxu0
      %v574 = vadd.f32 0.0, %v573
      %575 = vmatmul.bf16.gmra.mxu0 %v419
      %v576 = vpop.f32.mrf.mxu0
      %v577 = vadd.f32 0.0, %v576
      %v578 = vpop.f32.mrf.mxu0
      %v579 = vadd.f32 0.0, %v578
      %580 = vmatmul.bf16.gmra.mxu0 %v420
      %v581 = vpop.f32.mrf.mxu0
      %v582 = vadd.f32 0.0, %v581
      %v583 = vpop.f32.mrf.mxu0
      %v584 = vadd.f32 0.0, %v583
      %585 = vmatmul.bf16.gmra.mxu0 %v421
      %v586 = vpop.f32.mrf.mxu0
      %v587 = vadd.f32 0.0, %v586
      %v588 = vpop.f32.mrf.mxu0
      %v589 = vadd.f32 0.0, %v588
      %590 = vmatmul.bf16.gmra.mxu0 %v422
      %v591 = vpop.f32.mrf.mxu0
      %v592 = vadd.f32 0.0, %v591
      %v593 = vpop.f32.mrf.mxu0
      %v594 = vadd.f32 0.0, %v593
      %595 = vmatmul.bf16.gmra.mxu0 %v423
      %v596 = vpop.f32.mrf.mxu0
      %v597 = vadd.f32 0.0, %v596
      %v598 = vpop.f32.mrf.mxu0
      %v599 = vadd.f32 0.0, %v598
      %600 = vmatmul.bf16.gmra.mxu0 %v424
      %v601 = vpop.f32.mrf.mxu0
      %v602 = vadd.f32 0.0, %v601
      %v603 = vpop.f32.mrf.mxu0
      %v604 = vadd.f32 0.0, %v603
      %605 = vmatmul.bf16.gmra.mxu0 %v425
      %v606 = vpop.f32.mrf.mxu0
      %v607 = vadd.f32 0.0, %v606
      %v608 = vpop.f32.mrf.mxu0
      %v609 = vadd.f32 0.0, %v608
      %610 = vmatmul.bf16.gmra.mxu0 %v426
      %v611 = vpop.f32.mrf.mxu0
      %v612 = vadd.f32 0.0, %v611
      %v613 = vpop.f32.mrf.mxu0
      %v614 = vadd.f32 0.0, %v613
      %615 = vmatmul.bf16.gmra.mxu0 %v427
      %v616 = vpop.f32.mrf.mxu0
      %v617 = vadd.f32 0.0, %v616
      %v618 = vpop.f32.mrf.mxu0
      %v619 = vadd.f32 0.0, %v618
      %620 = vmatmul.bf16.gmra.mxu0 %v428
      %v621 = vpop.f32.mrf.mxu0
      %v622 = vadd.f32 0.0, %v621
      %v623 = vpop.f32.mrf.mxu0
      %v624 = vadd.f32 0.0, %v623
      %625 = vmatmul.bf16.gmra.mxu0 %v429
      %v626 = vpop.f32.mrf.mxu0
      %v627 = vadd.f32 0.0, %v626
      %v628 = vpop.f32.mrf.mxu0
      %v629 = vadd.f32 0.0, %v628
      %630 = vmatmul.bf16.gmra.mxu0 %v430
      %v631 = vpop.f32.mrf.mxu0
      %v632 = vadd.f32 0.0, %v631
      %v633 = vpop.f32.mrf.mxu0
      %v634 = vadd.f32 0.0, %v633
      %635 = vmatmul.bf16.gmra.mxu0 %v431
      %v636 = vpop.f32.mrf.mxu0
      %v637 = vadd.f32 0.0, %v636
      %v638 = vpop.f32.mrf.mxu0
      %v639 = vadd.f32 0.0, %v638
      %640 = vmatmul.bf16.gmra.mxu0 %v432
      %v641 = vpop.f32.mrf.mxu0
      %v642 = vadd.f32 0.0, %v641
      %v643 = vpop.f32.mrf.mxu0
      %v644 = vadd.f32 0.0, %v643
      %645 = vmatmul.bf16.gmra.mxu0 %v433
      %v646 = vpop.f32.mrf.mxu0
      %v647 = vadd.f32 0.0, %v646
      %v648 = vpop.f32.mrf.mxu0
      %v649 = vadd.f32 0.0, %v648
      %650 = vmatmul.bf16.gmra.mxu0 %v434
      %v651 = vpop.f32.mrf.mxu0
      %v652 = vadd.f32 0.0, %v651
      %v653 = vpop.f32.mrf.mxu0
      %v654 = vadd.f32 0.0, %v653
      %655 = vmatmul.bf16.gmra.mxu0 %v435
      %v656 = vpop.f32.mrf.mxu0
      %v657 = vadd.f32 0.0, %v656
      %v658 = vpop.f32.mrf.mxu0
      %v659 = vadd.f32 0.0, %v658
      %660 = vmatmul.bf16.gmra.mxu0 %v436
      %v661 = vpop.f32.mrf.mxu0
      %v662 = vadd.f32 0.0, %v661
      %v663 = vpop.f32.mrf.mxu0
      %v664 = vadd.f32 0.0, %v663
      %665 = vmatmul.bf16.gmra.mxu0 %v437
      %v666 = vpop.f32.mrf.mxu0
      %v667 = vadd.f32 0.0, %v666
      %v668 = vpop.f32.mrf.mxu0
      %v669 = vadd.f32 0.0, %v668
      %670 = vmatmul.bf16.gmra.mxu0 %v438
      %v671 = vpop.f32.mrf.mxu0
      %v672 = vadd.f32 0.0, %v671
      %v673 = vpop.f32.mrf.mxu0
      %v674 = vadd.f32 0.0, %v673
      %675 = vmatmul.bf16.gmra.mxu0 %v439
      %v676 = vpop.f32.mrf.mxu0
      %v677 = vadd.f32 0.0, %v676
      %v678 = vpop.f32.mrf.mxu0
      %v679 = vadd.f32 0.0, %v678
      %680 = vmatmul.bf16.gmra.mxu0 %v440
      %v681 = vpop.f32.mrf.mxu0
      %v682 = vadd.f32 0.0, %v681
      %v683 = vpop.f32.mrf.mxu0
      %v684 = vadd.f32 0.0, %v683
      %685 = vmatmul.bf16.gmra.mxu0 %v441
      %v686 = vpop.f32.mrf.mxu0
      %v687 = vadd.f32 0.0, %v686
      %v688 = vpop.f32.mrf.mxu0
      %v689 = vadd.f32 0.0, %v688
      %690 = vdwg.mxu0
      %691 = vst [vmem:[%s194] sm:$0xff] %v532
      %692 = vst [vmem:[%s194 + $0x8] sm:$0xff] %v534
      %693 = vst [vmem:[%s194 + $0x10] sm:$0xff] %v537
      %694 = vst [vmem:[%s194 + $0x18] sm:$0xff] %v539
      %695 = vst [vmem:[%s194 + $0x20] sm:$0xff] %v542
      %696 = vst [vmem:[%s194 + $0x28] sm:$0xff] %v544
      %697 = vst [vmem:[%s194 + $0x30] sm:$0xff] %v547
      %698 = vst [vmem:[%s194 + $0x38] sm:$0xff] %v549
      %699 = vst [vmem:[%s194 + $0x40] sm:$0xff] %v552
      %700 = vst [vmem:[%s194 + $0x48] sm:$0xff] %v554
      %701 = vst [vmem:[%s194 + $0x50] sm:$0xff] %v557
      %702 = vst [vmem:[%s194 + $0x58] sm:$0xff] %v559
      %703 = vst [vmem:[%s194 + $0x60] sm:$0xff] %v562
      %704 = vst [vmem:[%s194 + $0x68] sm:$0xff] %v564
      %705 = vst [vmem:[%s194 + $0x70] sm:$0xff] %v567
      %706 = vst [vmem:[%s194 + $0x78] sm:$0xff] %v569
      %707 = vst [vmem:[%s194 + $0x80] sm:$0xff] %v572
      %708 = vst [vmem:[%s194 + $0x88] sm:$0xff] %v574
      %709 = vst [vmem:[%s194 + $0x90] sm:$0xff] %v577
      %710 = vst [vmem:[%s194 + $0x98] sm:$0xff] %v579
      %711 = vst [vmem:[%s194 + $0xa0] sm:$0xff] %v582
      %712 = vst [vmem:[%s194 + $0xa8] sm:$0xff] %v584
      %713 = vst [vmem:[%s194 + $0xb0] sm:$0xff] %v587
      %714 = vst [vmem:[%s194 + $0xb8] sm:$0xff] %v589
      %715 = vst [vmem:[%s194 + $0xc0] sm:$0xff] %v592
      %716 = vst [vmem:[%s194 + $0xc8] sm:$0xff] %v594
      %717 = vst [vmem:[%s194 + $0xd0] sm:$0xff] %v597
      %718 = vst [vmem:[%s194 + $0xd8] sm:$0xff] %v599
      %719 = vst [vmem:[%s194 + $0xe0] sm:$0xff] %v602
      %720 = vst [vmem:[%s194 + $0xe8] sm:$0xff] %v604
      %721 = vst [vmem:[%s194 + $0xf0] sm:$0xff] %v607
      %722 = vst [vmem:[%s194 + $0xf8] sm:$0xff] %v609
      %723 = vst [vmem:[%s194 + $0x100] sm:$0xff] %v612
      %724 = vst [vmem:[%s194 + $0x108] sm:$0xff] %v614
      %725 = vst [vmem:[%s194 + $0x110] sm:$0xff] %v617
      %726 = vst [vmem:[%s194 + $0x118] sm:$0xff] %v619
      %727 = vst [vmem:[%s194 + $0x120] sm:$0xff] %v622
      %728 = vst [vmem:[%s194 + $0x128] sm:$0xff] %v624
      %729 = vst [vmem:[%s194 + $0x130] sm:$0xff] %v627
      %730 = vst [vmem:[%s194 + $0x138] sm:$0xff] %v629
      %731 = vst [vmem:[%s194 + $0x140] sm:$0xff] %v632
      %732 = vst [vmem:[%s194 + $0x148] sm:$0xff] %v634
      %733 = vst [vmem:[%s194 + $0x150] sm:$0xff] %v637
      %734 = vst [vmem:[%s194 + $0x158] sm:$0xff] %v639
      %735 = vst [vmem:[%s194 + $0x160] sm:$0xff] %v642
      %736 = vst [vmem:[%s194 + $0x168] sm:$0xff] %v644
      %737 = vst [vmem:[%s194 + $0x170] sm:$0xff] %v647
      %738 = vst [vmem:[%s194 + $0x178] sm:$0xff] %v649
      %739 = vst [vmem:[%s194 + $0x180] sm:$0xff] %v652
      %740 = vst [vmem:[%s194 + $0x188] sm:$0xff] %v654
      %741 = vst [vmem:[%s194 + $0x190] sm:$0xff] %v657
      %742 = vst [vmem:[%s194 + $0x198] sm:$0xff] %v659
      %743 = vst [vmem:[%s194 + $0x1a0] sm:$0xff] %v662
      %744 = vst [vmem:[%s194 + $0x1a8] sm:$0xff] %v664
      %745 = vst [vmem:[%s194 + $0x1b0] sm:$0xff] %v667
      %746 = vst [vmem:[%s194 + $0x1b8] sm:$0xff] %v669
      %747 = vst [vmem:[%s194 + $0x1c0] sm:$0xff] %v672
      %748 = vst [vmem:[%s194 + $0x1c8] sm:$0xff] %v674
      %749 = vst [vmem:[%s194 + $0x1d0] sm:$0xff] %v677
      %750 = vst [vmem:[%s194 + $0x1d8] sm:$0xff] %v679
      %751 = vst [vmem:[%s194 + $0x1e0] sm:$0xff] %v682
      %752 = vst [vmem:[%s194 + $0x1e8] sm:$0xff] %v684
      %753 = vst [vmem:[%s194 + $0x1f0] sm:$0xff] %v687
      %754 = vst [vmem:[%s194 + $0x1f8] sm:$0xff] %v689
      %v755 = vld [vmem:[%s3] sm:$0x1]
      %v756 = vadd.f32 %v532, %v534
      %v757 = vadd.f32 %v756, %v537
      %v758 = vadd.f32 %v757, %v539
      %v759 = vadd.f32 %v758, %v542
      %v760 = vadd.f32 %v759, %v544
      %v761 = vadd.f32 %v760, %v547
      %v762 = vadd.f32 %v761, %v549
      %v763 = vadd.f32 %v762, %v552
      %v764 = vadd.f32 %v763, %v554
      %v765 = vadd.f32 %v764, %v557
      %v766 = vadd.f32 %v765, %v559
      %v767 = vadd.f32 %v766, %v562
      %v768 = vadd.f32 %v767, %v564
      %v769 = vadd.f32 %v768, %v567
      %v770 = vadd.f32 %v769, %v569
      %v771 = vadd.f32 %v770, %v572
      %v772 = vadd.f32 %v771, %v574
      %v773 = vadd.f32 %v772, %v577
      %v774 = vadd.f32 %v773, %v579
      %v775 = vadd.f32 %v774, %v582
      %v776 = vadd.f32 %v775, %v584
      %v777 = vadd.f32 %v776, %v587
      %v778 = vadd.f32 %v777, %v589
      %v779 = vadd.f32 %v778, %v592
      %v780 = vadd.f32 %v779, %v594
      %v781 = vadd.f32 %v780, %v597
      %v782 = vadd.f32 %v781, %v599
      %v783 = vadd.f32 %v782, %v602
      %v784 = vadd.f32 %v783, %v604
      %v785 = vadd.f32 %v784, %v607
      %v786 = vadd.f32 %v785, %v609
      %v787 = vadd.f32 %v786, %v612
      %v788 = vadd.f32 %v787, %v614
      %v789 = vadd.f32 %v788, %v617
      %v790 = vadd.f32 %v789, %v619
      %v791 = vadd.f32 %v790, %v622
      %v792 = vadd.f32 %v791, %v624
      %v793 = vadd.f32 %v792, %v627
      %v794 = vadd.f32 %v793, %v629
      %v795 = vadd.f32 %v794, %v632
      %v796 = vadd.f32 %v795, %v634
      %v797 = vadd.f32 %v796, %v637
      %v798 = vadd.f32 %v797, %v639
      %v799 = vadd.f32 %v798, %v642
      %v800 = vadd.f32 %v799, %v644
      %v801 = vadd.f32 %v800, %v647
      %v802 = vadd.f32 %v801, %v649
      %v803 = vadd.f32 %v802, %v652
      %v804 = vadd.f32 %v803, %v654
      %v805 = vadd.f32 %v804, %v657
      %v806 = vadd.f32 %v805, %v659
      %v807 = vadd.f32 %v806, %v662
      %v808 = vadd.f32 %v807, %v664
      %v809 = vadd.f32 %v808, %v667
      %v810 = vadd.f32 %v809, %v669
      %v811 = vadd.f32 %v810, %v672
      %v812 = vadd.f32 %v811, %v674
      %v813 = vadd.f32 %v812, %v677
      %v814 = vadd.f32 %v813, %v679
      %v815 = vadd.f32 %v814, %v682
      %v816 = vadd.f32 %v815, %v684
      %v817 = vadd.f32 %v816, %v687
      %v818 = vadd.f32 %v817, %v689
      %v819 = vrot.slane %v818, 4
      %v820 = vadd.f32 %v818, %v819
      %v821 = vrot.slane %v820, 2
      %v822 = vadd.f32 %v820, %v821
      %v823 = vrot.slane %v822, 1
      %v824 = vadd.f32 %v822, %v823
      %v825 = vadd.f32 %v755, %v824
      %826 = vst [vmem:[%s3] sm:$0x1] %v825
      %v827 = vld [vmem:[%s4] sm:$0x1]
      %v828 = vmul.f32 %v532, %v532
      %v829 = vmul.f32 %v534, %v534
      %v830 = vmul.f32 %v537, %v537
      %v831 = vmul.f32 %v539, %v539
      %v832 = vmul.f32 %v542, %v542
      %v833 = vmul.f32 %v544, %v544
      %v834 = vmul.f32 %v547, %v547
      %v835 = vmul.f32 %v549, %v549
      %v836 = vmul.f32 %v552, %v552
      %v837 = vmul.f32 %v554, %v554
      %v838 = vmul.f32 %v557, %v557
      %v839 = vmul.f32 %v559, %v559
      %v840 = vmul.f32 %v562, %v562
      %v841 = vmul.f32 %v564, %v564
      %v842 = vmul.f32 %v567, %v567
      %v843 = vmul.f32 %v569, %v569
      %v844 = vmul.f32 %v572, %v572
      %v845 = vmul.f32 %v574, %v574
      %v846 = vmul.f32 %v577, %v577
      %v847 = vmul.f32 %v579, %v579
      %v848 = vmul.f32 %v582, %v582
      %v849 = vmul.f32 %v584, %v584
      %v850 = vmul.f32 %v587, %v587
      %v851 = vmul.f32 %v589, %v589
      %v852 = vmul.f32 %v592, %v592
      %v853 = vmul.f32 %v594, %v594
      %v854 = vmul.f32 %v597, %v597
      %v855 = vmul.f32 %v599, %v599
      %v856 = vmul.f32 %v602, %v602
      %v857 = vmul.f32 %v604, %v604
      %v858 = vmul.f32 %v607, %v607
      %v859 = vmul.f32 %v609, %v609
      %v860 = vmul.f32 %v612, %v612
      %v861 = vmul.f32 %v614, %v614
      %v862 = vmul.f32 %v617, %v617
      %v863 = vmul.f32 %v619, %v619
      %v864 = vmul.f32 %v622, %v622
      %v865 = vmul.f32 %v624, %v624
      %v866 = vmul.f32 %v627, %v627
      %v867 = vmul.f32 %v629, %v629
      %v868 = vmul.f32 %v632, %v632
      %v869 = vmul.f32 %v634, %v634
      %v870 = vmul.f32 %v637, %v637
      %v871 = vmul.f32 %v639, %v639
      %v872 = vmul.f32 %v642, %v642
      %v873 = vmul.f32 %v644, %v644
      %v874 = vmul.f32 %v647, %v647
      %v875 = vmul.f32 %v649, %v649
      %v876 = vmul.f32 %v652, %v652
      %v877 = vmul.f32 %v654, %v654
      %v878 = vmul.f32 %v657, %v657
      %v879 = vmul.f32 %v659, %v659
      %v880 = vmul.f32 %v662, %v662
      %v881 = vmul.f32 %v664, %v664
      %v882 = vmul.f32 %v667, %v667
      %v883 = vmul.f32 %v669, %v669
      %v884 = vmul.f32 %v672, %v672
      %v885 = vmul.f32 %v674, %v674
      %v886 = vmul.f32 %v677, %v677
      %v887 = vmul.f32 %v679, %v679
      %v888 = vmul.f32 %v682, %v682
      %v889 = vmul.f32 %v684, %v684
      %v890 = vmul.f32 %v687, %v687
      %v891 = vmul.f32 %v689, %v689
      %v892 = vadd.f32 %v828, %v829
      %v893 = vadd.f32 %v892, %v830
      %v894 = vadd.f32 %v893, %v831
      %v895 = vadd.f32 %v894, %v832
      %v896 = vadd.f32 %v895, %v833
      %v897 = vadd.f32 %v896, %v834
      %v898 = vadd.f32 %v897, %v835
      %v899 = vadd.f32 %v898, %v836
      %v900 = vadd.f32 %v899, %v837
      %v901 = vadd.f32 %v900, %v838
      %v902 = vadd.f32 %v901, %v839
      %v903 = vadd.f32 %v902, %v840
      %v904 = vadd.f32 %v903, %v841
      %v905 = vadd.f32 %v904, %v842
      %v906 = vadd.f32 %v905, %v843
      %v907 = vadd.f32 %v906, %v844
      %v908 = vadd.f32 %v907, %v845
      %v909 = vadd.f32 %v908, %v846
      %v910 = vadd.f32 %v909, %v847
      %v911 = vadd.f32 %v910, %v848
      %v912 = vadd.f32 %v911, %v849
      %v913 = vadd.f32 %v912, %v850
      %v914 = vadd.f32 %v913, %v851
      %v915 = vadd.f32 %v914, %v852
      %v916 = vadd.f32 %v915, %v853
      %v917 = vadd.f32 %v916, %v854
      %v918 = vadd.f32 %v917, %v855
      %v919 = vadd.f32 %v918, %v856
      %v920 = vadd.f32 %v919, %v857
      %v921 = vadd.f32 %v920, %v858
      %v922 = vadd.f32 %v921, %v859
      %v923 = vadd.f32 %v922, %v860
      %v924 = vadd.f32 %v923, %v861
      %v925 = vadd.f32 %v924, %v862
      %v926 = vadd.f32 %v925, %v863
      %v927 = vadd.f32 %v926, %v864
      %v928 = vadd.f32 %v927, %v865
      %v929 = vadd.f32 %v928, %v866
      %v930 = vadd.f32 %v929, %v867
      %v931 = vadd.f32 %v930, %v868
      %v932 = vadd.f32 %v931, %v869
      %v933 = vadd.f32 %v932, %v870
      %v934 = vadd.f32 %v933, %v871
      %v935 = vadd.f32 %v934, %v872
      %v936 = vadd.f32 %v935, %v873
      %v937 = vadd.f32 %v936, %v874
      %v938 = vadd.f32 %v937, %v875
      %v939 = vadd.f32 %v938, %v876
      %v940 = vadd.f32 %v939, %v877
      %v941 = vadd.f32 %v940, %v878
      %v942 = vadd.f32 %v941, %v879
      %v943 = vadd.f32 %v942, %v880
      %v944 = vadd.f32 %v943, %v881
      %v945 = vadd.f32 %v944, %v882
      %v946 = vadd.f32 %v945, %v883
      %v947 = vadd.f32 %v946, %v884
      %v948 = vadd.f32 %v947, %v885
      %v949 = vadd.f32 %v948, %v886
      %v950 = vadd.f32 %v949, %v887
      %v951 = vadd.f32 %v950, %v888
      %v952 = vadd.f32 %v951, %v889
      %v953 = vadd.f32 %v952, %v890
      %v954 = vadd.f32 %v953, %v891
      %v955 = vrot.slane %v954, 4
      %v956 = vadd.f32 %v954, %v955
      %v957 = vrot.slane %v956, 2
      %v958 = vadd.f32 %v956, %v957
      %v959 = vrot.slane %v958, 1
      %v960 = vadd.f32 %v958, %v959
      %v961 = vadd.f32 %v827, %v960
      %962 = vst [vmem:[%s4] sm:$0x1] %v961
      %s963 = smul.u32 64, %s16
      %p964 = scmp.lt.s32.totalorder %s963, 127
      %s965 = scalar_select %p964, %s963, 127
      %s966 = smul.addr %s965, 8
      %s967 = scalar_lea.vmem %s2, %s966
      // Predicated region
      $region33: #{discriminator_forward.8} parent=27 // pred_check
        %p968 = pneg %p81
      $region34: #{discriminator_forward.8} parent=27 // pred_check_branch
        %970 = sbr.rel (%p968) target = $region36
      $region35: #{discriminator_forward.8} parent=27 // pred_region
        %s971 = smul.u32 64, %s16
      $region36: #{discriminator_forward.8} parent=27 // pred_fallthru
        _
      // Predicated region
      $region37: #{discriminator_forward.8} parent=27 // pred_check
        %p972 = pneg %p102
      $region38: #{discriminator_forward.8} parent=27 // pred_check_branch
        %974 = sbr.rel (%p972) target = $region40
      $region39: #{discriminator_forward.8} parent=27 // pred_region
        _
      $region40: #{discriminator_forward.8} parent=27 // pred_fallthru
        _
      // Predicated region
      $region41: #{discriminator_forward.8} parent=27 // pred_check
        %p975 = pneg %p123
      $region42: #{discriminator_forward.8} parent=27 // pred_check_branch
        %977 = sbr.rel (%p975) target = $region44
      $region43: #{discriminator_forward.8} parent=27 // pred_region
        _
      $region44: #{discriminator_forward.8} parent=27 // pred_fallthru
        _
      // Predicated region
      $region45: #{discriminator_forward.8} parent=27 // pred_check
        %p978 = pneg %p102
      $region46: #{discriminator_forward.8} parent=27 // pred_check_branch
        %980 = sbr.rel (%p978) target = $region48
      $region47: #{discriminator_forward.8} parent=27 // pred_region
        _
      $region48: #{discriminator_forward.8} parent=27 // pred_fallthru
        _
      // Predicated region
      $region49: #{discriminator_forward.8} parent=27 // pred_check
        %p981 = pneg %p123
      $region50: #{discriminator_forward.8} parent=27 // pred_check_branch
        %983 = sbr.rel (%p981) target = $region52
      $region51: #{discriminator_forward.8} parent=27 // pred_region
        _
      $region52: #{discriminator_forward.8} parent=27 // pred_fallthru
        _
    $region28: #{discriminator_forward.8} parent=5 // pred_fallthru
      _
    %p984 = scmp.le.s32.totalorder 2, %s11
    // Predicated region
    $region53: #{discriminator_forward.8} parent=5 // pred_check
      %p985 = pneg %p984
    $region54: #{discriminator_forward.8} parent=5 // pred_check_branch
      %987 = sbr.rel (%p985) target = $region56
    $region55: #{discriminator_forward.8} parent=5 // pred_region
      %s988 = ssub.s32 %s11, 2
      // Predicated region
      $region57: #{discriminator_forward.8} parent=55 // pred_check
        %p989 = pneg %p87
      $region58: #{discriminator_forward.8} parent=55 // pred_check_branch
        %991 = sbr.rel (%p989) target = $region60
      $region59: #{discriminator_forward.8} parent=55 // pred_region
        %s992 = smul.u32 64, %s17
        %p993 = scmp.lt.s32.totalorder %s992, 127
        %s994 = scalar_select %p993, %s992, 127
        %s995 = smul.addr %s994, 8
        %s996 = scalar_lea.vmem %s2, %s995
      $region60: #{discriminator_forward.8} parent=55 // pred_fallthru
        _
    $region56: #{discriminator_forward.8} parent=5 // pred_fallthru
      _
  $region6: #{discriminator_forward.8} parent=0 // loop_footer
    %s15 = sadd.s32 1, %s11
  $region7: #{discriminator_forward.8} parent=0 // loop_footer_branch
    %10 = sbr.rel target = $region3
  $region8: #{discriminator_forward.8} parent=0 // loop_exit
    _

// kernel: discriminator_forward.9
$region0: #{discriminator_forward.9}
  #allocation0 [shape = 'u32[]', space=smem, size = 0x4, offset = 0x4, fixed_abs, tag = 'smem constant byte address 0x4 - core index']
  #allocation1 [shape = 'u32[72,128]{1,0:T(1,128)}', space=vmem, size = 0x9000, scoped, tag = 'internal scratch']
  %s0 = inlined_call_operand.vmem [shape: f32[1024,128], index: 0, kind: input, shape index: {}]
  %s1 = inlined_call_operand.vmem [shape: f32[1,128], index: 1, kind: input, shape index: {}]
  %s2 = inlined_call_operand.vmem [shape: f32[1,128], index: 2, kind: input, shape index: {}]
  %s3 = inlined_call_operand.vmem [shape: bf16[1024,128], index: 3, kind: output, shape index: {}]
  %s4 = sld [smem:[#allocation0]]
  $region45: #{discriminator_forward.9} parent=0
    _
  %s6 = ssub.s32 1, %s4
  %s7 = scalar_select 0, %s6, %s4
  loop: start=0, step=1, limit=4
  $region2: #{discriminator_forward.9} parent=0 // loop_pre_header
    _
  $region3: #{discriminator_forward.9} parent=0 // loop_header
    %s9 = sphi 0, %s13
    %p10 = scmp.ge.s32.totalorder %s9, 4
    %s19 = sphi 0, %s21
    %s22 = sphi 0, %s19
    %s23 = sphi 0, %s22
    %s39 = sphi 0, %s23
    %s43 = sphi 0, %s43
    %s45 = sphi 0, %s43
    %s46 = sphi 0, %s45
    %s60 = sphi 0, %s46
    %s64 = sphi 0, %s64
    %s66 = sphi 0, %s64
    %s67 = sphi 0, %s66
    %s81 = sphi 0, %s67
    %s87 = sphi 0, %s89
    %s90 = sphi 0, %s87
    %s91 = sphi 0, %s90
    %s107 = sphi 0, %s91
  $region4: #{discriminator_forward.9} parent=0 // loop_header_branch
    %12 = sbr.rel (%p10) target = $region8
  $region5: #{discriminator_forward.9} parent=0 // loop_body
    %s14 = ssub.s32 %s9, 1
    %s15 = ssub.s32 %s9, 2
    %s16 = sadd.s32 %s9, 1
    %s17 = ssub.s32 %s9, %s16
    %p18 = scmp.eq.s32.totalorder %s17, 0
    %s20 = sadd.s32 %s19, 1
    %s21 = scalar_select %p18, %s19, %s20
    %p24 = pneg %p18
    %p25 = scmp.eq.s32.totalorder %s9, 1
    %p26 = por %p24, %p25
    %p27 = scmp.ne.s32.totalorder %s19, %s22
    %p28 = scmp.eq.s32.totalorder %s9, 0
    %p29 = por %p27, %p28
    %p30 = scmp.ne.s32.totalorder %s19, %s22
    %p31 = scmp.eq.s32.totalorder %s14, 1
    %p32 = por %p30, %p31
    %p33 = scmp.ne.s32.totalorder %s22, %s23
    %p34 = scmp.eq.s32.totalorder %s14, 0
    %p35 = por %p33, %p34
    %p36 = scmp.ne.s32.totalorder %s22, %s23
    %p37 = scmp.eq.s32.totalorder %s15, 1
    %p38 = por %p36, %p37
    %p40 = scmp.ne.s32.totalorder %s23, %s39
    %p41 = scmp.eq.s32.totalorder %s15, 0
    %p42 = por %p40, %p41
    %s44 = sadd.s32 %s43, 1
    %p47 = scmp.eq.s32.totalorder %s9, 1
    %p48 = scmp.ne.s32.totalorder %s43, %s45
    %p49 = scmp.eq.s32.totalorder %s9, 0
    %p50 = por %p48, %p49
    %p51 = scmp.ne.s32.totalorder %s43, %s45
    %p52 = scmp.eq.s32.totalorder %s14, 1
    %p53 = por %p51, %p52
    %p54 = scmp.ne.s32.totalorder %s45, %s46
    %p55 = scmp.eq.s32.totalorder %s14, 0
    %p56 = por %p54, %p55
    %p57 = scmp.ne.s32.totalorder %s45, %s46
    %p58 = scmp.eq.s32.totalorder %s15, 1
    %p59 = por %p57, %p58
    %p61 = scmp.ne.s32.totalorder %s46, %s60
    %p62 = scmp.eq.s32.totalorder %s15, 0
    %p63 = por %p61, %p62
    %s65 = sadd.s32 %s64, 1
    %p68 = scmp.eq.s32.totalorder %s9, 1
    %p69 = scmp.ne.s32.totalorder %s64, %s66
    %p70 = scmp.eq.s32.totalorder %s9, 0
    %p71 = por %p69, %p70
    %p72 = scmp.ne.s32.totalorder %s64, %s66
    %p73 = scmp.eq.s32.totalorder %s14, 1
    %p74 = por %p72, %p73
    %p75 = scmp.ne.s32.totalorder %s66, %s67
    %p76 = scmp.eq.s32.totalorder %s14, 0
    %p77 = por %p75, %p76
    %p78 = scmp.ne.s32.totalorder %s66, %s67
    %p79 = scmp.eq.s32.totalorder %s15, 1
    %p80 = por %p78, %p79
    %p82 = scmp.ne.s32.totalorder %s67, %s81
    %p83 = scmp.eq.s32.totalorder %s15, 0
    %p84 = por %p82, %p83
    %s85 = ssub.s32 %s9, %s16
    %p86 = scmp.eq.s32.totalorder %s85, 0
    %s88 = sadd.s32 %s87, 1
    %s89 = scalar_select %p86, %s87, %s88
    %p92 = pneg %p86
    %p93 = scmp.eq.s32.totalorder %s9, 1
    %p94 = por %p92, %p93
    %p95 = scmp.ne.s32.totalorder %s87, %s90
    %p96 = scmp.eq.s32.totalorder %s9, 0
    %p97 = por %p95, %p96
    %p98 = scmp.ne.s32.totalorder %s87, %s90
    %p99 = scmp.eq.s32.totalorder %s14, 1
    %p100 = por %p98, %p99
    %p101 = scmp.ne.s32.totalorder %s90, %s91
    %p102 = scmp.eq.s32.totalorder %s14, 0
    %p103 = por %p101, %p102
    %p104 = scmp.ne.s32.totalorder %s90, %s91
    %p105 = scmp.eq.s32.totalorder %s15, 1
    %p106 = por %p104, %p105
    %p108 = scmp.ne.s32.totalorder %s91, %s107
    %p109 = scmp.eq.s32.totalorder %s15, 0
    %p110 = por %p108, %p109
    %p111 = scmp.le.s32.totalorder 1, %s9
    %p112 = scmp.lt.s32.totalorder %s9, 3
    %p113 = pnand %p111, %p112
    %p114 = pneg %p113
    // Predicated region
    $region9: #{discriminator_forward.9} parent=5 // pred_check
      _
    $region10: #{discriminator_forward.9} parent=5 // pred_check_branch
      %116 = sbr.rel (%p113) target = $region12
    $region11: #{discriminator_forward.9} parent=5 // pred_region
      %s117 = ssub.s32 %s9, 1
      // Predicated region
      $region13: #{discriminator_forward.9} parent=11 // pred_check
        %p118 = pneg %p56
      $region14: #{discriminator_forward.9} parent=11 // pred_check_branch
        %120 = sbr.rel (%p118) target = $region16
      $region15: #{discriminator_forward.9} parent=11 // pred_region
        _
      $region16: #{discriminator_forward.9} parent=11 // pred_fallthru
        _
      // Predicated region
      $region17: #{discriminator_forward.9} parent=11 // pred_check
        %p121 = pneg %p77
      $region18: #{discriminator_forward.9} parent=11 // pred_check_branch
        %123 = sbr.rel (%p121) target = $region20
      $region19: #{discriminator_forward.9} parent=11 // pred_region
        _
      $region20: #{discriminator_forward.9} parent=11 // pred_fallthru
        _
    $region12: #{discriminator_forward.9} parent=5 // pred_fallthru
      _
    %p124 = scmp.lt.s32.totalorder %s9, 2
    // Predicated region
    $region21: #{discriminator_forward.9} parent=5 // pred_check
      %p125 = pneg %p124
    $region22: #{discriminator_forward.9} parent=5 // pred_check_branch
      %127 = sbr.rel (%p125) target = $region24
    $region23: #{discriminator_forward.9} parent=5 // pred_region
      // Predicated region
      $region25: #{discriminator_forward.9} parent=23 // pred_check
        %p128 = pneg %p29
      $region26: #{discriminator_forward.9} parent=23 // pred_check_branch
        %130 = sbr.rel (%p128) target = $region28
      $region27: #{discriminator_forward.9} parent=23 // pred_region
        %s131 = smul.u32 64, %s9
        %p132 = scmp.lt.s32.totalorder %s131, 127
        %s133 = scalar_select %p132, %s131, 127
        %s134 = smul.addr %s133, 8
        %s135 = scalar_lea.vmem %s0, %s134
        %s136 = smul.u32 64, %s9
      $region28: #{discriminator_forward.9} parent=23 // pred_fallthru
        _
    $region24: #{discriminator_forward.9} parent=5 // pred_fallthru
      _
    %p137 = scmp.le.s32.totalorder 1, %s9
    %p138 = scmp.lt.s32.totalorder %s9, 3
    %p139 = pnand %p137, %p138
    %p140 = pneg %p139
    // Predicated region
    $region29: #{discriminator_forward.9} parent=5 // pred_check
      _
    $region30: #{discriminator_forward.9} parent=5 // pred_check_branch
      %142 = sbr.rel (%p139) target = $region32
    $region31: #{discriminator_forward.9} parent=5 // pred_region
      %s143 = ssub.s32 %s9, 1
      %s144 = smul.u32 64, %s14
      %p145 = scmp.lt.s32.totalorder %s144, 127
      %s146 = scalar_select %p145, %s144, 127
      %s147 = smul.addr %s146, 8
      %s148 = scalar_lea.vmem %s0, %s147
      %p149 = pneg %p35
      %p150 = pneg %p32
      %p151 = pneg %p56
      %p152 = pneg %p53
      %p153 = pneg %p77
      %p154 = pneg %p74
      %p155 = pneg %p103
      %p156 = pneg %p100
      %s157 = smul.u32 64, %s14
      %p158 = scmp.lt.s32.totalorder %s157, 127
      %s159 = scalar_select %p158, %s157, 127
      %s160 = smul.addr %s159, 4
      %s161 = scalar_lea.vmem %s3, %s160
      %s162 = smul.u32 64, %s14
      %p163 = scmp.lt.s32.totalorder %s162, 127
      %s164 = scalar_select %p163, %s162, 127
      %s165 = smul.addr %s164, 8
      %s166 = scalar_lea.vmem %s0, %s165
      %s167 = smul.u32 64, %s14
      %s168 = smul.u32 64, %s14
      %p169 = scmp.lt.s32.totalorder %s168, 127
      %s170 = scalar_select %p169, %s168, 127
      %s171 = smul.addr %s170, 4
      %s172 = scalar_lea.vmem %s3, %s171
      %s173 = smul.u32 64, %s14
      %v174 = vld [vmem:[%s166] sm:$0xff]
      %v175 = vld [vmem:[%s166 + $0x8] sm:$0xff]
      %v176 = vld [vmem:[%s166 + $0x10] sm:$0xff]
      %v177 = vld [vmem:[%s166 + $0x18] sm:$0xff]
      %v178 = vld [vmem:[%s166 + $0x20] sm:$0xff]
      %v179 = vld [vmem:[%s166 + $0x28] sm:$0xff]
      %v180 = vld [vmem:[%s166 + $0x30] sm:$0xff]
      %v181 = vld [vmem:[%s166 + $0x38] sm:$0xff]
      %v182 = vld [vmem:[%s166 + $0x40] sm:$0xff]
      %v183 = vld [vmem:[%s166 + $0x48] sm:$0xff]
      %v184 = vld [vmem:[%s166 + $0x50] sm:$0xff]
      %v185 = vld [vmem:[%s166 + $0x58] sm:$0xff]
      %v186 = vld [vmem:[%s166 + $0x60] sm:$0xff]
      %v187 = vld [vmem:[%s166 + $0x68] sm:$0xff]
      %v188 = vld [vmem:[%s166 + $0x70] sm:$0xff]
      %v189 = vld [vmem:[%s166 + $0x78] sm:$0xff]
      %v190 = vld [vmem:[%s166 + $0x80] sm:$0xff]
      %v191 = vld [vmem:[%s166 + $0x88] sm:$0xff]
      %v192 = vld [vmem:[%s166 + $0x90] sm:$0xff]
      %v193 = vld [vmem:[%s166 + $0x98] sm:$0xff]
      %v194 = vld [vmem:[%s166 + $0xa0] sm:$0xff]
      %v195 = vld [vmem:[%s166 + $0xa8] sm:$0xff]
      %v196 = vld [vmem:[%s166 + $0xb0] sm:$0xff]
      %v197 = vld [vmem:[%s166 + $0xb8] sm:$0xff]
      %v198 = vld [vmem:[%s166 + $0xc0] sm:$0xff]
      %v199 = vld [vmem:[%s166 + $0xc8] sm:$0xff]
      %v200 = vld [vmem:[%s166 + $0xd0] sm:$0xff]
      %v201 = vld [vmem:[%s166 + $0xd8] sm:$0xff]
      %v202 = vld [vmem:[%s166 + $0xe0] sm:$0xff]
      %v203 = vld [vmem:[%s166 + $0xe8] sm:$0xff]
      %v204 = vld [vmem:[%s166 + $0xf0] sm:$0xff]
      %v205 = vld [vmem:[%s166 + $0xf8] sm:$0xff]
      %v206 = vld [vmem:[%s166 + $0x100] sm:$0xff]
      %v207 = vld [vmem:[%s166 + $0x108] sm:$0xff]
      %v208 = vld [vmem:[%s166 + $0x110] sm:$0xff]
      %v209 = vld [vmem:[%s166 + $0x118] sm:$0xff]
      %v210 = vld [vmem:[%s166 + $0x120] sm:$0xff]
      %v211 = vld [vmem:[%s166 + $0x128] sm:$0xff]
      %v212 = vld [vmem:[%s166 + $0x130] sm:$0xff]
      %v213 = vld [vmem:[%s166 + $0x138] sm:$0xff]
      %v214 = vld [vmem:[%s166 + $0x140] sm:$0xff]
      %v215 = vld [vmem:[%s166 + $0x148] sm:$0xff]
      %v216 = vld [vmem:[%s166 + $0x150] sm:$0xff]
      %v217 = vld [vmem:[%s166 + $0x158] sm:$0xff]
      %v218 = vld [vmem:[%s166 + $0x160] sm:$0xff]
      %v219 = vld [vmem:[%s166 + $0x168] sm:$0xff]
      %v220 = vld [vmem:[%s166 + $0x170] sm:$0xff]
      %v221 = vld [vmem:[%s166 + $0x178] sm:$0xff]
      %v222 = vld [vmem:[%s166 + $0x180] sm:$0xff]
      %v223 = vld [vmem:[%s166 + $0x188] sm:$0xff]
      %v224 = vld [vmem:[%s166 + $0x190] sm:$0xff]
      %v225 = vld [vmem:[%s166 + $0x198] sm:$0xff]
      %v226 = vld [vmem:[%s166 + $0x1a0] sm:$0xff]
      %v227 = vld [vmem:[%s166 + $0x1a8] sm:$0xff]
      %v228 = vld [vmem:[%s166 + $0x1b0] sm:$0xff]
      %v229 = vld [vmem:[%s166 + $0x1b8] sm:$0xff]
      %v230 = vld [vmem:[%s166 + $0x1c0] sm:$0xff]
      %v231 = vld [vmem:[%s166 + $0x1c8] sm:$0xff]
      %v232 = vld [vmem:[%s166 + $0x1d0] sm:$0xff]
      %v233 = vld [vmem:[%s166 + $0x1d8] sm:$0xff]
      %v234 = vld [vmem:[%s166 + $0x1e0] sm:$0xff]
      %v235 = vld [vmem:[%s166 + $0x1e8] sm:$0xff]
      %v236 = vld [vmem:[%s166 + $0x1f0] sm:$0xff]
      %v237 = vld [vmem:[%s166 + $0x1f8] sm:$0xff]
      %v238 = vld [vmem:[%s1] sm:$0x1]
      %v240 = vperm.slane %v238, 0
      %v242 = vmul.f32 %v174, %v240
      %v243 = vmul.f32 %v175, %v240
      %v244 = vmul.f32 %v176, %v240
      %v245 = vmul.f32 %v177, %v240
      %v246 = vmul.f32 %v178, %v240
      %v247 = vmul.f32 %v179, %v240
      %v248 = vmul.f32 %v180, %v240
      %v249 = vmul.f32 %v181, %v240
      %v250 = vmul.f32 %v182, %v240
      %v251 = vmul.f32 %v183, %v240
      %v252 = vmul.f32 %v184, %v240
      %v253 = vmul.f32 %v185, %v240
      %v254 = vmul.f32 %v186, %v240
      %v255 = vmul.f32 %v187, %v240
      %v256 = vmul.f32 %v188, %v240
      %v257 = vmul.f32 %v189, %v240
      %v258 = vmul.f32 %v190, %v240
      %v259 = vmul.f32 %v191, %v240
      %v260 = vmul.f32 %v192, %v240
      %v261 = vmul.f32 %v193, %v240
      %v262 = vmul.f32 %v194, %v240
      %v263 = vmul.f32 %v195, %v240
      %v264 = vmul.f32 %v196, %v240
      %v265 = vmul.f32 %v197, %v240
      %v266 = vmul.f32 %v198, %v240
      %v267 = vmul.f32 %v199, %v240
      %v268 = vmul.f32 %v200, %v240
      %v269 = vmul.f32 %v201, %v240
      %v270 = vmul.f32 %v202, %v240
      %v271 = vmul.f32 %v203, %v240
      %v272 = vmul.f32 %v204, %v240
      %v273 = vmul.f32 %v205, %v240
      %v274 = vmul.f32 %v206, %v240
      %v275 = vmul.f32 %v207, %v240
      %v276 = vmul.f32 %v208, %v240
      %v277 = vmul.f32 %v209, %v240
      %v278 = vmul.f32 %v210, %v240
      %v279 = vmul.f32 %v211, %v240
      %v280 = vmul.f32 %v212, %v240
      %v281 = vmul.f32 %v213, %v240
      %v282 = vmul.f32 %v214, %v240
      %v283 = vmul.f32 %v215, %v240
      %v284 = vmul.f32 %v216, %v240
      %v285 = vmul.f32 %v217, %v240
      %v286 = vmul.f32 %v218, %v240
      %v287 = vmul.f32 %v219, %v240
      %v288 = vmul.f32 %v220, %v240
      %v289 = vmul.f32 %v221, %v240
      %v290 = vmul.f32 %v222, %v240
      %v291 = vmul.f32 %v223, %v240
      %v292 = vmul.f32 %v224, %v240
      %v293 = vmul.f32 %v225, %v240
      %v294 = vmul.f32 %v226, %v240
      %v295 = vmul.f32 %v227, %v240
      %v296 = vmul.f32 %v228, %v240
      %v297 = vmul.f32 %v229, %v240
      %v298 = vmul.f32 %v230, %v240
      %v299 = vmul.f32 %v231, %v240
      %v300 = vmul.f32 %v232, %v240
      %v301 = vmul.f32 %v233, %v240
      %v302 = vmul.f32 %v234, %v240
      %v303 = vmul.f32 %v235, %v240
      %v304 = vmul.f32 %v236, %v240
      %v305 = vmul.f32 %v237, %v240
      %v306 = vld [vmem:[%s2] sm:$0x1]
      %v308 = vperm.slane %v306, 0
      %v310 = vadd.f32 %v242, %v308
      %v311 = vadd.f32 %v243, %v308
      %v312 = vadd.f32 %v244, %v308
      %v313 = vadd.f32 %v245, %v308
      %v314 = vadd.f32 %v246, %v308
      %v315 = vadd.f32 %v247, %v308
      %v316 = vadd.f32 %v248, %v308
      %v317 = vadd.f32 %v249, %v308
      %v318 = vadd.f32 %v250, %v308
      %v319 = vadd.f32 %v251, %v308
      %v320 = vadd.f32 %v252, %v308
      %v321 = vadd.f32 %v253, %v308
      %v322 = vadd.f32 %v254, %v308
      %v323 = vadd.f32 %v255, %v308
      %v324 = vadd.f32 %v256, %v308
      %v325 = vadd.f32 %v257, %v308
      %v326 = vadd.f32 %v258, %v308
      %v327 = vadd.f32 %v259, %v308
      %v328 = vadd.f32 %v260, %v308
      %v329 = vadd.f32 %v261, %v308
      %v330 = vadd.f32 %v262, %v308
      %v331 = vadd.f32 %v263, %v308
      %v332 = vadd.f32 %v264, %v308
      %v333 = vadd.f32 %v265, %v308
      %v334 = vadd.f32 %v266, %v308
      %v335 = vadd.f32 %v267, %v308
      %v336 = vadd.f32 %v268, %v308
      %v337 = vadd.f32 %v269, %v308
      %v338 = vadd.f32 %v270, %v308
      %v339 = vadd.f32 %v271, %v308
      %v340 = vadd.f32 %v272, %v308
      %v341 = vadd.f32 %v273, %v308
      %v342 = vadd.f32 %v274, %v308
      %v343 = vadd.f32 %v275, %v308
      %v344 = vadd.f32 %v276, %v308
      %v345 = vadd.f32 %v277, %v308
      %v346 = vadd.f32 %v278, %v308
      %v347 = vadd.f32 %v279, %v308
      %v348 = vadd.f32 %v280, %v308
      %v349 = vadd.f32 %v281, %v308
      %v350 = vadd.f32 %v282, %v308
      %v351 = vadd.f32 %v283, %v308
      %v352 = vadd.f32 %v284, %v308
      %v353 = vadd.f32 %v285, %v308
      %v354 = vadd.f32 %v286, %v308
      %v355 = vadd.f32 %v287, %v308
      %v356 = vadd.f32 %v288, %v308
      %v357 = vadd.f32 %v289, %v308
      %v358 = vadd.f32 %v290, %v308
      %v359 = vadd.f32 %v291, %v308
      %v360 = vadd.f32 %v292, %v308
      %v361 = vadd.f32 %v293, %v308
      %v362 = vadd.f32 %v294, %v308
      %v363 = vadd.f32 %v295, %v308
      %v364 = vadd.f32 %v296, %v308
      %v365 = vadd.f32 %v297, %v308
      %v366 = vadd.f32 %v298, %v308
      %v367 = vadd.f32 %v299, %v308
      %v368 = vadd.f32 %v300, %v308
      %v369 = vadd.f32 %v301, %v308
      %v370 = vadd.f32 %v302, %v308
      %v371 = vadd.f32 %v303, %v308
      %v372 = vadd.f32 %v304, %v308
      %v373 = vadd.f32 %v305, %v308
      %v374 = vmul.f32 %v310, 0.2
      %v375 = vmul.f32 %v311, 0.2
      %v376 = vmul.f32 %v312, 0.2
      %v377 = vmul.f32 %v313, 0.2
      %v378 = vmul.f32 %v314, 0.2
      %v379 = vmul.f32 %v315, 0.2
      %v380 = vmul.f32 %v316, 0.2
      %v381 = vmul.f32 %v317, 0.2
      %v382 = vmul.f32 %v318, 0.2
      %v383 = vmul.f32 %v319, 0.2
      %v384 = vmul.f32 %v320, 0.2
      %v385 = vmul.f32 %v321, 0.2
      %v386 = vmul.f32 %v322, 0.2
      %v387 = vmul.f32 %v323, 0.2
      %v388 = vmul.f32 %v324, 0.2
      %v389 = vmul.f32 %v325, 0.2
      %v390 = vmul.f32 %v326, 0.2
      %v391 = vmul.f32 %v327, 0.2
      %v392 = vmul.f32 %v328, 0.2
      %v393 = vmul.f32 %v329, 0.2
      %v394 = vmul.f32 %v330, 0.2
      %v395 = vmul.f32 %v331, 0.2
      %v396 = vmul.f32 %v332, 0.2
      %v397 = vmul.f32 %v333, 0.2
      %v398 = vmul.f32 %v334, 0.2
      %v399 = vmul.f32 %v335, 0.2
      %v400 = vmul.f32 %v336, 0.2
      %v401 = vmul.f32 %v337, 0.2
      %v402 = vmul.f32 %v338, 0.2
      %v403 = vmul.f32 %v339, 0.2
      %v404 = vmul.f32 %v340, 0.2
      %v405 = vmul.f32 %v341, 0.2
      %v406 = vmul.f32 %v342, 0.2
      %v407 = vmul.f32 %v343, 0.2
      %v408 = vmul.f32 %v344, 0.2
      %v409 = vmul.f32 %v345, 0.2
      %v410 = vmul.f32 %v346, 0.2
      %v411 = vmul.f32 %v347, 0.2
      %v412 = vmul.f32 %v348, 0.2
      %v413 = vmul.f32 %v349, 0.2
      %v414 = vmul.f32 %v350, 0.2
      %v415 = vmul.f32 %v351, 0.2
      %v416 = vmul.f32 %v352, 0.2
      %v417 = vmul.f32 %v353, 0.2
      %v418 = vmul.f32 %v354, 0.2
      %v419 = vmul.f32 %v355, 0.2
      %v420 = vmul.f32 %v356, 0.2
      %v421 = vmul.f32 %v357, 0.2
      %v422 = vmul.f32 %v358, 0.2
      %v423 = vmul.f32 %v359, 0.2
      %v424 = vmul.f32 %v360, 0.2
      %v425 = vmul.f32 %v361, 0.2
      %v426 = vmul.f32 %v362, 0.2
      %v427 = vmul.f32 %v363, 0.2
      %v428 = vmul.f32 %v364, 0.2
      %v429 = vmul.f32 %v365, 0.2
      %v430 = vmul.f32 %v366, 0.2
      %v431 = vmul.f32 %v367, 0.2
      %v432 = vmul.f32 %v368, 0.2
      %v433 = vmul.f32 %v369, 0.2
      %v434 = vmul.f32 %v370, 0.2
      %v435 = vmul.f32 %v371, 0.2
      %v436 = vmul.f32 %v372, 0.2
      %v437 = vmul.f32 %v373, 0.2
      %v438 = vmax.f32 %v310, %v374
      %v439 = vmax.f32 %v311, %v375
      %v440 = vmax.f32 %v312, %v376
      %v441 = vmax.f32 %v313, %v377
      %v442 = vmax.f32 %v314, %v378
      %v443 = vmax.f32 %v315, %v379
      %v444 = vmax.f32 %v316, %v380
      %v445 = vmax.f32 %v317, %v381
      %v446 = vmax.f32 %v318, %v382
      %v447 = vmax.f32 %v319, %v383
      %v448 = vmax.f32 %v320, %v384
      %v449 = vmax.f32 %v321, %v385
      %v450 = vmax.f32 %v322, %v386
      %v451 = vmax.f32 %v323, %v387
      %v452 = vmax.f32 %v324, %v388
      %v453 = vmax.f32 %v325, %v389
      %v454 = vmax.f32 %v326, %v390
      %v455 = vmax.f32 %v327, %v391
      %v456 = vmax.f32 %v328, %v392
      %v457 = vmax.f32 %v329, %v393
      %v458 = vmax.f32 %v330, %v394
      %v459 = vmax.f32 %v331, %v395
      %v460 = vmax.f32 %v332, %v396
      %v461 = vmax.f32 %v333, %v397
      %v462 = vmax.f32 %v334, %v398
      %v463 = vmax.f32 %v335, %v399
      %v464 = vmax.f32 %v336, %v400
      %v465 = vmax.f32 %v337, %v401
      %v466 = vmax.f32 %v338, %v402
      %v467 = vmax.f32 %v339, %v403
      %v468 = vmax.f32 %v340, %v404
      %v469 = vmax.f32 %v341, %v405
      %v470 = vmax.f32 %v342, %v406
      %v471 = vmax.f32 %v343, %v407
      %v472 = vmax.f32 %v344, %v408
      %v473 = vmax.f32 %v345, %v409
      %v474 = vmax.f32 %v346, %v410
      %v475 = vmax.f32 %v347, %v411
      %v476 = vmax.f32 %v348, %v412
      %v477 = vmax.f32 %v349, %v413
      %v478 = vmax.f32 %v350, %v414
      %v479 = vmax.f32 %v351, %v415
      %v480 = vmax.f32 %v352, %v416
      %v481 = vmax.f32 %v353, %v417
      %v482 = vmax.f32 %v354, %v418
      %v483 = vmax.f32 %v355, %v419
      %v484 = vmax.f32 %v356, %v420
      %v485 = vmax.f32 %v357, %v421
      %v486 = vmax.f32 %v358, %v422
      %v487 = vmax.f32 %v359, %v423
      %v488 = vmax.f32 %v360, %v424
      %v489 = vmax.f32 %v361, %v425
      %v490 = vmax.f32 %v362, %v426
      %v491 = vmax.f32 %v363, %v427
      %v492 = vmax.f32 %v364, %v428
      %v493 = vmax.f32 %v365, %v429
      %v494 = vmax.f32 %v366, %v430
      %v495 = vmax.f32 %v367, %v431
      %v496 = vmax.f32 %v368, %v432
      %v497 = vmax.f32 %v369, %v433
      %v498 = vmax.f32 %v370, %v434
      %v499 = vmax.f32 %v371, %v435
      %v500 = vmax.f32 %v372, %v436
      %v501 = vmax.f32 %v373, %v437
      %v502 = vpack.c.bf16 %v438, %v438
      %v503 = vpack.c.bf16 %v439, %v439
      %v504 = vpack.c.bf16 %v440, %v440
      %v505 = vpack.c.bf16 %v441, %v441
      %v506 = vpack.c.bf16 %v442, %v442
      %v507 = vpack.c.bf16 %v443, %v443
      %v508 = vpack.c.bf16 %v444, %v444
      %v509 = vpack.c.bf16 %v445, %v445
      %v510 = vpack.c.bf16 %v446, %v446
      %v511 = vpack.c.bf16 %v447, %v447
      %v512 = vpack.c.bf16 %v448, %v448
      %v513 = vpack.c.bf16 %v449, %v449
      %v514 = vpack.c.bf16 %v450, %v450
      %v515 = vpack.c.bf16 %v451, %v451
      %v516 = vpack.c.bf16 %v452, %v452
      %v517 = vpack.c.bf16 %v453, %v453
      %v518 = vpack.c.bf16 %v454, %v454
      %v519 = vpack.c.bf16 %v455, %v455
      %v520 = vpack.c.bf16 %v456, %v456
      %v521 = vpack.c.bf16 %v457, %v457
      %v522 = vpack.c.bf16 %v458, %v458
      %v523 = vpack.c.bf16 %v459, %v459
      %v524 = vpack.c.bf16 %v460, %v460
      %v525 = vpack.c.bf16 %v461, %v461
      %v526 = vpack.c.bf16 %v462, %v462
      %v527 = vpack.c.bf16 %v463, %v463
      %v528 = vpack.c.bf16 %v464, %v464
      %v529 = vpack.c.bf16 %v465, %v465
      %v530 = vpack.c.bf16 %v466, %v466
      %v531 = vpack.c.bf16 %v467, %v467
      %v532 = vpack.c.bf16 %v468, %v468
      %v533 = vpack.c.bf16 %v469, %v469
      %v534 = vpack.c.bf16 %v470, %v470
      %v535 = vpack.c.bf16 %v471, %v471
      %v536 = vpack.c.bf16 %v472, %v472
      %v537 = vpack.c.bf16 %v473, %v473
      %v538 = vpack.c.bf16 %v474, %v474
      %v539 = vpack.c.bf16 %v475, %v475
      %v540 = vpack.c.bf16 %v476, %v476
      %v541 = vpack.c.bf16 %v477, %v477
      %v542 = vpack.c.bf16 %v478, %v478
      %v543 = vpack.c.bf16 %v479, %v479
      %v544 = vpack.c.bf16 %v480, %v480
      %v545 = vpack.c.bf16 %v481, %v481
      %v546 = vpack.c.bf16 %v482, %v482
      %v547 = vpack.c.bf16 %v483, %v483
      %v548 = vpack.c.bf16 %v484, %v484
      %v549 = vpack.c.bf16 %v485, %v485
      %v550 = vpack.c.bf16 %v486, %v486
      %v551 = vpack.c.bf16 %v487, %v487
      %v552 = vpack.c.bf16 %v488, %v488
      %v553 = vpack.c.bf16 %v489, %v489
      %v554 = vpack.c.bf16 %v490, %v490
      %v555 = vpack.c.bf16 %v491, %v491
      %v556 = vpack.c.bf16 %v492, %v492
      %v557 = vpack.c.bf16 %v493, %v493
      %v558 = vpack.c.bf16 %v494, %v494
      %v559 = vpack.c.bf16 %v495, %v495
      %v560 = vpack.c.bf16 %v496, %v496
      %v561 = vpack.c.bf16 %v497, %v497
      %v562 = vpack.c.bf16 %v498, %v498
      %v563 = vpack.c.bf16 %v499, %v499
      %v564 = vpack.c.bf16 %v500, %v500
      %v565 = vpack.c.bf16 %v501, %v501
      %566 = vst [vmem:[%s172] sm:$0xf] %v502
      %567 = vst [vmem:[%s172 + $0x4] sm:$0xf] %v503
      %568 = vst [vmem:[%s172 + $0x8] sm:$0xf] %v504
      %569 = vst [vmem:[%s172 + $0xc] sm:$0xf] %v505
      %570 = vst [vmem:[%s172 + $0x10] sm:$0xf] %v506
      %571 = vst [vmem:[%s172 + $0x14] sm:$0xf] %v507
      %572 = vst [vmem:[%s172 + $0x18] sm:$0xf] %v508
      %573 = vst [vmem:[%s172 + $0x1c] sm:$0xf] %v509
      %574 = vst [vmem:[%s172 + $0x20] sm:$0xf] %v510
      %575 = vst [vmem:[%s172 + $0x24] sm:$0xf] %v511
      %576 = vst [vmem:[%s172 + $0x28] sm:$0xf] %v512
      %577 = vst [vmem:[%s172 + $0x2c] sm:$0xf] %v513
      %578 = vst [vmem:[%s172 + $0x30] sm:$0xf] %v514
      %579 = vst [vmem:[%s172 + $0x34] sm:$0xf] %v515
      %580 = vst [vmem:[%s172 + $0x38] sm:$0xf] %v516
      %581 = vst [vmem:[%s172 + $0x3c] sm:$0xf] %v517
      %582 = vst [vmem:[%s172 + $0x40] sm:$0xf] %v518
      %583 = vst [vmem:[%s172 + $0x44] sm:$0xf] %v519
      %584 = vst [vmem:[%s172 + $0x48] sm:$0xf] %v520
      %585 = vst [vmem:[%s172 + $0x4c] sm:$0xf] %v521
      %586 = vst [vmem:[%s172 + $0x50] sm:$0xf] %v522
      %587 = vst [vmem:[%s172 + $0x54] sm:$0xf] %v523
      %588 = vst [vmem:[%s172 + $0x58] sm:$0xf] %v524
      %589 = vst [vmem:[%s172 + $0x5c] sm:$0xf] %v525
      %590 = vst [vmem:[%s172 + $0x60] sm:$0xf] %v526
      %591 = vst [vmem:[%s172 + $0x64] sm:$0xf] %v527
      %592 = vst [vmem:[%s172 + $0x68] sm:$0xf] %v528
      %593 = vst [vmem:[%s172 + $0x6c] sm:$0xf] %v529
      %594 = vst [vmem:[%s172 + $0x70] sm:$0xf] %v530
      %595 = vst [vmem:[%s172 + $0x74] sm:$0xf] %v531
      %596 = vst [vmem:[%s172 + $0x78] sm:$0xf] %v532
      %597 = vst [vmem:[%s172 + $0x7c] sm:$0xf] %v533
      %598 = vst [vmem:[%s172 + $0x80] sm:$0xf] %v534
      %599 = vst [vmem:[%s172 + $0x84] sm:$0xf] %v535
      %600 = vst [vmem:[%s172 + $0x88] sm:$0xf] %v536
      %601 = vst [vmem:[%s172 + $0x8c] sm:$0xf] %v537
      %602 = vst [vmem:[%s172 + $0x90] sm:$0xf] %v538
      %603 = vst [vmem:[%s172 + $0x94] sm:$0xf] %v539
      %604 = vst [vmem:[%s172 + $0x98] sm:$0xf] %v540
      %605 = vst [vmem:[%s172 + $0x9c] sm:$0xf] %v541
      %606 = vst [vmem:[%s172 + $0xa0] sm:$0xf] %v542
      %607 = vst [vmem:[%s172 + $0xa4] sm:$0xf] %v543
      %608 = vst [vmem:[%s172 + $0xa8] sm:$0xf] %v544
      %609 = vst [vmem:[%s172 + $0xac] sm:$0xf] %v545
      %610 = vst [vmem:[%s172 + $0xb0] sm:$0xf] %v546
      %611 = vst [vmem:[%s172 + $0xb4] sm:$0xf] %v547
      %612 = vst [vmem:[%s172 + $0xb8] sm:$0xf] %v548
      %613 = vst [vmem:[%s172 + $0xbc] sm:$0xf] %v549
      %614 = vst [vmem:[%s172 + $0xc0] sm:$0xf] %v550
      %615 = vst [vmem:[%s172 + $0xc4] sm:$0xf] %v551
      %616 = vst [vmem:[%s172 + $0xc8] sm:$0xf] %v552
      %617 = vst [vmem:[%s172 + $0xcc] sm:$0xf] %v553
      %618 = vst [vmem:[%s172 + $0xd0] sm:$0xf] %v554
      %619 = vst [vmem:[%s172 + $0xd4] sm:$0xf] %v555
      %620 = vst [vmem:[%s172 + $0xd8] sm:$0xf] %v556
      %621 = vst [vmem:[%s172 + $0xdc] sm:$0xf] %v557
      %622 = vst [vmem:[%s172 + $0xe0] sm:$0xf] %v558
      %623 = vst [vmem:[%s172 + $0xe4] sm:$0xf] %v559
      %624 = vst [vmem:[%s172 + $0xe8] sm:$0xf] %v560
      %625 = vst [vmem:[%s172 + $0xec] sm:$0xf] %v561
      %626 = vst [vmem:[%s172 + $0xf0] sm:$0xf] %v562
      %627 = vst [vmem:[%s172 + $0xf4] sm:$0xf] %v563
      %628 = vst [vmem:[%s172 + $0xf8] sm:$0xf] %v564
      %629 = vst [vmem:[%s172 + $0xfc] sm:$0xf] %v565
      %s630 = smul.u32 64, %s14
      %p631 = scmp.lt.s32.totalorder %s630, 127
      %s632 = scalar_select %p631, %s630, 127
      %s633 = smul.addr %s632, 4
      %s634 = scalar_lea.vmem %s3, %s633
      // Predicated region
      $region33: #{discriminator_forward.9} parent=31 // pred_check
        %p635 = pneg %p100
      $region34: #{discriminator_forward.9} parent=31 // pred_check_branch
        %637 = sbr.rel (%p635) target = $region36
      $region35: #{discriminator_forward.9} parent=31 // pred_region
        %s638 = smul.u32 64, %s14
      $region36: #{discriminator_forward.9} parent=31 // pred_fallthru
        _
    $region32: #{discriminator_forward.9} parent=5 // pred_fallthru
      _
    %p639 = scmp.le.s32.totalorder 2, %s9
    // Predicated region
    $region37: #{discriminator_forward.9} parent=5 // pred_check
      %p640 = pneg %p639
    $region38: #{discriminator_forward.9} parent=5 // pred_check_branch
      %642 = sbr.rel (%p640) target = $region40
    $region39: #{discriminator_forward.9} parent=5 // pred_region
      %s643 = ssub.s32 %s9, 2
      // Predicated region
      $region41: #{discriminator_forward.9} parent=39 // pred_check
        %p644 = pneg %p106
      $region42: #{discriminator_forward.9} parent=39 // pred_check_branch
        %646 = sbr.rel (%p644) target = $region44
      $region43: #{discriminator_forward.9} parent=39 // pred_region
        %s647 = smul.u32 64, %s15
        %p648 = scmp.lt.s32.totalorder %s647, 127
        %s649 = scalar_select %p648, %s647, 127
        %s650 = smul.addr %s649, 4
        %s651 = scalar_lea.vmem %s3, %s650
      $region44: #{discriminator_forward.9} parent=39 // pred_fallthru
        _
    $region40: #{discriminator_forward.9} parent=5 // pred_fallthru
      _
  $region6: #{discriminator_forward.9} parent=0 // loop_footer
    %s13 = sadd.s32 1, %s9
  $region7: #{discriminator_forward.9} parent=0 // loop_footer_branch
    %8 = sbr.rel target = $region3
  $region8: #{discriminator_forward.9} parent=0 // loop_exit
    _

// kernel: discriminator_forward.10
$region0: #{discriminator_forward.10}
  #allocation0 [shape = 'u32[]', space=smem, size = 0x4, offset = 0x4, fixed_abs, tag = 'smem constant byte address 0x4 - core index']
  #allocation1 [shape = 'u32[72,128]{1,0:T(1,128)}', space=vmem, size = 0x9000, scoped, tag = 'internal scratch']
  %s0 = inlined_call_operand.vmem [shape: bf16[256,256], index: 0, kind: input, shape index: {}]
  %s1 = inlined_call_operand.vmem [shape: bf16[256,128], index: 1, kind: input, shape index: {}]
  %s2 = inlined_call_operand.vmem [shape: f32[256,128], index: 2, kind: output, shape index: {0}]
  %s3 = inlined_call_operand.vmem [shape: f32[1,128], index: 3, kind: output, shape index: {1}]
  %s4 = inlined_call_operand.vmem [shape: f32[1,128], index: 4, kind: output, shape index: {2}]
  %5 = xla_tuple %s2, %s3, %s4
  %s6 = sld [smem:[#allocation0]]
  $region38: #{discriminator_forward.10} parent=0
    _
  %s8 = ssub.s32 1, %s6
  %s9 = scalar_select 0, %s8, %s6
  // Predicated region
  $region2: #{discriminator_forward.10} parent=0 // pred_check
    _
  $region3: #{discriminator_forward.10} parent=0 // pred_check_branch
    %11 = sbr.rel (0) target = $region5
  $region4: #{discriminator_forward.10} parent=0 // pred_region
    _
  $region5: #{discriminator_forward.10} parent=0 // pred_fallthru
    _
  // Predicated region
  $region6: #{discriminator_forward.10} parent=0 // pred_check
    _
  $region7: #{discriminator_forward.10} parent=0 // pred_check_branch
    %13 = sbr.rel (0) target = $region9
  $region8: #{discriminator_forward.10} parent=0 // pred_region
    _
  $region9: #{discriminator_forward.10} parent=0 // pred_fallthru
    _
  %p14 = scmp.eq.s32.totalorder 0, 0
  // Predicated region
  $region10: #{discriminator_forward.10} parent=0 // pred_check
    %p15 = pneg %p14
  $region11: #{discriminator_forward.10} parent=0 // pred_check_branch
    %17 = sbr.rel (%p15) target = $region13
  $region12: #{discriminator_forward.10} parent=0 // pred_region
    %18 = vst [vmem:[%s3] sm:$0x1] 0.0
    %19 = vst [vmem:[%s4] sm:$0x1] 0.0
  $region13: #{discriminator_forward.10} parent=0 // pred_fallthru
    _
  %v20 = vld [vmem:[%s0] sm:$0xff]
  %v21 = vld [vmem:[%s0 + $0x8] sm:$0xff]
  %v22 = vld [vmem:[%s0 + $0x10] sm:$0xff]
  %v23 = vld [vmem:[%s0 + $0x18] sm:$0xff]
  %v24 = vld [vmem:[%s0 + $0x20] sm:$0xff]
  %v25 = vld [vmem:[%s0 + $0x28] sm:$0xff]
  %v26 = vld [vmem:[%s0 + $0x30] sm:$0xff]
  %v27 = vld [vmem:[%s0 + $0x38] sm:$0xff]
  %v28 = vld [vmem:[%s0 + $0x40] sm:$0xff]
  %v29 = vld [vmem:[%s0 + $0x48] sm:$0xff]
  %v30 = vld [vmem:[%s0 + $0x50] sm:$0xff]
  %v31 = vld [vmem:[%s0 + $0x58] sm:$0xff]
  %v32 = vld [vmem:[%s0 + $0x60] sm:$0xff]
  %v33 = vld [vmem:[%s0 + $0x68] sm:$0xff]
  %v34 = vld [vmem:[%s0 + $0x70] sm:$0xff]
  %v35 = vld [vmem:[%s0 + $0x78] sm:$0xff]
  %v36 = vld [vmem:[%s0 + $0x80] sm:$0xff]
  %v37 = vld [vmem:[%s0 + $0x88] sm:$0xff]
  %v38 = vld [vmem:[%s0 + $0x90] sm:$0xff]
  %v39 = vld [vmem:[%s0 + $0x98] sm:$0xff]
  %v40 = vld [vmem:[%s0 + $0xa0] sm:$0xff]
  %v41 = vld [vmem:[%s0 + $0xa8] sm:$0xff]
  %v42 = vld [vmem:[%s0 + $0xb0] sm:$0xff]
  %v43 = vld [vmem:[%s0 + $0xb8] sm:$0xff]
  %v44 = vld [vmem:[%s0 + $0xc0] sm:$0xff]
  %v45 = vld [vmem:[%s0 + $0xc8] sm:$0xff]
  %v46 = vld [vmem:[%s0 + $0xd0] sm:$0xff]
  %v47 = vld [vmem:[%s0 + $0xd8] sm:$0xff]
  %v48 = vld [vmem:[%s0 + $0xe0] sm:$0xff]
  %v49 = vld [vmem:[%s0 + $0xe8] sm:$0xff]
  %v50 = vld [vmem:[%s0 + $0xf0] sm:$0xff]
  %v51 = vld [vmem:[%s0 + $0xf8] sm:$0xff]
  %v52 = vld [vmem:[%s1] sm:$0xf]
  %v53 = vld [vmem:[%s1 + $0x4] sm:$0xf]
  %v54 = vld [vmem:[%s1 + $0x8] sm:$0xf]
  %v55 = vld [vmem:[%s1 + $0xc] sm:$0xf]
  %v56 = vld [vmem:[%s1 + $0x10] sm:$0xf]
  %v57 = vld [vmem:[%s1 + $0x14] sm:$0xf]
  %v58 = vld [vmem:[%s1 + $0x18] sm:$0xf]
  %v59 = vld [vmem:[%s1 + $0x1c] sm:$0xf]
  %v60 = vld [vmem:[%s1 + $0x20] sm:$0xf]
  %v61 = vld [vmem:[%s1 + $0x24] sm:$0xf]
  %v62 = vld [vmem:[%s1 + $0x28] sm:$0xf]
  %v63 = vld [vmem:[%s1 + $0x2c] sm:$0xf]
  %v64 = vld [vmem:[%s1 + $0x30] sm:$0xf]
  %v65 = vld [vmem:[%s1 + $0x34] sm:$0xf]
  %v66 = vld [vmem:[%s1 + $0x38] sm:$0xf]
  %v67 = vld [vmem:[%s1 + $0x3c] sm:$0xf]
  %v68 = vld [vmem:[%s1 + $0x40] sm:$0xf]
  %v69 = vld [vmem:[%s1 + $0x44] sm:$0xf]
  %v70 = vld [vmem:[%s1 + $0x48] sm:$0xf]
  %v71 = vld [vmem:[%s1 + $0x4c] sm:$0xf]
  %v72 = vld [vmem:[%s1 + $0x50] sm:$0xf]
  %v73 = vld [vmem:[%s1 + $0x54] sm:$0xf]
  %v74 = vld [vmem:[%s1 + $0x58] sm:$0xf]
  %v75 = vld [vmem:[%s1 + $0x5c] sm:$0xf]
  %v76 = vld [vmem:[%s1 + $0x60] sm:$0xf]
  %v77 = vld [vmem:[%s1 + $0x64] sm:$0xf]
  %v78 = vld [vmem:[%s1 + $0x68] sm:$0xf]
  %v79 = vld [vmem:[%s1 + $0x6c] sm:$0xf]
  %v80 = vld [vmem:[%s1 + $0x70] sm:$0xf]
  %v81 = vld [vmem:[%s1 + $0x74] sm:$0xf]
  %v82 = vld [vmem:[%s1 + $0x78] sm:$0xf]
  %v83 = vld [vmem:[%s1 + $0x7c] sm:$0xf]
  %v116 = vunpack.c.l.b16 %v20
  %v117 = vunpack.c.h.b16 %v20
  %v118 = vunpack.c.l.b16 %v21
  %v119 = vunpack.c.h.b16 %v21
  %v120 = vunpack.c.l.b16 %v22
  %v121 = vunpack.c.h.b16 %v22
  %v122 = vunpack.c.l.b16 %v23
  %v123 = vunpack.c.h.b16 %v23
  %v124 = vunpack.c.l.b16 %v24
  %v125 = vunpack.c.h.b16 %v24
  %v126 = vunpack.c.l.b16 %v25
  %v127 = vunpack.c.h.b16 %v25
  %v128 = vunpack.c.l.b16 %v26
  %v129 = vunpack.c.h.b16 %v26
  %v130 = vunpack.c.l.b16 %v27
  %v131 = vunpack.c.h.b16 %v27
  %v132 = vunpack.c.l.b16 %v28
  %v133 = vunpack.c.h.b16 %v28
  %v134 = vunpack.c.l.b16 %v29
  %v135 = vunpack.c.h.b16 %v29
  %v136 = vunpack.c.l.b16 %v30
  %v137 = vunpack.c.h.b16 %v30
  %v138 = vunpack.c.l.b16 %v31
  %v139 = vunpack.c.h.b16 %v31
  %v140 = vunpack.c.l.b16 %v32
  %v141 = vunpack.c.h.b16 %v32
  %v142 = vunpack.c.l.b16 %v33
  %v143 = vunpack.c.h.b16 %v33
  %v144 = vunpack.c.l.b16 %v34
  %v145 = vunpack.c.h.b16 %v34
  %v146 = vunpack.c.l.b16 %v35
  %v147 = vunpack.c.h.b16 %v35
  %v148 = vunpack.c.l.b16 %v36
  %v149 = vunpack.c.h.b16 %v36
  %v150 = vunpack.c.l.b16 %v37
  %v151 = vunpack.c.h.b16 %v37
  %v152 = vunpack.c.l.b16 %v38
  %v153 = vunpack.c.h.b16 %v38
  %v154 = vunpack.c.l.b16 %v39
  %v155 = vunpack.c.h.b16 %v39
  %v156 = vunpack.c.l.b16 %v40
  %v157 = vunpack.c.h.b16 %v40
  %v158 = vunpack.c.l.b16 %v41
  %v159 = vunpack.c.h.b16 %v41
  %v160 = vunpack.c.l.b16 %v42
  %v161 = vunpack.c.h.b16 %v42
  %v162 = vunpack.c.l.b16 %v43
  %v163 = vunpack.c.h.b16 %v43
  %v164 = vunpack.c.l.b16 %v44
  %v165 = vunpack.c.h.b16 %v44
  %v166 = vunpack.c.l.b16 %v45
  %v167 = vunpack.c.h.b16 %v45
  %v168 = vunpack.c.l.b16 %v46
  %v169 = vunpack.c.h.b16 %v46
  %v170 = vunpack.c.l.b16 %v47
  %v171 = vunpack.c.h.b16 %v47
  %v172 = vunpack.c.l.b16 %v48
  %v173 = vunpack.c.h.b16 %v48
  %v174 = vunpack.c.l.b16 %v49
  %v175 = vunpack.c.h.b16 %v49
  %v176 = vunpack.c.l.b16 %v50
  %v177 = vunpack.c.h.b16 %v50
  %v178 = vunpack.c.l.b16 %v51
  %v179 = vunpack.c.h.b16 %v51
  %v180 = vpack.c.b16 %v118, %v116
  %v181 = vpack.c.b16 %v119, %v117
  %v182 = vpack.c.b16 %v122, %v120
  %v183 = vpack.c.b16 %v123, %v121
  %v184 = vpack.c.b16 %v126, %v124
  %v185 = vpack.c.b16 %v127, %v125
  %v186 = vpack.c.b16 %v130, %v128
  %v187 = vpack.c.b16 %v131, %v129
  %v188 = vpack.c.b16 %v134, %v132
  %v189 = vpack.c.b16 %v135, %v133
  %v190 = vpack.c.b16 %v138, %v136
  %v191 = vpack.c.b16 %v139, %v137
  %v192 = vpack.c.b16 %v142, %v140
  %v193 = vpack.c.b16 %v143, %v141
  %v194 = vpack.c.b16 %v146, %v144
  %v195 = vpack.c.b16 %v147, %v145
  %v196 = vpack.c.b16 %v150, %v148
  %v197 = vpack.c.b16 %v151, %v149
  %v198 = vpack.c.b16 %v154, %v152
  %v199 = vpack.c.b16 %v155, %v153
  %v200 = vpack.c.b16 %v158, %v156
  %v201 = vpack.c.b16 %v159, %v157
  %v202 = vpack.c.b16 %v162, %v160
  %v203 = vpack.c.b16 %v163, %v161
  %v204 = vpack.c.b16 %v166, %v164
  %v205 = vpack.c.b16 %v167, %v165
  %v206 = vpack.c.b16 %v170, %v168
  %v207 = vpack.c.b16 %v171, %v169
  %v208 = vpack.c.b16 %v174, %v172
  %v209 = vpack.c.b16 %v175, %v173
  %v210 = vpack.c.b16 %v178, %v176
  %v211 = vpack.c.b16 %v179, %v177
  %v276 = vunpack.c.l.b16 %v52
  %v277 = vunpack.c.l.b16 %v53
  %v278 = vunpack.c.l.b16 %v54
  %v279 = vunpack.c.l.b16 %v55
  %v280 = vunpack.c.l.b16 %v56
  %v281 = vunpack.c.l.b16 %v57
  %v282 = vunpack.c.l.b16 %v58
  %v283 = vunpack.c.l.b16 %v59
  %v284 = vunpack.c.l.b16 %v60
  %v285 = vunpack.c.l.b16 %v61
  %v286 = vunpack.c.l.b16 %v62
  %v287 = vunpack.c.l.b16 %v63
  %v288 = vunpack.c.l.b16 %v64
  %v289 = vunpack.c.l.b16 %v65
  %v290 = vunpack.c.l.b16 %v66
  %v291 = vunpack.c.l.b16 %v67
  %v292 = vunpack.c.l.b16 %v68
  %v293 = vunpack.c.l.b16 %v69
  %v294 = vunpack.c.l.b16 %v70
  %v295 = vunpack.c.l.b16 %v71
  %v296 = vunpack.c.l.b16 %v72
  %v297 = vunpack.c.l.b16 %v73
  %v298 = vunpack.c.l.b16 %v74
  %v299 = vunpack.c.l.b16 %v75
  %v300 = vunpack.c.l.b16 %v76
  %v301 = vunpack.c.l.b16 %v77
  %v302 = vunpack.c.l.b16 %v78
  %v303 = vunpack.c.l.b16 %v79
  %v304 = vunpack.c.l.b16 %v80
  %v305 = vunpack.c.l.b16 %v81
  %v306 = vunpack.c.l.b16 %v82
  %v307 = vunpack.c.l.b16 %v83
  %v308 = vpack.c.b16 %v277, %v276
  %v309 = vpack.c.b16 %v279, %v278
  %v310 = vpack.c.b16 %v281, %v280
  %v311 = vpack.c.b16 %v283, %v282
  %v312 = vpack.c.b16 %v285, %v284
  %v313 = vpack.c.b16 %v287, %v286
  %v314 = vpack.c.b16 %v289, %v288
  %v315 = vpack.c.b16 %v291, %v290
  %v316 = vpack.c.b16 %v293, %v292
  %v317 = vpack.c.b16 %v295, %v294
  %v318 = vpack.c.b16 %v297, %v296
  %v319 = vpack.c.b16 %v299, %v298
  %v320 = vpack.c.b16 %v301, %v300
  %v321 = vpack.c.b16 %v303, %v302
  %v322 = vpack.c.b16 %v305, %v304
  %v323 = vpack.c.b16 %v307, %v306
  %340 = vmatpush.bf16.msra.mxu0 %v315
  %341 = vmatpush.bf16.msra.mxu0 %v314
  %342 = vmatpush.bf16.msra.mxu0 %v313
  %343 = vmatpush.bf16.msra.mxu0 %v312
  %344 = vmatpush.bf16.msra.mxu0 %v311
  %345 = vmatpush.bf16.msra.mxu0 %v310
  %346 = vmatpush.bf16.msra.mxu0 %v309
  %347 = vmatpush.bf16.msra.mxu0 %v308
  %348 = vmatmul.bf16.gmra.mxu0 %v180
  %v349 = vpop.f32.mrf.mxu0
  %v350 = vadd.f32 0.0, %v349
  %v351 = vpop.f32.mrf.mxu0
  %v352 = vadd.f32 0.0, %v351
  %353 = vmatmul.bf16.gmra.mxu0 %v182
  %v354 = vpop.f32.mrf.mxu0
  %v355 = vadd.f32 0.0, %v354
  %v356 = vpop.f32.mrf.mxu0
  %v357 = vadd.f32 0.0, %v356
  %358 = vmatmul.bf16.gmra.mxu0 %v184
  %v359 = vpop.f32.mrf.mxu0
  %v360 = vadd.f32 0.0, %v359
  %v361 = vpop.f32.mrf.mxu0
  %v362 = vadd.f32 0.0, %v361
  %363 = vmatmul.bf16.gmra.mxu0 %v186
  %v364 = vpop.f32.mrf.mxu0
  %v365 = vadd.f32 0.0, %v364
  %v366 = vpop.f32.mrf.mxu0
  %v367 = vadd.f32 0.0, %v366
  %368 = vmatmul.bf16.gmra.mxu0 %v188
  %v369 = vpop.f32.mrf.mxu0
  %v370 = vadd.f32 0.0, %v369
  %v371 = vpop.f32.mrf.mxu0
  %v372 = vadd.f32 0.0, %v371
  %373 = vmatmul.bf16.gmra.mxu0 %v190
  %v374 = vpop.f32.mrf.mxu0
  %v375 = vadd.f32 0.0, %v374
  %v376 = vpop.f32.mrf.mxu0
  %v377 = vadd.f32 0.0, %v376
  %378 = vmatmul.bf16.gmra.mxu0 %v192
  %v379 = vpop.f32.mrf.mxu0
  %v380 = vadd.f32 0.0, %v379
  %v381 = vpop.f32.mrf.mxu0
  %v382 = vadd.f32 0.0, %v381
  %383 = vmatmul.bf16.gmra.mxu0 %v194
  %v384 = vpop.f32.mrf.mxu0
  %v385 = vadd.f32 0.0, %v384
  %v386 = vpop.f32.mrf.mxu0
  %v387 = vadd.f32 0.0, %v386
  %388 = vmatmul.bf16.gmra.mxu0 %v196
  %v389 = vpop.f32.mrf.mxu0
  %v390 = vadd.f32 0.0, %v389
  %v391 = vpop.f32.mrf.mxu0
  %v392 = vadd.f32 0.0, %v391
  %393 = vmatmul.bf16.gmra.mxu0 %v198
  %v394 = vpop.f32.mrf.mxu0
  %v395 = vadd.f32 0.0, %v394
  %v396 = vpop.f32.mrf.mxu0
  %v397 = vadd.f32 0.0, %v396
  %398 = vmatmul.bf16.gmra.mxu0 %v200
  %v399 = vpop.f32.mrf.mxu0
  %v400 = vadd.f32 0.0, %v399
  %v401 = vpop.f32.mrf.mxu0
  %v402 = vadd.f32 0.0, %v401
  %403 = vmatmul.bf16.gmra.mxu0 %v202
  %v404 = vpop.f32.mrf.mxu0
  %v405 = vadd.f32 0.0, %v404
  %v406 = vpop.f32.mrf.mxu0
  %v407 = vadd.f32 0.0, %v406
  %408 = vmatmul.bf16.gmra.mxu0 %v204
  %v409 = vpop.f32.mrf.mxu0
  %v410 = vadd.f32 0.0, %v409
  %v411 = vpop.f32.mrf.mxu0
  %v412 = vadd.f32 0.0, %v411
  %413 = vmatmul.bf16.gmra.mxu0 %v206
  %v414 = vpop.f32.mrf.mxu0
  %v415 = vadd.f32 0.0, %v414
  %v416 = vpop.f32.mrf.mxu0
  %v417 = vadd.f32 0.0, %v416
  %418 = vmatmul.bf16.gmra.mxu0 %v208
  %v419 = vpop.f32.mrf.mxu0
  %v420 = vadd.f32 0.0, %v419
  %v421 = vpop.f32.mrf.mxu0
  %v422 = vadd.f32 0.0, %v421
  %423 = vmatmul.bf16.gmra.mxu0 %v210
  %v424 = vpop.f32.mrf.mxu0
  %v425 = vadd.f32 0.0, %v424
  %v426 = vpop.f32.mrf.mxu0
  %v427 = vadd.f32 0.0, %v426
  %428 = vdwg.mxu0
  %429 = vmatpush.bf16.msra.mxu0 %v323
  %430 = vmatpush.bf16.msra.mxu0 %v322
  %431 = vmatpush.bf16.msra.mxu0 %v321
  %432 = vmatpush.bf16.msra.mxu0 %v320
  %433 = vmatpush.bf16.msra.mxu0 %v319
  %434 = vmatpush.bf16.msra.mxu0 %v318
  %435 = vmatpush.bf16.msra.mxu0 %v317
  %436 = vmatpush.bf16.msra.mxu0 %v316
  %437 = vmatmul.bf16.gmra.mxu0 %v181
  %v438 = vpop.f32.mrf.mxu0
  %v439 = vadd.f32 %v350, %v438
  %v440 = vpop.f32.mrf.mxu0
  %v441 = vadd.f32 %v352, %v440
  %442 = vmatmul.bf16.gmra.mxu0 %v183
  %v443 = vpop.f32.mrf.mxu0
  %v444 = vadd.f32 %v355, %v443
  %v445 = vpop.f32.mrf.mxu0
  %v446 = vadd.f32 %v357, %v445
  %447 = vmatmul.bf16.gmra.mxu0 %v185
  %v448 = vpop.f32.mrf.mxu0
  %v449 = vadd.f32 %v360, %v448
  %v450 = vpop.f32.mrf.mxu0
  %v451 = vadd.f32 %v362, %v450
  %452 = vmatmul.bf16.gmra.mxu0 %v187
  %v453 = vpop.f32.mrf.mxu0
  %v454 = vadd.f32 %v365, %v453
  %v455 = vpop.f32.mrf.mxu0
  %v456 = vadd.f32 %v367, %v455
  %457 = vmatmul.bf16.gmra.mxu0 %v189
  %v458 = vpop.f32.mrf.mxu0
  %v459 = vadd.f32 %v370, %v458
  %v460 = vpop.f32.mrf.mxu0
  %v461 = vadd.f32 %v372, %v460
  %462 = vmatmul.bf16.gmra.mxu0 %v191
  %v463 = vpop.f32.mrf.mxu0
  %v464 = vadd.f32 %v375, %v463
  %v465 = vpop.f32.mrf.mxu0
  %v466 = vadd.f32 %v377, %v465
  %467 = vmatmul.bf16.gmra.mxu0 %v193
  %v468 = vpop.f32.mrf.mxu0
  %v469 = vadd.f32 %v380, %v468
  %v470 = vpop.f32.mrf.mxu0
  %v471 = vadd.f32 %v382, %v470
  %472 = vmatmul.bf16.gmra.mxu0 %v195
  %v473 = vpop.f32.mrf.mxu0
  %v474 = vadd.f32 %v385, %v473
  %v475 = vpop.f32.mrf.mxu0
  %v476 = vadd.f32 %v387, %v475
  %477 = vmatmul.bf16.gmra.mxu0 %v197
  %v478 = vpop.f32.mrf.mxu0
  %v479 = vadd.f32 %v390, %v478
  %v480 = vpop.f32.mrf.mxu0
  %v481 = vadd.f32 %v392, %v480
  %482 = vmatmul.bf16.gmra.mxu0 %v199
  %v483 = vpop.f32.mrf.mxu0
  %v484 = vadd.f32 %v395, %v483
  %v485 = vpop.f32.mrf.mxu0
  %v486 = vadd.f32 %v397, %v485
  %487 = vmatmul.bf16.gmra.mxu0 %v201
  %v488 = vpop.f32.mrf.mxu0
  %v489 = vadd.f32 %v400, %v488
  %v490 = vpop.f32.mrf.mxu0
  %v491 = vadd.f32 %v402, %v490
  %492 = vmatmul.bf16.gmra.mxu0 %v203
  %v493 = vpop.f32.mrf.mxu0
  %v494 = vadd.f32 %v405, %v493
  %v495 = vpop.f32.mrf.mxu0
  %v496 = vadd.f32 %v407, %v495
  %497 = vmatmul.bf16.gmra.mxu0 %v205
  %v498 = vpop.f32.mrf.mxu0
  %v499 = vadd.f32 %v410, %v498
  %v500 = vpop.f32.mrf.mxu0
  %v501 = vadd.f32 %v412, %v500
  %502 = vmatmul.bf16.gmra.mxu0 %v207
  %v503 = vpop.f32.mrf.mxu0
  %v504 = vadd.f32 %v415, %v503
  %v505 = vpop.f32.mrf.mxu0
  %v506 = vadd.f32 %v417, %v505
  %507 = vmatmul.bf16.gmra.mxu0 %v209
  %v508 = vpop.f32.mrf.mxu0
  %v509 = vadd.f32 %v420, %v508
  %v510 = vpop.f32.mrf.mxu0
  %v511 = vadd.f32 %v422, %v510
  %512 = vmatmul.bf16.gmra.mxu0 %v211
  %v513 = vpop.f32.mrf.mxu0
  %v514 = vadd.f32 %v425, %v513
  %v515 = vpop.f32.mrf.mxu0
  %v516 = vadd.f32 %v427, %v515
  %517 = vdwg.mxu0
  %518 = vst [vmem:[%s2] sm:$0xff] %v439
  %519 = vst [vmem:[%s2 + $0x8] sm:$0xff] %v441
  %520 = vst [vmem:[%s2 + $0x10] sm:$0xff] %v444
  %521 = vst [vmem:[%s2 + $0x18] sm:$0xff] %v446
  %522 = vst [vmem:[%s2 + $0x20] sm:$0xff] %v449
  %523 = vst [vmem:[%s2 + $0x28] sm:$0xff] %v451
  %524 = vst [vmem:[%s2 + $0x30] sm:$0xff] %v454
  %525 = vst [vmem:[%s2 + $0x38] sm:$0xff] %v456
  %526 = vst [vmem:[%s2 + $0x40] sm:$0xff] %v459
  %527 = vst [vmem:[%s2 + $0x48] sm:$0xff] %v461
  %528 = vst [vmem:[%s2 + $0x50] sm:$0xff] %v464
  %529 = vst [vmem:[%s2 + $0x58] sm:$0xff] %v466
  %530 = vst [vmem:[%s2 + $0x60] sm:$0xff] %v469
  %531 = vst [vmem:[%s2 + $0x68] sm:$0xff] %v471
  %532 = vst [vmem:[%s2 + $0x70] sm:$0xff] %v474
  %533 = vst [vmem:[%s2 + $0x78] sm:$0xff] %v476
  %534 = vst [vmem:[%s2 + $0x80] sm:$0xff] %v479
  %535 = vst [vmem:[%s2 + $0x88] sm:$0xff] %v481
  %536 = vst [vmem:[%s2 + $0x90] sm:$0xff] %v484
  %537 = vst [vmem:[%s2 + $0x98] sm:$0xff] %v486
  %538 = vst [vmem:[%s2 + $0xa0] sm:$0xff] %v489
  %539 = vst [vmem:[%s2 + $0xa8] sm:$0xff] %v491
  %540 = vst [vmem:[%s2 + $0xb0] sm:$0xff] %v494
  %541 = vst [vmem:[%s2 + $0xb8] sm:$0xff] %v496
  %542 = vst [vmem:[%s2 + $0xc0] sm:$0xff] %v499
  %543 = vst [vmem:[%s2 + $0xc8] sm:$0xff] %v501
  %544 = vst [vmem:[%s2 + $0xd0] sm:$0xff] %v504
  %545 = vst [vmem:[%s2 + $0xd8] sm:$0xff] %v506
  %546 = vst [vmem:[%s2 + $0xe0] sm:$0xff] %v509
  %547 = vst [vmem:[%s2 + $0xe8] sm:$0xff] %v511
  %548 = vst [vmem:[%s2 + $0xf0] sm:$0xff] %v514
  %549 = vst [vmem:[%s2 + $0xf8] sm:$0xff] %v516
  %v550 = vld [vmem:[%s3] sm:$0x1]
  %v551 = vadd.f32 %v439, %v441
  %v552 = vadd.f32 %v551, %v444
  %v553 = vadd.f32 %v552, %v446
  %v554 = vadd.f32 %v553, %v449
  %v555 = vadd.f32 %v554, %v451
  %v556 = vadd.f32 %v555, %v454
  %v557 = vadd.f32 %v556, %v456
  %v558 = vadd.f32 %v557, %v459
  %v559 = vadd.f32 %v558, %v461
  %v560 = vadd.f32 %v559, %v464
  %v561 = vadd.f32 %v560, %v466
  %v562 = vadd.f32 %v561, %v469
  %v563 = vadd.f32 %v562, %v471
  %v564 = vadd.f32 %v563, %v474
  %v565 = vadd.f32 %v564, %v476
  %v566 = vadd.f32 %v565, %v479
  %v567 = vadd.f32 %v566, %v481
  %v568 = vadd.f32 %v567, %v484
  %v569 = vadd.f32 %v568, %v486
  %v570 = vadd.f32 %v569, %v489
  %v571 = vadd.f32 %v570, %v491
  %v572 = vadd.f32 %v571, %v494
  %v573 = vadd.f32 %v572, %v496
  %v574 = vadd.f32 %v573, %v499
  %v575 = vadd.f32 %v574, %v501
  %v576 = vadd.f32 %v575, %v504
  %v577 = vadd.f32 %v576, %v506
  %v578 = vadd.f32 %v577, %v509
  %v579 = vadd.f32 %v578, %v511
  %v580 = vadd.f32 %v579, %v514
  %v581 = vadd.f32 %v580, %v516
  %v582 = vrot.slane %v581, 4
  %v583 = vadd.f32 %v581, %v582
  %v584 = vrot.slane %v583, 2
  %v585 = vadd.f32 %v583, %v584
  %v586 = vrot.slane %v585, 1
  %v587 = vadd.f32 %v585, %v586
  %v588 = vadd.f32 %v550, %v587
  %589 = vst [vmem:[%s3] sm:$0x1] %v588
  %v590 = vld [vmem:[%s4] sm:$0x1]
  %v591 = vmul.f32 %v439, %v439
  %v592 = vmul.f32 %v441, %v441
  %v593 = vmul.f32 %v444, %v444
  %v594 = vmul.f32 %v446, %v446
  %v595 = vmul.f32 %v449, %v449
  %v596 = vmul.f32 %v451, %v451
  %v597 = vmul.f32 %v454, %v454
  %v598 = vmul.f32 %v456, %v456
  %v599 = vmul.f32 %v459, %v459
  %v600 = vmul.f32 %v461, %v461
  %v601 = vmul.f32 %v464, %v464
  %v602 = vmul.f32 %v466, %v466
  %v603 = vmul.f32 %v469, %v469
  %v604 = vmul.f32 %v471, %v471
  %v605 = vmul.f32 %v474, %v474
  %v606 = vmul.f32 %v476, %v476
  %v607 = vmul.f32 %v479, %v479
  %v608 = vmul.f32 %v481, %v481
  %v609 = vmul.f32 %v484, %v484
  %v610 = vmul.f32 %v486, %v486
  %v611 = vmul.f32 %v489, %v489
  %v612 = vmul.f32 %v491, %v491
  %v613 = vmul.f32 %v494, %v494
  %v614 = vmul.f32 %v496, %v496
  %v615 = vmul.f32 %v499, %v499
  %v616 = vmul.f32 %v501, %v501
  %v617 = vmul.f32 %v504, %v504
  %v618 = vmul.f32 %v506, %v506
  %v619 = vmul.f32 %v509, %v509
  %v620 = vmul.f32 %v511, %v511
  %v621 = vmul.f32 %v514, %v514
  %v622 = vmul.f32 %v516, %v516
  %v623 = vadd.f32 %v591, %v592
  %v624 = vadd.f32 %v623, %v593
  %v625 = vadd.f32 %v624, %v594
  %v626 = vadd.f32 %v625, %v595
  %v627 = vadd.f32 %v626, %v596
  %v628 = vadd.f32 %v627, %v597
  %v629 = vadd.f32 %v628, %v598
  %v630 = vadd.f32 %v629, %v599
  %v631 = vadd.f32 %v630, %v600
  %v632 = vadd.f32 %v631, %v601
  %v633 = vadd.f32 %v632, %v602
  %v634 = vadd.f32 %v633, %v603
  %v635 = vadd.f32 %v634, %v604
  %v636 = vadd.f32 %v635, %v605
  %v637 = vadd.f32 %v636, %v606
  %v638 = vadd.f32 %v637, %v607
  %v639 = vadd.f32 %v638, %v608
  %v640 = vadd.f32 %v639, %v609
  %v641 = vadd.f32 %v640, %v610
  %v642 = vadd.f32 %v641, %v611
  %v643 = vadd.f32 %v642, %v612
  %v644 = vadd.f32 %v643, %v613
  %v645 = vadd.f32 %v644, %v614
  %v646 = vadd.f32 %v645, %v615
  %v647 = vadd.f32 %v646, %v616
  %v648 = vadd.f32 %v647, %v617
  %v649 = vadd.f32 %v648, %v618
  %v650 = vadd.f32 %v649, %v619
  %v651 = vadd.f32 %v650, %v620
  %v652 = vadd.f32 %v651, %v621
  %v653 = vadd.f32 %v652, %v622
  %v654 = vrot.slane %v653, 4
  %v655 = vadd.f32 %v653, %v654
  %v656 = vrot.slane %v655, 2
  %v657 = vadd.f32 %v655, %v656
  %v658 = vrot.slane %v657, 1
  %v659 = vadd.f32 %v657, %v658
  %v660 = vadd.f32 %v590, %v659
  %661 = vst [vmem:[%s4] sm:$0x1] %v660
  // Predicated region
  $region14: #{discriminator_forward.10} parent=0 // pred_check
    _
  $region15: #{discriminator_forward.10} parent=0 // pred_check_branch
    %663 = sbr.rel (0) target = $region17
  $region16: #{discriminator_forward.10} parent=0 // pred_region
    _
  $region17: #{discriminator_forward.10} parent=0 // pred_fallthru
    _
  // Predicated region
  $region18: #{discriminator_forward.10} parent=0 // pred_check
    _
  $region19: #{discriminator_forward.10} parent=0 // pred_check_branch
    %665 = sbr.rel (0) target = $region21
  $region20: #{discriminator_forward.10} parent=0 // pred_region
    _
  $region21: #{discriminator_forward.10} parent=0 // pred_fallthru
    _
  // Predicated region
  $region22: #{discriminator_forward.10} parent=0 // pred_check
    _
  $region23: #{discriminator_forward.10} parent=0 // pred_check_branch
    %667 = sbr.rel (0) target = $region25
  $region24: #{discriminator_forward.10} parent=0 // pred_region
    _
  $region25: #{discriminator_forward.10} parent=0 // pred_fallthru
    _
  // Predicated region
  $region26: #{discriminator_forward.10} parent=0 // pred_check
    _
  $region27: #{discriminator_forward.10} parent=0 // pred_check_branch
    %669 = sbr.rel (0) target = $region29
  $region28: #{discriminator_forward.10} parent=0 // pred_region
    _
  $region29: #{discriminator_forward.10} parent=0 // pred_fallthru
    _
  // Predicated region
  $region30: #{discriminator_forward.10} parent=0 // pred_check
    _
  $region31: #{discriminator_forward.10} parent=0 // pred_check_branch
    %671 = sbr.rel (0) target = $region33
  $region32: #{discriminator_forward.10} parent=0 // pred_region
    _
  $region33: #{discriminator_forward.10} parent=0 // pred_fallthru
    _
  // Predicated region
  $region34: #{discriminator_forward.10} parent=0 // pred_check
    _
  $region35: #{discriminator_forward.10} parent=0 // pred_check_branch
    %673 = sbr.rel (0) target = $region37
  $region36: #{discriminator_forward.10} parent=0 // pred_region
    _
  $region37: #{discriminator_forward.10} parent=0 // pred_fallthru
    _

// kernel: discriminator_forward.11
$region0: #{discriminator_forward.11}
  #allocation0 [shape = 'u32[]', space=smem, size = 0x4, offset = 0x4, fixed_abs, tag = 'smem constant byte address 0x4 - core index']
  #allocation1 [shape = 'u32[72,128]{1,0:T(1,128)}', space=vmem, size = 0x9000, scoped, tag = 'internal scratch']
  %s0 = inlined_call_operand.vmem [shape: f32[256,128], index: 0, kind: input, shape index: {}]
  %s1 = inlined_call_operand.vmem [shape: f32[1,128], index: 1, kind: input, shape index: {}]
  %s2 = inlined_call_operand.vmem [shape: f32[1,128], index: 2, kind: input, shape index: {}]
  %s3 = inlined_call_operand.vmem [shape: bf16[256,128], index: 3, kind: output, shape index: {}]
  %s4 = sld [smem:[#allocation0]]
  $region22: #{discriminator_forward.11} parent=0
    _
  %s6 = ssub.s32 1, %s4
  %s7 = scalar_select 0, %s6, %s4
  // Predicated region
  $region2: #{discriminator_forward.11} parent=0 // pred_check
    _
  $region3: #{discriminator_forward.11} parent=0 // pred_check_branch
    %9 = sbr.rel (0) target = $region5
  $region4: #{discriminator_forward.11} parent=0 // pred_region
    _
  $region5: #{discriminator_forward.11} parent=0 // pred_fallthru
    _
  // Predicated region
  $region6: #{discriminator_forward.11} parent=0 // pred_check
    _
  $region7: #{discriminator_forward.11} parent=0 // pred_check_branch
    %11 = sbr.rel (0) target = $region9
  $region8: #{discriminator_forward.11} parent=0 // pred_region
    _
  $region9: #{discriminator_forward.11} parent=0 // pred_fallthru
    _
  // Predicated region
  $region10: #{discriminator_forward.11} parent=0 // pred_check
    _
  $region11: #{discriminator_forward.11} parent=0 // pred_check_branch
    %13 = sbr.rel (0) target = $region13
  $region12: #{discriminator_forward.11} parent=0 // pred_region
    _
  $region13: #{discriminator_forward.11} parent=0 // pred_fallthru
    _
  %v14 = vld [vmem:[%s0] sm:$0xff]
  %v15 = vld [vmem:[%s0 + $0x8] sm:$0xff]
  %v16 = vld [vmem:[%s0 + $0x10] sm:$0xff]
  %v17 = vld [vmem:[%s0 + $0x18] sm:$0xff]
  %v18 = vld [vmem:[%s0 + $0x20] sm:$0xff]
  %v19 = vld [vmem:[%s0 + $0x28] sm:$0xff]
  %v20 = vld [vmem:[%s0 + $0x30] sm:$0xff]
  %v21 = vld [vmem:[%s0 + $0x38] sm:$0xff]
  %v22 = vld [vmem:[%s0 + $0x40] sm:$0xff]
  %v23 = vld [vmem:[%s0 + $0x48] sm:$0xff]
  %v24 = vld [vmem:[%s0 + $0x50] sm:$0xff]
  %v25 = vld [vmem:[%s0 + $0x58] sm:$0xff]
  %v26 = vld [vmem:[%s0 + $0x60] sm:$0xff]
  %v27 = vld [vmem:[%s0 + $0x68] sm:$0xff]
  %v28 = vld [vmem:[%s0 + $0x70] sm:$0xff]
  %v29 = vld [vmem:[%s0 + $0x78] sm:$0xff]
  %v30 = vld [vmem:[%s0 + $0x80] sm:$0xff]
  %v31 = vld [vmem:[%s0 + $0x88] sm:$0xff]
  %v32 = vld [vmem:[%s0 + $0x90] sm:$0xff]
  %v33 = vld [vmem:[%s0 + $0x98] sm:$0xff]
  %v34 = vld [vmem:[%s0 + $0xa0] sm:$0xff]
  %v35 = vld [vmem:[%s0 + $0xa8] sm:$0xff]
  %v36 = vld [vmem:[%s0 + $0xb0] sm:$0xff]
  %v37 = vld [vmem:[%s0 + $0xb8] sm:$0xff]
  %v38 = vld [vmem:[%s0 + $0xc0] sm:$0xff]
  %v39 = vld [vmem:[%s0 + $0xc8] sm:$0xff]
  %v40 = vld [vmem:[%s0 + $0xd0] sm:$0xff]
  %v41 = vld [vmem:[%s0 + $0xd8] sm:$0xff]
  %v42 = vld [vmem:[%s0 + $0xe0] sm:$0xff]
  %v43 = vld [vmem:[%s0 + $0xe8] sm:$0xff]
  %v44 = vld [vmem:[%s0 + $0xf0] sm:$0xff]
  %v45 = vld [vmem:[%s0 + $0xf8] sm:$0xff]
  %v46 = vld [vmem:[%s1] sm:$0x1]
  %v48 = vperm.slane %v46, 0
  %v50 = vmul.f32 %v14, %v48
  %v51 = vmul.f32 %v15, %v48
  %v52 = vmul.f32 %v16, %v48
  %v53 = vmul.f32 %v17, %v48
  %v54 = vmul.f32 %v18, %v48
  %v55 = vmul.f32 %v19, %v48
  %v56 = vmul.f32 %v20, %v48
  %v57 = vmul.f32 %v21, %v48
  %v58 = vmul.f32 %v22, %v48
  %v59 = vmul.f32 %v23, %v48
  %v60 = vmul.f32 %v24, %v48
  %v61 = vmul.f32 %v25, %v48
  %v62 = vmul.f32 %v26, %v48
  %v63 = vmul.f32 %v27, %v48
  %v64 = vmul.f32 %v28, %v48
  %v65 = vmul.f32 %v29, %v48
  %v66 = vmul.f32 %v30, %v48
  %v67 = vmul.f32 %v31, %v48
  %v68 = vmul.f32 %v32, %v48
  %v69 = vmul.f32 %v33, %v48
  %v70 = vmul.f32 %v34, %v48
  %v71 = vmul.f32 %v35, %v48
  %v72 = vmul.f32 %v36, %v48
  %v73 = vmul.f32 %v37, %v48
  %v74 = vmul.f32 %v38, %v48
  %v75 = vmul.f32 %v39, %v48
  %v76 = vmul.f32 %v40, %v48
  %v77 = vmul.f32 %v41, %v48
  %v78 = vmul.f32 %v42, %v48
  %v79 = vmul.f32 %v43, %v48
  %v80 = vmul.f32 %v44, %v48
  %v81 = vmul.f32 %v45, %v48
  %v82 = vld [vmem:[%s2] sm:$0x1]
  %v84 = vperm.slane %v82, 0
  %v86 = vadd.f32 %v50, %v84
  %v87 = vadd.f32 %v51, %v84
  %v88 = vadd.f32 %v52, %v84
  %v89 = vadd.f32 %v53, %v84
  %v90 = vadd.f32 %v54, %v84
  %v91 = vadd.f32 %v55, %v84
  %v92 = vadd.f32 %v56, %v84
  %v93 = vadd.f32 %v57, %v84
  %v94 = vadd.f32 %v58, %v84
  %v95 = vadd.f32 %v59, %v84
  %v96 = vadd.f32 %v60, %v84
  %v97 = vadd.f32 %v61, %v84
  %v98 = vadd.f32 %v62, %v84
  %v99 = vadd.f32 %v63, %v84
  %v100 = vadd.f32 %v64, %v84
  %v101 = vadd.f32 %v65, %v84
  %v102 = vadd.f32 %v66, %v84
  %v103 = vadd.f32 %v67, %v84
  %v104 = vadd.f32 %v68, %v84
  %v105 = vadd.f32 %v69, %v84
  %v106 = vadd.f32 %v70, %v84
  %v107 = vadd.f32 %v71, %v84
  %v108 = vadd.f32 %v72, %v84
  %v109 = vadd.f32 %v73, %v84
  %v110 = vadd.f32 %v74, %v84
  %v111 = vadd.f32 %v75, %v84
  %v112 = vadd.f32 %v76, %v84
  %v113 = vadd.f32 %v77, %v84
  %v114 = vadd.f32 %v78, %v84
  %v115 = vadd.f32 %v79, %v84
  %v116 = vadd.f32 %v80, %v84
  %v117 = vadd.f32 %v81, %v84
  %v118 = vmul.f32 %v86, 0.2
  %v119 = vmul.f32 %v87, 0.2
  %v120 = vmul.f32 %v88, 0.2
  %v121 = vmul.f32 %v89, 0.2
  %v122 = vmul.f32 %v90, 0.2
  %v123 = vmul.f32 %v91, 0.2
  %v124 = vmul.f32 %v92, 0.2
  %v125 = vmul.f32 %v93, 0.2
  %v126 = vmul.f32 %v94, 0.2
  %v127 = vmul.f32 %v95, 0.2
  %v128 = vmul.f32 %v96, 0.2
  %v129 = vmul.f32 %v97, 0.2
  %v130 = vmul.f32 %v98, 0.2
  %v131 = vmul.f32 %v99, 0.2
  %v132 = vmul.f32 %v100, 0.2
  %v133 = vmul.f32 %v101, 0.2
  %v134 = vmul.f32 %v102, 0.2
  %v135 = vmul.f32 %v103, 0.2
  %v136 = vmul.f32 %v104, 0.2
  %v137 = vmul.f32 %v105, 0.2
  %v138 = vmul.f32 %v106, 0.2
  %v139 = vmul.f32 %v107, 0.2
  %v140 = vmul.f32 %v108, 0.2
  %v141 = vmul.f32 %v109, 0.2
  %v142 = vmul.f32 %v110, 0.2
  %v143 = vmul.f32 %v111, 0.2
  %v144 = vmul.f32 %v112, 0.2
  %v145 = vmul.f32 %v113, 0.2
  %v146 = vmul.f32 %v114, 0.2
  %v147 = vmul.f32 %v115, 0.2
  %v148 = vmul.f32 %v116, 0.2
  %v149 = vmul.f32 %v117, 0.2
  %v150 = vmax.f32 %v86, %v118
  %v151 = vmax.f32 %v87, %v119
  %v152 = vmax.f32 %v88, %v120
  %v153 = vmax.f32 %v89, %v121
  %v154 = vmax.f32 %v90, %v122
  %v155 = vmax.f32 %v91, %v123
  %v156 = vmax.f32 %v92, %v124
  %v157 = vmax.f32 %v93, %v125
  %v158 = vmax.f32 %v94, %v126
  %v159 = vmax.f32 %v95, %v127
  %v160 = vmax.f32 %v96, %v128
  %v161 = vmax.f32 %v97, %v129
  %v162 = vmax.f32 %v98, %v130
  %v163 = vmax.f32 %v99, %v131
  %v164 = vmax.f32 %v100, %v132
  %v165 = vmax.f32 %v101, %v133
  %v166 = vmax.f32 %v102, %v134
  %v167 = vmax.f32 %v103, %v135
  %v168 = vmax.f32 %v104, %v136
  %v169 = vmax.f32 %v105, %v137
  %v170 = vmax.f32 %v106, %v138
  %v171 = vmax.f32 %v107, %v139
  %v172 = vmax.f32 %v108, %v140
  %v173 = vmax.f32 %v109, %v141
  %v174 = vmax.f32 %v110, %v142
  %v175 = vmax.f32 %v111, %v143
  %v176 = vmax.f32 %v112, %v144
  %v177 = vmax.f32 %v113, %v145
  %v178 = vmax.f32 %v114, %v146
  %v179 = vmax.f32 %v115, %v147
  %v180 = vmax.f32 %v116, %v148
  %v181 = vmax.f32 %v117, %v149
  %v182 = vpack.c.bf16 %v150, %v150
  %v183 = vpack.c.bf16 %v151, %v151
  %v184 = vpack.c.bf16 %v152, %v152
  %v185 = vpack.c.bf16 %v153, %v153
  %v186 = vpack.c.bf16 %v154, %v154
  %v187 = vpack.c.bf16 %v155, %v155
  %v188 = vpack.c.bf16 %v156, %v156
  %v189 = vpack.c.bf16 %v157, %v157
  %v190 = vpack.c.bf16 %v158, %v158
  %v191 = vpack.c.bf16 %v159, %v159
  %v192 = vpack.c.bf16 %v160, %v160
  %v193 = vpack.c.bf16 %v161, %v161
  %v194 = vpack.c.bf16 %v162, %v162
  %v195 = vpack.c.bf16 %v163, %v163
  %v196 = vpack.c.bf16 %v164, %v164
  %v197 = vpack.c.bf16 %v165, %v165
  %v198 = vpack.c.bf16 %v166, %v166
  %v199 = vpack.c.bf16 %v167, %v167
  %v200 = vpack.c.bf16 %v168, %v168
  %v201 = vpack.c.bf16 %v169, %v169
  %v202 = vpack.c.bf16 %v170, %v170
  %v203 = vpack.c.bf16 %v171, %v171
  %v204 = vpack.c.bf16 %v172, %v172
  %v205 = vpack.c.bf16 %v173, %v173
  %v206 = vpack.c.bf16 %v174, %v174
  %v207 = vpack.c.bf16 %v175, %v175
  %v208 = vpack.c.bf16 %v176, %v176
  %v209 = vpack.c.bf16 %v177, %v177
  %v210 = vpack.c.bf16 %v178, %v178
  %v211 = vpack.c.bf16 %v179, %v179
  %v212 = vpack.c.bf16 %v180, %v180
  %v213 = vpack.c.bf16 %v181, %v181
  %214 = vst [vmem:[%s3] sm:$0xf] %v182
  %215 = vst [vmem:[%s3 + $0x4] sm:$0xf] %v183
  %216 = vst [vmem:[%s3 + $0x8] sm:$0xf] %v184
  %217 = vst [vmem:[%s3 + $0xc] sm:$0xf] %v185
  %218 = vst [vmem:[%s3 + $0x10] sm:$0xf] %v186
  %219 = vst [vmem:[%s3 + $0x14] sm:$0xf] %v187
  %220 = vst [vmem:[%s3 + $0x18] sm:$0xf] %v188
  %221 = vst [vmem:[%s3 + $0x1c] sm:$0xf] %v189
  %222 = vst [vmem:[%s3 + $0x20] sm:$0xf] %v190
  %223 = vst [vmem:[%s3 + $0x24] sm:$0xf] %v191
  %224 = vst [vmem:[%s3 + $0x28] sm:$0xf] %v192
  %225 = vst [vmem:[%s3 + $0x2c] sm:$0xf] %v193
  %226 = vst [vmem:[%s3 + $0x30] sm:$0xf] %v194
  %227 = vst [vmem:[%s3 + $0x34] sm:$0xf] %v195
  %228 = vst [vmem:[%s3 + $0x38] sm:$0xf] %v196
  %229 = vst [vmem:[%s3 + $0x3c] sm:$0xf] %v197
  %230 = vst [vmem:[%s3 + $0x40] sm:$0xf] %v198
  %231 = vst [vmem:[%s3 + $0x44] sm:$0xf] %v199
  %232 = vst [vmem:[%s3 + $0x48] sm:$0xf] %v200
  %233 = vst [vmem:[%s3 + $0x4c] sm:$0xf] %v201
  %234 = vst [vmem:[%s3 + $0x50] sm:$0xf] %v202
  %235 = vst [vmem:[%s3 + $0x54] sm:$0xf] %v203
  %236 = vst [vmem:[%s3 + $0x58] sm:$0xf] %v204
  %237 = vst [vmem:[%s3 + $0x5c] sm:$0xf] %v205
  %238 = vst [vmem:[%s3 + $0x60] sm:$0xf] %v206
  %239 = vst [vmem:[%s3 + $0x64] sm:$0xf] %v207
  %240 = vst [vmem:[%s3 + $0x68] sm:$0xf] %v208
  %241 = vst [vmem:[%s3 + $0x6c] sm:$0xf] %v209
  %242 = vst [vmem:[%s3 + $0x70] sm:$0xf] %v210
  %243 = vst [vmem:[%s3 + $0x74] sm:$0xf] %v211
  %244 = vst [vmem:[%s3 + $0x78] sm:$0xf] %v212
  %245 = vst [vmem:[%s3 + $0x7c] sm:$0xf] %v213
  // Predicated region
  $region14: #{discriminator_forward.11} parent=0 // pred_check
    _
  $region15: #{discriminator_forward.11} parent=0 // pred_check_branch
    %247 = sbr.rel (0) target = $region17
  $region16: #{discriminator_forward.11} parent=0 // pred_region
    _
  $region17: #{discriminator_forward.11} parent=0 // pred_fallthru
    _
  // Predicated region
  $region18: #{discriminator_forward.11} parent=0 // pred_check
    _
  $region19: #{discriminator_forward.11} parent=0 // pred_check_branch
    %249 = sbr.rel (0) target = $region21
  $region20: #{discriminator_forward.11} parent=0 // pred_region
    _
  $region21: #{discriminator_forward.11} parent=0 // pred_fallthru
    _

// kernel: discriminator_forward.13
$region0: #{discriminator_forward.13}
  #allocation0 [shape = 'u32[]', space=smem, size = 0x4, offset = 0x4, fixed_abs, tag = 'smem constant byte address 0x4 - core index']
  #allocation1 [shape = 'u32[72,128]{1,0:T(1,128)}', space=vmem, size = 0x9000, scoped, tag = 'internal scratch']
  %s0 = inlined_call_operand.vmem [shape: f32[64,128], index: 0, kind: input, shape index: {}]
  %s1 = inlined_call_operand.vmem [shape: f32[1,128], index: 1, kind: input, shape index: {}]
  %s2 = inlined_call_operand.vmem [shape: f32[1,128], index: 2, kind: input, shape index: {}]
  %s3 = inlined_call_operand.vmem [shape: f32[64,128], index: 3, kind: output, shape index: {}]
  %s4 = sld [smem:[#allocation0]]
  $region22: #{discriminator_forward.13} parent=0
    _
  %s6 = ssub.s32 1, %s4
  %s7 = scalar_select 0, %s6, %s4
  // Predicated region
  $region2: #{discriminator_forward.13} parent=0 // pred_check
    _
  $region3: #{discriminator_forward.13} parent=0 // pred_check_branch
    %9 = sbr.rel (0) target = $region5
  $region4: #{discriminator_forward.13} parent=0 // pred_region
    _
  $region5: #{discriminator_forward.13} parent=0 // pred_fallthru
    _
  // Predicated region
  $region6: #{discriminator_forward.13} parent=0 // pred_check
    _
  $region7: #{discriminator_forward.13} parent=0 // pred_check_branch
    %11 = sbr.rel (0) target = $region9
  $region8: #{discriminator_forward.13} parent=0 // pred_region
    _
  $region9: #{discriminator_forward.13} parent=0 // pred_fallthru
    _
  // Predicated region
  $region10: #{discriminator_forward.13} parent=0 // pred_check
    _
  $region11: #{discriminator_forward.13} parent=0 // pred_check_branch
    %13 = sbr.rel (0) target = $region13
  $region12: #{discriminator_forward.13} parent=0 // pred_region
    _
  $region13: #{discriminator_forward.13} parent=0 // pred_fallthru
    _
  %v14 = vld [vmem:[%s0] sm:$0xff]
  %v15 = vld [vmem:[%s0 + $0x8] sm:$0xff]
  %v16 = vld [vmem:[%s0 + $0x10] sm:$0xff]
  %v17 = vld [vmem:[%s0 + $0x18] sm:$0xff]
  %v18 = vld [vmem:[%s0 + $0x20] sm:$0xff]
  %v19 = vld [vmem:[%s0 + $0x28] sm:$0xff]
  %v20 = vld [vmem:[%s0 + $0x30] sm:$0xff]
  %v21 = vld [vmem:[%s0 + $0x38] sm:$0xff]
  %v22 = vld [vmem:[%s1] sm:$0x1]
  %v24 = vperm.slane %v22, 0
  %v26 = vmul.f32 %v14, %v24
  %v27 = vmul.f32 %v15, %v24
  %v28 = vmul.f32 %v16, %v24
  %v29 = vmul.f32 %v17, %v24
  %v30 = vmul.f32 %v18, %v24
  %v31 = vmul.f32 %v19, %v24
  %v32 = vmul.f32 %v20, %v24
  %v33 = vmul.f32 %v21, %v24
  %v34 = vld [vmem:[%s2] sm:$0x1]
  %v36 = vperm.slane %v34, 0
  %v38 = vadd.f32 %v26, %v36
  %v39 = vadd.f32 %v27, %v36
  %v40 = vadd.f32 %v28, %v36
  %v41 = vadd.f32 %v29, %v36
  %v42 = vadd.f32 %v30, %v36
  %v43 = vadd.f32 %v31, %v36
  %v44 = vadd.f32 %v32, %v36
  %v45 = vadd.f32 %v33, %v36
  %v46 = vmul.f32 %v38, 0.2
  %v47 = vmul.f32 %v39, 0.2
  %v48 = vmul.f32 %v40, 0.2
  %v49 = vmul.f32 %v41, 0.2
  %v50 = vmul.f32 %v42, 0.2
  %v51 = vmul.f32 %v43, 0.2
  %v52 = vmul.f32 %v44, 0.2
  %v53 = vmul.f32 %v45, 0.2
  %v54 = vmax.f32 %v38, %v46
  %v55 = vmax.f32 %v39, %v47
  %v56 = vmax.f32 %v40, %v48
  %v57 = vmax.f32 %v41, %v49
  %v58 = vmax.f32 %v42, %v50
  %v59 = vmax.f32 %v43, %v51
  %v60 = vmax.f32 %v44, %v52
  %v61 = vmax.f32 %v45, %v53
  %62 = vst [vmem:[%s3] sm:$0xff] %v54
  %63 = vst [vmem:[%s3 + $0x8] sm:$0xff] %v55
  %64 = vst [vmem:[%s3 + $0x10] sm:$0xff] %v56
  %65 = vst [vmem:[%s3 + $0x18] sm:$0xff] %v57
  %66 = vst [vmem:[%s3 + $0x20] sm:$0xff] %v58
  %67 = vst [vmem:[%s3 + $0x28] sm:$0xff] %v59
  %68 = vst [vmem:[%s3 + $0x30] sm:$0xff] %v60
  %69 = vst [vmem:[%s3 + $0x38] sm:$0xff] %v61
  // Predicated region
  $region14: #{discriminator_forward.13} parent=0 // pred_check
    _
  $region15: #{discriminator_forward.13} parent=0 // pred_check_branch
    %71 = sbr.rel (0) target = $region17
  $region16: #{discriminator_forward.13} parent=0 // pred_region
    _
  $region17: #{discriminator_forward.13} parent=0 // pred_fallthru
    _
  // Predicated region
  $region18: #{discriminator_forward.13} parent=0 // pred_check
    _
  $region19: #{discriminator_forward.13} parent=0 // pred_check_branch
    %73 = sbr.rel (0) target = $region21
  $region20: #{discriminator_forward.13} parent=0 // pred_region
    _
  $region21: #{discriminator_forward.13} parent=0 // pred_fallthru
    _

// kernel: discriminator_forward.12
$region0: #{discriminator_forward.12}
  #allocation0 [shape = 'u32[]', space=smem, size = 0x4, offset = 0x4, fixed_abs, tag = 'smem constant byte address 0x4 - core index']
  #allocation1 [shape = 'u32[72,128]{1,0:T(1,128)}', space=vmem, size = 0x9000, scoped, tag = 'internal scratch']
  %s0 = inlined_call_operand.vmem [shape: bf16[64,512], index: 0, kind: input, shape index: {}]
  %s1 = inlined_call_operand.vmem [shape: bf16[512,128], index: 1, kind: input, shape index: {}]
  %s2 = inlined_call_operand.vmem [shape: f32[64,128], index: 2, kind: output, shape index: {0}]
  %s3 = inlined_call_operand.vmem [shape: f32[1,128], index: 3, kind: output, shape index: {1}]
  %s4 = inlined_call_operand.vmem [shape: f32[1,128], index: 4, kind: output, shape index: {2}]
  %5 = xla_tuple %s2, %s3, %s4
  %s6 = sld [smem:[#allocation0]]
  $region38: #{discriminator_forward.12} parent=0
    _
  %s8 = ssub.s32 1, %s6
  %s9 = scalar_select 0, %s8, %s6
  // Predicated region
  $region2: #{discriminator_forward.12} parent=0 // pred_check
    _
  $region3: #{discriminator_forward.12} parent=0 // pred_check_branch
    %11 = sbr.rel (0) target = $region5
  $region4: #{discriminator_forward.12} parent=0 // pred_region
    _
  $region5: #{discriminator_forward.12} parent=0 // pred_fallthru
    _
  // Predicated region
  $region6: #{discriminator_forward.12} parent=0 // pred_check
    _
  $region7: #{discriminator_forward.12} parent=0 // pred_check_branch
    %13 = sbr.rel (0) target = $region9
  $region8: #{discriminator_forward.12} parent=0 // pred_region
    _
  $region9: #{discriminator_forward.12} parent=0 // pred_fallthru
    _
  %p14 = scmp.eq.s32.totalorder 0, 0
  // Predicated region
  $region10: #{discriminator_forward.12} parent=0 // pred_check
    %p15 = pneg %p14
  $region11: #{discriminator_forward.12} parent=0 // pred_check_branch
    %17 = sbr.rel (%p15) target = $region13
  $region12: #{discriminator_forward.12} parent=0 // pred_region
    %18 = vst [vmem:[%s3] sm:$0x1] 0.0
    %19 = vst [vmem:[%s4] sm:$0x1] 0.0
  $region13: #{discriminator_forward.12} parent=0 // pred_fallthru
    _
  %v20 = vld [vmem:[%s0] sm:$0xff]
  %v21 = vld [vmem:[%s0 + $0x8] sm:$0xff]
  %v22 = vld [vmem:[%s0 + $0x10] sm:$0xff]
  %v23 = vld [vmem:[%s0 + $0x18] sm:$0xff]
  %v24 = vld [vmem:[%s0 + $0x20] sm:$0xff]
  %v25 = vld [vmem:[%s0 + $0x28] sm:$0xff]
  %v26 = vld [vmem:[%s0 + $0x30] sm:$0xff]
  %v27 = vld [vmem:[%s0 + $0x38] sm:$0xff]
  %v28 = vld [vmem:[%s0 + $0x40] sm:$0xff]
  %v29 = vld [vmem:[%s0 + $0x48] sm:$0xff]
  %v30 = vld [vmem:[%s0 + $0x50] sm:$0xff]
  %v31 = vld [vmem:[%s0 + $0x58] sm:$0xff]
  %v32 = vld [vmem:[%s0 + $0x60] sm:$0xff]
  %v33 = vld [vmem:[%s0 + $0x68] sm:$0xff]
  %v34 = vld [vmem:[%s0 + $0x70] sm:$0xff]
  %v35 = vld [vmem:[%s0 + $0x78] sm:$0xff]
  %v36 = vld [vmem:[%s1] sm:$0xf]
  %v37 = vld [vmem:[%s1 + $0x4] sm:$0xf]
  %v38 = vld [vmem:[%s1 + $0x8] sm:$0xf]
  %v39 = vld [vmem:[%s1 + $0xc] sm:$0xf]
  %v40 = vld [vmem:[%s1 + $0x10] sm:$0xf]
  %v41 = vld [vmem:[%s1 + $0x14] sm:$0xf]
  %v42 = vld [vmem:[%s1 + $0x18] sm:$0xf]
  %v43 = vld [vmem:[%s1 + $0x1c] sm:$0xf]
  %v44 = vld [vmem:[%s1 + $0x20] sm:$0xf]
  %v45 = vld [vmem:[%s1 + $0x24] sm:$0xf]
  %v46 = vld [vmem:[%s1 + $0x28] sm:$0xf]
  %v47 = vld [vmem:[%s1 + $0x2c] sm:$0xf]
  %v48 = vld [vmem:[%s1 + $0x30] sm:$0xf]
  %v49 = vld [vmem:[%s1 + $0x34] sm:$0xf]
  %v50 = vld [vmem:[%s1 + $0x38] sm:$0xf]
  %v51 = vld [vmem:[%s1 + $0x3c] sm:$0xf]
  %v52 = vld [vmem:[%s1 + $0x40] sm:$0xf]
  %v53 = vld [vmem:[%s1 + $0x44] sm:$0xf]
  %v54 = vld [vmem:[%s1 + $0x48] sm:$0xf]
  %v55 = vld [vmem:[%s1 + $0x4c] sm:$0xf]
  %v56 = vld [vmem:[%s1 + $0x50] sm:$0xf]
  %v57 = vld [vmem:[%s1 + $0x54] sm:$0xf]
  %v58 = vld [vmem:[%s1 + $0x58] sm:$0xf]
  %v59 = vld [vmem:[%s1 + $0x5c] sm:$0xf]
  %v60 = vld [vmem:[%s1 + $0x60] sm:$0xf]
  %v61 = vld [vmem:[%s1 + $0x64] sm:$0xf]
  %v62 = vld [vmem:[%s1 + $0x68] sm:$0xf]
  %v63 = vld [vmem:[%s1 + $0x6c] sm:$0xf]
  %v64 = vld [vmem:[%s1 + $0x70] sm:$0xf]
  %v65 = vld [vmem:[%s1 + $0x74] sm:$0xf]
  %v66 = vld [vmem:[%s1 + $0x78] sm:$0xf]
  %v67 = vld [vmem:[%s1 + $0x7c] sm:$0xf]
  %v68 = vld [vmem:[%s1 + $0x80] sm:$0xf]
  %v69 = vld [vmem:[%s1 + $0x84] sm:$0xf]
  %v70 = vld [vmem:[%s1 + $0x88] sm:$0xf]
  %v71 = vld [vmem:[%s1 + $0x8c] sm:$0xf]
  %v72 = vld [vmem:[%s1 + $0x90] sm:$0xf]
  %v73 = vld [vmem:[%s1 + $0x94] sm:$0xf]
  %v74 = vld [vmem:[%s1 + $0x98] sm:$0xf]
  %v75 = vld [vmem:[%s1 + $0x9c] sm:$0xf]
  %v76 = vld [vmem:[%s1 + $0xa0] sm:$0xf]
  %v77 = vld [vmem:[%s1 + $0xa4] sm:$0xf]
  %v78 = vld [vmem:[%s1 + $0xa8] sm:$0xf]
  %v79 = vld [vmem:[%s1 + $0xac] sm:$0xf]
  %v80 = vld [vmem:[%s1 + $0xb0] sm:$0xf]
  %v81 = vld [vmem:[%s1 + $0xb4] sm:$0xf]
  %v82 = vld [vmem:[%s1 + $0xb8] sm:$0xf]
  %v83 = vld [vmem:[%s1 + $0xbc] sm:$0xf]
  %v84 = vld [vmem:[%s1 + $0xc0] sm:$0xf]
  %v85 = vld [vmem:[%s1 + $0xc4] sm:$0xf]
  %v86 = vld [vmem:[%s1 + $0xc8] sm:$0xf]
  %v87 = vld [vmem:[%s1 + $0xcc] sm:$0xf]
  %v88 = vld [vmem:[%s1 + $0xd0] sm:$0xf]
  %v89 = vld [vmem:[%s1 + $0xd4] sm:$0xf]
  %v90 = vld [vmem:[%s1 + $0xd8] sm:$0xf]
  %v91 = vld [vmem:[%s1 + $0xdc] sm:$0xf]
  %v92 = vld [vmem:[%s1 + $0xe0] sm:$0xf]
  %v93 = vld [vmem:[%s1 + $0xe4] sm:$0xf]
  %v94 = vld [vmem:[%s1 + $0xe8] sm:$0xf]
  %v95 = vld [vmem:[%s1 + $0xec] sm:$0xf]
  %v96 = vld [vmem:[%s1 + $0xf0] sm:$0xf]
  %v97 = vld [vmem:[%s1 + $0xf4] sm:$0xf]
  %v98 = vld [vmem:[%s1 + $0xf8] sm:$0xf]
  %v99 = vld [vmem:[%s1 + $0xfc] sm:$0xf]
  %v116 = vunpack.c.l.b16 %v20
  %v117 = vunpack.c.h.b16 %v20
  %v118 = vunpack.c.l.b16 %v21
  %v119 = vunpack.c.h.b16 %v21
  %v120 = vunpack.c.l.b16 %v22
  %v121 = vunpack.c.h.b16 %v22
  %v122 = vunpack.c.l.b16 %v23
  %v123 = vunpack.c.h.b16 %v23
  %v124 = vunpack.c.l.b16 %v24
  %v125 = vunpack.c.h.b16 %v24
  %v126 = vunpack.c.l.b16 %v25
  %v127 = vunpack.c.h.b16 %v25
  %v128 = vunpack.c.l.b16 %v26
  %v129 = vunpack.c.h.b16 %v26
  %v130 = vunpack.c.l.b16 %v27
  %v131 = vunpack.c.h.b16 %v27
  %v132 = vunpack.c.l.b16 %v28
  %v133 = vunpack.c.h.b16 %v28
  %v134 = vunpack.c.l.b16 %v29
  %v135 = vunpack.c.h.b16 %v29
  %v136 = vunpack.c.l.b16 %v30
  %v137 = vunpack.c.h.b16 %v30
  %v138 = vunpack.c.l.b16 %v31
  %v139 = vunpack.c.h.b16 %v31
  %v140 = vunpack.c.l.b16 %v32
  %v141 = vunpack.c.h.b16 %v32
  %v142 = vunpack.c.l.b16 %v33
  %v143 = vunpack.c.h.b16 %v33
  %v144 = vunpack.c.l.b16 %v34
  %v145 = vunpack.c.h.b16 %v34
  %v146 = vunpack.c.l.b16 %v35
  %v147 = vunpack.c.h.b16 %v35
  %v148 = vpack.c.b16 %v120, %v116
  %v149 = vpack.c.b16 %v121, %v117
  %v150 = vpack.c.b16 %v122, %v118
  %v151 = vpack.c.b16 %v123, %v119
  %v152 = vpack.c.b16 %v128, %v124
  %v153 = vpack.c.b16 %v129, %v125
  %v154 = vpack.c.b16 %v130, %v126
  %v155 = vpack.c.b16 %v131, %v127
  %v156 = vpack.c.b16 %v136, %v132
  %v157 = vpack.c.b16 %v137, %v133
  %v158 = vpack.c.b16 %v138, %v134
  %v159 = vpack.c.b16 %v139, %v135
  %v160 = vpack.c.b16 %v144, %v140
  %v161 = vpack.c.b16 %v145, %v141
  %v162 = vpack.c.b16 %v146, %v142
  %v163 = vpack.c.b16 %v147, %v143
  %v244 = vunpack.c.l.b16 %v36
  %v245 = vunpack.c.l.b16 %v37
  %v246 = vunpack.c.l.b16 %v38
  %v247 = vunpack.c.l.b16 %v39
  %v248 = vunpack.c.l.b16 %v40
  %v249 = vunpack.c.l.b16 %v41
  %v250 = vunpack.c.l.b16 %v42
  %v251 = vunpack.c.l.b16 %v43
  %v252 = vunpack.c.l.b16 %v44
  %v253 = vunpack.c.l.b16 %v45
  %v254 = vunpack.c.l.b16 %v46
  %v255 = vunpack.c.l.b16 %v47
  %v256 = vunpack.c.l.b16 %v48
  %v257 = vunpack.c.l.b16 %v49
  %v258 = vunpack.c.l.b16 %v50
  %v259 = vunpack.c.l.b16 %v51
  %v260 = vunpack.c.l.b16 %v52
  %v261 = vunpack.c.l.b16 %v53
  %v262 = vunpack.c.l.b16 %v54
  %v263 = vunpack.c.l.b16 %v55
  %v264 = vunpack.c.l.b16 %v56
  %v265 = vunpack.c.l.b16 %v57
  %v266 = vunpack.c.l.b16 %v58
  %v267 = vunpack.c.l.b16 %v59
  %v268 = vunpack.c.l.b16 %v60
  %v269 = vunpack.c.l.b16 %v61
  %v270 = vunpack.c.l.b16 %v62
  %v271 = vunpack.c.l.b16 %v63
  %v272 = vunpack.c.l.b16 %v64
  %v273 = vunpack.c.l.b16 %v65
  %v274 = vunpack.c.l.b16 %v66
  %v275 = vunpack.c.l.b16 %v67
  %v276 = vunpack.c.l.b16 %v68
  %v277 = vunpack.c.l.b16 %v69
  %v278 = vunpack.c.l.b16 %v70
  %v279 = vunpack.c.l.b16 %v71
  %v280 = vunpack.c.l.b16 %v72
  %v281 = vunpack.c.l.b16 %v73
  %v282 = vunpack.c.l.b16 %v74
  %v283 = vunpack.c.l.b16 %v75
  %v284 = vunpack.c.l.b16 %v76
  %v285 = vunpack.c.l.b16 %v77
  %v286 = vunpack.c.l.b16 %v78
  %v287 = vunpack.c.l.b16 %v79
  %v288 = vunpack.c.l.b16 %v80
  %v289 = vunpack.c.l.b16 %v81
  %v290 = vunpack.c.l.b16 %v82
  %v291 = vunpack.c.l.b16 %v83
  %v292 = vunpack.c.l.b16 %v84
  %v293 = vunpack.c.l.b16 %v85
  %v294 = vunpack.c.l.b16 %v86
  %v295 = vunpack.c.l.b16 %v87
  %v296 = vunpack.c.l.b16 %v88
  %v297 = vunpack.c.l.b16 %v89
  %v298 = vunpack.c.l.b16 %v90
  %v299 = vunpack.c.l.b16 %v91
  %v300 = vunpack.c.l.b16 %v92
  %v301 = vunpack.c.l.b16 %v93
  %v302 = vunpack.c.l.b16 %v94
  %v303 = vunpack.c.l.b16 %v95
  %v304 = vunpack.c.l.b16 %v96
  %v305 = vunpack.c.l.b16 %v97
  %v306 = vunpack.c.l.b16 %v98
  %v307 = vunpack.c.l.b16 %v99
  %v308 = vpack.c.b16 %v245, %v244
  %v309 = vpack.c.b16 %v247, %v246
  %v310 = vpack.c.b16 %v249, %v248
  %v311 = vpack.c.b16 %v251, %v250
  %v312 = vpack.c.b16 %v253, %v252
  %v313 = vpack.c.b16 %v255, %v254
  %v314 = vpack.c.b16 %v257, %v256
  %v315 = vpack.c.b16 %v259, %v258
  %v316 = vpack.c.b16 %v261, %v260
  %v317 = vpack.c.b16 %v263, %v262
  %v318 = vpack.c.b16 %v265, %v264
  %v319 = vpack.c.b16 %v267, %v266
  %v320 = vpack.c.b16 %v269, %v268
  %v321 = vpack.c.b16 %v271, %v270
  %v322 = vpack.c.b16 %v273, %v272
  %v323 = vpack.c.b16 %v275, %v274
  %v324 = vpack.c.b16 %v277, %v276
  %v325 = vpack.c.b16 %v279, %v278
  %v326 = vpack.c.b16 %v281, %v280
  %v327 = vpack.c.b16 %v283, %v282
  %v328 = vpack.c.b16 %v285, %v284
  %v329 = vpack.c.b16 %v287, %v286
  %v330 = vpack.c.b16 %v289, %v288
  %v331 = vpack.c.b16 %v291, %v290
  %v332 = vpack.c.b16 %v293, %v292
  %v333 = vpack.c.b16 %v295, %v294
  %v334 = vpack.c.b16 %v297, %v296
  %v335 = vpack.c.b16 %v299, %v298
  %v336 = vpack.c.b16 %v301, %v300
  %v337 = vpack.c.b16 %v303, %v302
  %v338 = vpack.c.b16 %v305, %v304
  %v339 = vpack.c.b16 %v307, %v306
  %372 = vmatpush.bf16.msra.mxu0 %v315
  %373 = vmatpush.bf16.msra.mxu0 %v314
  %374 = vmatpush.bf16.msra.mxu0 %v313
  %375 = vmatpush.bf16.msra.mxu0 %v312
  %376 = vmatpush.bf16.msra.mxu0 %v311
  %377 = vmatpush.bf16.msra.mxu0 %v310
  %378 = vmatpush.bf16.msra.mxu0 %v309
  %379 = vmatpush.bf16.msra.mxu0 %v308
  %380 = vmatmul.bf16.gmra.mxu0 %v148
  %v381 = vpop.f32.mrf.mxu0
  %v382 = vadd.f32 0.0, %v381
  %v383 = vpop.f32.mrf.mxu0
  %v384 = vadd.f32 0.0, %v383
  %385 = vmatmul.bf16.gmra.mxu0 %v152
  %v386 = vpop.f32.mrf.mxu0
  %v387 = vadd.f32 0.0, %v386
  %v388 = vpop.f32.mrf.mxu0
  %v389 = vadd.f32 0.0, %v388
  %390 = vmatmul.bf16.gmra.mxu0 %v156
  %v391 = vpop.f32.mrf.mxu0
  %v392 = vadd.f32 0.0, %v391
  %v393 = vpop.f32.mrf.mxu0
  %v394 = vadd.f32 0.0, %v393
  %395 = vmatmul.bf16.gmra.mxu0 %v160
  %v396 = vpop.f32.mrf.mxu0
  %v397 = vadd.f32 0.0, %v396
  %v398 = vpop.f32.mrf.mxu0
  %v399 = vadd.f32 0.0, %v398
  %400 = vdwg.mxu0
  %401 = vmatpush.bf16.msra.mxu0 %v323
  %402 = vmatpush.bf16.msra.mxu0 %v322
  %403 = vmatpush.bf16.msra.mxu0 %v321
  %404 = vmatpush.bf16.msra.mxu0 %v320
  %405 = vmatpush.bf16.msra.mxu0 %v319
  %406 = vmatpush.bf16.msra.mxu0 %v318
  %407 = vmatpush.bf16.msra.mxu0 %v317
  %408 = vmatpush.bf16.msra.mxu0 %v316
  %409 = vmatmul.bf16.gmra.mxu0 %v149
  %v410 = vpop.f32.mrf.mxu0
  %v411 = vadd.f32 %v382, %v410
  %v412 = vpop.f32.mrf.mxu0
  %v413 = vadd.f32 %v384, %v412
  %414 = vmatmul.bf16.gmra.mxu0 %v153
  %v415 = vpop.f32.mrf.mxu0
  %v416 = vadd.f32 %v387, %v415
  %v417 = vpop.f32.mrf.mxu0
  %v418 = vadd.f32 %v389, %v417
  %419 = vmatmul.bf16.gmra.mxu0 %v157
  %v420 = vpop.f32.mrf.mxu0
  %v421 = vadd.f32 %v392, %v420
  %v422 = vpop.f32.mrf.mxu0
  %v423 = vadd.f32 %v394, %v422
  %424 = vmatmul.bf16.gmra.mxu0 %v161
  %v425 = vpop.f32.mrf.mxu0
  %v426 = vadd.f32 %v397, %v425
  %v427 = vpop.f32.mrf.mxu0
  %v428 = vadd.f32 %v399, %v427
  %429 = vdwg.mxu0
  %430 = vmatpush.bf16.msra.mxu0 %v331
  %431 = vmatpush.bf16.msra.mxu0 %v330
  %432 = vmatpush.bf16.msra.mxu0 %v329
  %433 = vmatpush.bf16.msra.mxu0 %v328
  %434 = vmatpush.bf16.msra.mxu0 %v327
  %435 = vmatpush.bf16.msra.mxu0 %v326
  %436 = vmatpush.bf16.msra.mxu0 %v325
  %437 = vmatpush.bf16.msra.mxu0 %v324
  %438 = vmatmul.bf16.gmra.mxu0 %v150
  %v439 = vpop.f32.mrf.mxu0
  %v440 = vadd.f32 %v411, %v439
  %v441 = vpop.f32.mrf.mxu0
  %v442 = vadd.f32 %v413, %v441
  %443 = vmatmul.bf16.gmra.mxu0 %v154
  %v444 = vpop.f32.mrf.mxu0
  %v445 = vadd.f32 %v416, %v444
  %v446 = vpop.f32.mrf.mxu0
  %v447 = vadd.f32 %v418, %v446
  %448 = vmatmul.bf16.gmra.mxu0 %v158
  %v449 = vpop.f32.mrf.mxu0
  %v450 = vadd.f32 %v421, %v449
  %v451 = vpop.f32.mrf.mxu0
  %v452 = vadd.f32 %v423, %v451
  %453 = vmatmul.bf16.gmra.mxu0 %v162
  %v454 = vpop.f32.mrf.mxu0
  %v455 = vadd.f32 %v426, %v454
  %v456 = vpop.f32.mrf.mxu0
  %v457 = vadd.f32 %v428, %v456
  %458 = vdwg.mxu0
  %459 = vmatpush.bf16.msra.mxu0 %v339
  %460 = vmatpush.bf16.msra.mxu0 %v338
  %461 = vmatpush.bf16.msra.mxu0 %v337
  %462 = vmatpush.bf16.msra.mxu0 %v336
  %463 = vmatpush.bf16.msra.mxu0 %v335
  %464 = vmatpush.bf16.msra.mxu0 %v334
  %465 = vmatpush.bf16.msra.mxu0 %v333
  %466 = vmatpush.bf16.msra.mxu0 %v332
  %467 = vmatmul.bf16.gmra.mxu0 %v151
  %v468 = vpop.f32.mrf.mxu0
  %v469 = vadd.f32 %v440, %v468
  %v470 = vpop.f32.mrf.mxu0
  %v471 = vadd.f32 %v442, %v470
  %472 = vmatmul.bf16.gmra.mxu0 %v155
  %v473 = vpop.f32.mrf.mxu0
  %v474 = vadd.f32 %v445, %v473
  %v475 = vpop.f32.mrf.mxu0
  %v476 = vadd.f32 %v447, %v475
  %477 = vmatmul.bf16.gmra.mxu0 %v159
  %v478 = vpop.f32.mrf.mxu0
  %v479 = vadd.f32 %v450, %v478
  %v480 = vpop.f32.mrf.mxu0
  %v481 = vadd.f32 %v452, %v480
  %482 = vmatmul.bf16.gmra.mxu0 %v163
  %v483 = vpop.f32.mrf.mxu0
  %v484 = vadd.f32 %v455, %v483
  %v485 = vpop.f32.mrf.mxu0
  %v486 = vadd.f32 %v457, %v485
  %487 = vdwg.mxu0
  %488 = vst [vmem:[%s2] sm:$0xff] %v469
  %489 = vst [vmem:[%s2 + $0x8] sm:$0xff] %v471
  %490 = vst [vmem:[%s2 + $0x10] sm:$0xff] %v474
  %491 = vst [vmem:[%s2 + $0x18] sm:$0xff] %v476
  %492 = vst [vmem:[%s2 + $0x20] sm:$0xff] %v479
  %493 = vst [vmem:[%s2 + $0x28] sm:$0xff] %v481
  %494 = vst [vmem:[%s2 + $0x30] sm:$0xff] %v484
  %495 = vst [vmem:[%s2 + $0x38] sm:$0xff] %v486
  %v496 = vld [vmem:[%s3] sm:$0x1]
  %v497 = vadd.f32 %v469, %v471
  %v498 = vadd.f32 %v497, %v474
  %v499 = vadd.f32 %v498, %v476
  %v500 = vadd.f32 %v499, %v479
  %v501 = vadd.f32 %v500, %v481
  %v502 = vadd.f32 %v501, %v484
  %v503 = vadd.f32 %v502, %v486
  %v504 = vrot.slane %v503, 4
  %v505 = vadd.f32 %v503, %v504
  %v506 = vrot.slane %v505, 2
  %v507 = vadd.f32 %v505, %v506
  %v508 = vrot.slane %v507, 1
  %v509 = vadd.f32 %v507, %v508
  %v510 = vadd.f32 %v496, %v509
  %511 = vst [vmem:[%s3] sm:$0x1] %v510
  %v512 = vld [vmem:[%s4] sm:$0x1]
  %v513 = vmul.f32 %v469, %v469
  %v514 = vmul.f32 %v471, %v471
  %v515 = vmul.f32 %v474, %v474
  %v516 = vmul.f32 %v476, %v476
  %v517 = vmul.f32 %v479, %v479
  %v518 = vmul.f32 %v481, %v481
  %v519 = vmul.f32 %v484, %v484
  %v520 = vmul.f32 %v486, %v486
  %v521 = vadd.f32 %v513, %v514
  %v522 = vadd.f32 %v521, %v515
  %v523 = vadd.f32 %v522, %v516
  %v524 = vadd.f32 %v523, %v517
  %v525 = vadd.f32 %v524, %v518
  %v526 = vadd.f32 %v525, %v519
  %v527 = vadd.f32 %v526, %v520
  %v528 = vrot.slane %v527, 4
  %v529 = vadd.f32 %v527, %v528
  %v530 = vrot.slane %v529, 2
  %v531 = vadd.f32 %v529, %v530
  %v532 = vrot.slane %v531, 1
  %v533 = vadd.f32 %v531, %v532
  %v534 = vadd.f32 %v512, %v533
  %535 = vst [vmem:[%s4] sm:$0x1] %v534
  // Predicated region
  $region14: #{discriminator_forward.12} parent=0 // pred_check
    _
  $region15: #{discriminator_forward.12} parent=0 // pred_check_branch
    %537 = sbr.rel (0) target = $region17
  $region16: #{discriminator_forward.12} parent=0 // pred_region
    _
  $region17: #{discriminator_forward.12} parent=0 // pred_fallthru
    _
  // Predicated region
  $region18: #{discriminator_forward.12} parent=0 // pred_check
    _
  $region19: #{discriminator_forward.12} parent=0 // pred_check_branch
    %539 = sbr.rel (0) target = $region21
  $region20: #{discriminator_forward.12} parent=0 // pred_region
    _
  $region21: #{discriminator_forward.12} parent=0 // pred_fallthru
    _
  // Predicated region
  $region22: #{discriminator_forward.12} parent=0 // pred_check
    _
  $region23: #{discriminator_forward.12} parent=0 // pred_check_branch
    %541 = sbr.rel (0) target = $region25
  $region24: #{discriminator_forward.12} parent=0 // pred_region
    _
  $region25: #{discriminator_forward.12} parent=0 // pred_fallthru
    _
  // Predicated region
  $region26: #{discriminator_forward.12} parent=0 // pred_check
    _
  $region27: #{discriminator_forward.12} parent=0 // pred_check_branch
    %543 = sbr.rel (0) target = $region29
  $region28: #{discriminator_forward.12} parent=0 // pred_region
    _
  $region29: #{discriminator_forward.12} parent=0 // pred_fallthru
    _
  // Predicated region
  $region30: #{discriminator_forward.12} parent=0 // pred_check
    _
  $region31: #{discriminator_forward.12} parent=0 // pred_check_branch
    %545 = sbr.rel (0) target = $region33
  $region32: #{discriminator_forward.12} parent=0 // pred_region
    _
  $region33: #{discriminator_forward.12} parent=0 // pred_fallthru
    _
  // Predicated region
  $region34: #{discriminator_forward.12} parent=0 // pred_check
    _
  $region35: #{discriminator_forward.12} parent=0 // pred_check_branch
    %547 = sbr.rel (0) target = $region37
  $region36: #{discriminator_forward.12} parent=0 // pred_region
    _
  $region37: #{discriminator_forward.12} parent=0 // pred_fallthru
    _

</llo_original>
